<compile_context>
chip_gen: v5e
topology: v5e:2x2
jax: 0.10.0
libtpu: 0.0.40
codegen_flags: <defaults>
</compile_context>

<pallas_src>
import functools
import math

import jax
import jax.numpy as jnp
from jax.experimental import pallas as pl
from jax.experimental.pallas import tpu as pltpu


# ----------------------------- Pallas kernel ------------------------------ #
def moon_encoder_layer_kernel(
    x_ref, keep_ref,
    wqkv_ref, bqkv_ref, wo_ref, bo_ref,
    ek_ref, ev_ref, pos_ref,
    ln1_g_ref, ln1_b_ref,
    w1_ref, b1_ref, w2_ref, b2_ref,
    ln2_g_ref, ln2_b_ref,
    out_ref,
    attn_sc,
    *, num_heads,
):
  Bb, T, E = x_ref.shape
  H = num_heads
  Dh = E // H
  bf16 = jnp.bfloat16

  x = x_ref[...]                          # (Bb, T, E) f32
  xflat = x.reshape(Bb * T, E)            # free reshape (T % 8 == 0)
  x_bf = xflat.astype(bf16)

  def layer_norm(y, g_ref, b_ref):        # f32 math (v5e has no bf16 VPU)
    mu = jnp.mean(y, axis=-1, keepdims=True)
    d = y - mu
    var = jnp.mean(d * d, axis=-1, keepdims=True)
    return d * jax.lax.rsqrt(var + 1e-5) * g_ref[...] + b_ref[...]

  # -------------------- fused QKV projection (post-norm) ------------------ #
  # 1/sqrt(Dh) is already folded into the Wq / bq part of wqkv in the wrapper.
  qkv = jnp.dot(x_bf, wqkv_ref[...],
                preferred_element_type=jnp.float32) + bqkv_ref[...]  # (Bb*T, 3E)
  q = qkv[:, :E]
  k = qkv[:, E:2 * E]
  v = qkv[:, 2 * E:]

  keep = keep_ref[...]                    # (Bb, T, 1): 1.0 real token, 0.0 pad

  # -------------------- Linformer-style compressed attention -------------- #
  for b in range(Bb):                     # static loop over batch elems in block
    rows = slice(b * T, (b + 1) * T)
    keep_b = keep[b]                      # (T, 1)
    # zero padded tokens before sequence-length compression
    kb = (k[rows, :] * keep_b).astype(bf16)            # (T, E)
    vb = (v[rows, :] * keep_b).astype(bf16)
    # compress T -> L landmarks; sinusoidal positions added to compressed keys
    kc = jnp.dot(ek_ref[...], kb,
                 preferred_element_type=jnp.float32) + pos_ref[...]   # (L, E)
    vc = jnp.dot(ev_ref[...], vb,
                 preferred_element_type=jnp.float32)                  # (L, E)
    qb_bf = q[rows, :].astype(bf16)
    kc_bf = kc.astype(bf16)
    vc_bf = vc.astype(bf16)

    for h in range(H):                    # static loop over heads
      cols = slice(h * Dh, (h + 1) * Dh)
      # scores via dot_general contracting last dims (no explicit transpose)
      s = jax.lax.dot_general(
          qb_bf[:, cols], kc_bf[:, cols],
          (((1,), (1,)), ((), ())),
          preferred_element_type=jnp.float32)          # (T, L)
      s = s - jnp.max(s, axis=-1, keepdims=True)
      p = jnp.exp(s)
      p = p * pl.reciprocal(jnp.sum(p, axis=-1, keepdims=True), approx=True)
      o = jnp.dot(p.astype(bf16), vc_bf[:, cols],
                  preferred_element_type=jnp.float32)  # (T, Dh)
      attn_sc[b, :, cols] = o             # no concat; write head slice to VMEM

  attn = attn_sc[...].reshape(Bb * T, E).astype(bf16)
  attn_out = jnp.dot(attn, wo_ref[...],
                     preferred_element_type=jnp.float32) + bo_ref[...]

  # dropout is identity at inference
  x1 = xflat + attn_out
  x1 = layer_norm(x1, ln1_g_ref, ln1_b_ref)

  # ------------------------------ FFN block ------------------------------- #
  h1 = jnp.dot(x1.astype(bf16), w1_ref[...],
               preferred_element_type=jnp.float32) + b1_ref[...]
  h1 = jnp.maximum(h1, 0.0)               # activation_fn = relu (f32)
  h2 = jnp.dot(h1.astype(bf16), w2_ref[...],
               preferred_element_type=jnp.float32) + b2_ref[...]
  x2 = layer_norm(x1 + h2, ln2_g_ref, ln2_b_ref)

  out_ref[...] = x2.reshape(Bb, T, E)


# ------------------------------ JAX wrapper -------------------------------- #
def moon_encoder_layer(x_tbe, encoder_padding_mask, params, *, num_heads,
                       block_batch=None):
  """x_tbe: (T, B, E) float32; encoder_padding_mask: (B, T) (1 = pad)."""
  T, B, E = x_tbe.shape
  L = params["ek"].shape[0]
  F = params["w1"].shape[1]
  assert E % num_heads == 0, "embed_dim must be divisible by num_heads"
  scale = 1.0 / math.sqrt(E // num_heads)

  if block_batch is None:
    block_batch = next(bb for bb in (8, 4, 2, 1) if B % bb == 0)
  Bb = block_batch
  assert B % Bb == 0

  x_bte = jnp.transpose(x_tbe, (1, 0, 2)).astype(jnp.float32)          # (B,T,E)
  keep = (1.0 - encoder_padding_mask.astype(jnp.float32)).reshape(B, T, 1)

  bf16, f32 = jnp.bfloat16, jnp.float32
  # fuse Q/K/V weights and fold the attention scale into the Q part
  wqkv = jnp.concatenate(
      [params["wq"] * scale, params["wk"], params["wv"]], axis=1).astype(bf16)
  bqkv = jnp.concatenate(
      [params["bq"] * scale, params["bk"], params["bv"]], axis=1).astype(f32)

  weights = (
      wqkv, bqkv,
      params["wo"].astype(bf16), params["bo"].astype(f32),
      params["ek"].astype(bf16), params["ev"].astype(bf16),
      params["pos"].astype(f32),
      params["ln1_g"].astype(f32), params["ln1_b"].astype(f32),
      params["w1"].astype(bf16), params["b1"].astype(f32),
      params["w2"].astype(bf16), params["b2"].astype(f32),
      params["ln2_g"].astype(f32), params["ln2_b"].astype(f32),
  )
  weight_shapes = [
      (E, 3 * E), (1, 3 * E),
      (E, E), (1, E),
      (L, T), (L, T), (L, E),
      (1, E), (1, E),
      (E, F), (1, F),
      (F, E), (1, E),
      (1, E), (1, E),
  ]

  kernel = functools.partial(moon_encoder_layer_kernel, num_heads=num_heads)

  # explicit VMEM budget: bf16 weights + double-buffered activation blocks +
  # FFN intermediates, with headroom; capped below v7x physical VMEM (64 MiB).
  weight_bytes = sum(int(w.size) * w.dtype.itemsize for w in weights)
  act_bytes = Bb * T * (2 * E + 1) * 4
  ffn_bytes = Bb * T * (F + 4 * E) * 4
  vmem_limit = int(min(64 * 1024 * 1024,
                       max(16 * 1024 * 1024,
                           2 * weight_bytes + 4 * act_bytes + 2 * ffn_bytes
                           + 4 * 1024 * 1024)))

  def build(single_buffer_weights):
    def wspec(shape):
      idx = lambda *_: (0,) * len(shape)
      if single_buffer_weights:
        # constant-index weight blocks: no point double-buffering them
        return pl.BlockSpec(shape, idx, pipeline_mode=pl.Buffered(1))
      return pl.BlockSpec(shape, idx)

    in_specs = [
        pl.BlockSpec((Bb, T, E), lambda g: (g, 0, 0)),   # x
        pl.BlockSpec((Bb, T, 1), lambda g: (g, 0, 0)),   # keep mask
    ] + [wspec(s) for s in weight_shapes]

    return pl.pallas_call(
        kernel,
        out_shape=jax.ShapeDtypeStruct((B, T, E), jnp.float32),
        grid=(B // Bb,),
        in_specs=in_specs,
        out_specs=pl.BlockSpec((Bb, T, E), lambda g: (g, 0, 0)),
        scratch_shapes=[pltpu.VMEM((Bb, T, E), jnp.float32)],
        compiler_params=pltpu.CompilerParams(
            dimension_semantics=("parallel",),           # batch axis independent
            vmem_limit_bytes=vmem_limit),
    )

  args = (x_bte, keep) + weights
  try:
    out = jax.block_until_ready(build(True)(*args))
  except Exception:
    # pipeline_mode=pl.Buffered(1) not supported by this jax version:
    # fall back to default double-buffered weight blocks.
    out = jax.block_until_ready(build(False)(*args))

  return jnp.transpose(out, (1, 0, 2))                                  # (T,B,E)


# --------------------------- parameter construction ------------------------ #
def sinusoidal_positional_embedding(proj_len, embed_dim):
  half = embed_dim // 2
  emb = math.log(10000.0) / (half - 1)
  freqs = jnp.exp(jnp.arange(half, dtype=jnp.float32) * -emb)
  args = jnp.arange(proj_len, dtype=jnp.float32)[:, None] * freqs[None, :]
  pe = jnp.concatenate([jnp.sin(args), jnp.cos(args)], axis=1)
  if embed_dim % 2 == 1:
    pe = jnp.concatenate([pe, jnp.zeros((proj_len, 1), jnp.float32)], axis=1)
  return pe.astype(jnp.float32)


def init_params(key, embed_dim, ffn_dim, proj_len, seq_len):
  ks = jax.random.split(key, 8)
  n = lambda k, shape: (0.02 * jax.random.normal(k, shape, jnp.float32))
  E, F, L, T = embed_dim, ffn_dim, proj_len, seq_len
  return {
      "wq": n(ks[0], (E, E)), "bq": jnp.zeros((1, E), jnp.float32),
      "wk": n(ks[1], (E, E)), "bk": jnp.zeros((1, E), jnp.float32),
      "wv": n(ks[2], (E, E)), "bv": jnp.zeros((1, E), jnp.float32),
      "wo": n(ks[3], (E, E)), "bo": jnp.zeros((1, E), jnp.float32),
      "ek": n(ks[4], (L, T)),
      "ev": n(ks[5], (L, T)),
      "pos": sinusoidal_positional_embedding(L, E),
      "ln1_g": jnp.ones((1, E), jnp.float32),
      "ln1_b": jnp.zeros((1, E), jnp.float32),
      "w1": n(ks[6], (E, F)), "b1": jnp.zeros((1, F), jnp.float32),
      "w2": n(ks[7], (F, E)), "b2": jnp.zeros((1, E), jnp.float32),
      "ln2_g": jnp.ones((1, E), jnp.float32),
      "ln2_b": jnp.zeros((1, E), jnp.float32),
  }


if __name__ == "__main__":
  # small shapes consistent with the module's forward signature
  # (deployment shapes should keep E, F, L as multiples of 128 and T % 8 == 0
  #  for lane-dense stores / full MXU tiles)
  T, B, E = 8, 2, 32          # (seq_len, batch, embed_dim)
  H = 4                       # encoder_attention_heads
  L = 16                      # encoder_projected_length
  F = 64                      # encoder_ffn_embed_dim

  key = jax.random.PRNGKey(0)
  k_x, k_p = jax.random.split(key)
  x = jax.random.normal(k_x, (T, B, E), jnp.float32)
  # padding mask: (B, T), 1 indicates padding — pad last 2 tokens of batch 1
  pad_mask = jnp.zeros((B, T), jnp.int32).at[1, -2:].set(1)

  params = init_params(k_p, E, F, L, T)

  y = moon_encoder_layer(x, pad_mask, params, num_heads=H, block_batch=2)
  y = jax.block_until_ready(y)
  assert y.shape == (T, B, E) and y.dtype == jnp.float32
  print("KERNEL_OK")
</pallas_src>

<mosaic_0001>
module attributes {stable_mosaic.version = 11 : i64} {
  func.func @moon_encoder_layer_kernel(%arg0: i32, %arg1: memref<2x8x32xf32, #tpu.memory_space<vmem>>, %arg2: memref<2x8x1xf32, #tpu.memory_space<vmem>>, %arg3: memref<32x96xbf16, #tpu.memory_space<vmem>>, %arg4: memref<1x96xf32, #tpu.memory_space<vmem>>, %arg5: memref<32x32xbf16, #tpu.memory_space<vmem>>, %arg6: memref<1x32xf32, #tpu.memory_space<vmem>>, %arg7: memref<16x8xbf16, #tpu.memory_space<vmem>>, %arg8: memref<16x8xbf16, #tpu.memory_space<vmem>>, %arg9: memref<16x32xf32, #tpu.memory_space<vmem>>, %arg10: memref<1x32xf32, #tpu.memory_space<vmem>>, %arg11: memref<1x32xf32, #tpu.memory_space<vmem>>, %arg12: memref<32x64xbf16, #tpu.memory_space<vmem>>, %arg13: memref<1x64xf32, #tpu.memory_space<vmem>>, %arg14: memref<64x32xbf16, #tpu.memory_space<vmem>>, %arg15: memref<1x32xf32, #tpu.memory_space<vmem>>, %arg16: memref<1x32xf32, #tpu.memory_space<vmem>>, %arg17: memref<1x32xf32, #tpu.memory_space<vmem>>, %arg18: memref<2x8x32xf32, #tpu.memory_space<vmem>>, %arg19: memref<2x8x32xf32, #tpu.memory_space<vmem>>) attributes {dimension_semantics = [#tpu.dimension_semantics<parallel>], iteration_bounds = array<i64: 1>, scalar_prefetch = 0 : i64, scratch_operands = 1 : i64, tpu.core_type = #tpu.core_type<tc>, window_params = [{transform_indices = @transform_0, window_bounds = array<i64: 2, 8, 32>}, {transform_indices = @transform_1, window_bounds = array<i64: 2, 8, 1>}, {pipeline_mode = #tpu.pipeline_mode<synchronous>, transform_indices = @transform_2, window_bounds = array<i64: 32, 96>}, {pipeline_mode = #tpu.pipeline_mode<synchronous>, transform_indices = @transform_3, window_bounds = array<i64: 1, 96>}, {pipeline_mode = #tpu.pipeline_mode<synchronous>, transform_indices = @transform_4, window_bounds = array<i64: 32, 32>}, {pipeline_mode = #tpu.pipeline_mode<synchronous>, transform_indices = @transform_5, window_bounds = array<i64: 1, 32>}, {pipeline_mode = #tpu.pipeline_mode<synchronous>, transform_indices = @transform_6, window_bounds = array<i64: 16, 8>}, {pipeline_mode = #tpu.pipeline_mode<synchronous>, transform_indices = @transform_7, window_bounds = array<i64: 16, 8>}, {pipeline_mode = #tpu.pipeline_mode<synchronous>, transform_indices = @transform_8, window_bounds = array<i64: 16, 32>}, {pipeline_mode = #tpu.pipeline_mode<synchronous>, transform_indices = @transform_9, window_bounds = array<i64: 1, 32>}, {pipeline_mode = #tpu.pipeline_mode<synchronous>, transform_indices = @transform_10, window_bounds = array<i64: 1, 32>}, {pipeline_mode = #tpu.pipeline_mode<synchronous>, transform_indices = @transform_11, window_bounds = array<i64: 32, 64>}, {pipeline_mode = #tpu.pipeline_mode<synchronous>, transform_indices = @transform_12, window_bounds = array<i64: 1, 64>}, {pipeline_mode = #tpu.pipeline_mode<synchronous>, transform_indices = @transform_13, window_bounds = array<i64: 64, 32>}, {pipeline_mode = #tpu.pipeline_mode<synchronous>, transform_indices = @transform_14, window_bounds = array<i64: 1, 32>}, {pipeline_mode = #tpu.pipeline_mode<synchronous>, transform_indices = @transform_15, window_bounds = array<i64: 1, 32>}, {pipeline_mode = #tpu.pipeline_mode<synchronous>, transform_indices = @transform_16, window_bounds = array<i64: 1, 32>}, {transform_indices = @transform_17, window_bounds = array<i64: 2, 8, 32>}]} {
    %c0 = arith.constant 0 : index
    %c0_0 = arith.constant 0 : index
    %c0_1 = arith.constant 0 : index
    %0 = vector.load %arg1[%c0, %c0_0, %c0_1] : memref<2x8x32xf32, #tpu.memory_space<vmem>>, vector<2x8x32xf32>
    %1 = vector.shape_cast %0 : vector<2x8x32xf32> to vector<16x32xf32>
    %2 = arith.truncf %1 : vector<16x32xf32> to vector<16x32xbf16>
    %c0_2 = arith.constant 0 : index
    %c0_3 = arith.constant 0 : index
    %3 = vector.load %arg3[%c0_2, %c0_3] : memref<32x96xbf16, #tpu.memory_space<vmem>>, vector<32x96xbf16>
    %cst = arith.constant dense<0.000000e+00> : vector<16x96xf32>
    %4 = tpu.matmul %2, %3, %cst {dimension_numbers = #tpu.dot_dimension_numbers<[1], [0], [0], [1], [0, 0, 1, 1], [], []>} : vector<16x32xbf16>, vector<32x96xbf16>, vector<16x96xf32> -> vector<16x96xf32>
    %c0_4 = arith.constant 0 : index
    %c0_5 = arith.constant 0 : index
    %5 = vector.load %arg4[%c0_4, %c0_5] : memref<1x96xf32, #tpu.memory_space<vmem>>, vector<1x96xf32>
    %6 = vector.broadcast %5 : vector<1x96xf32> to vector<16x96xf32>
    %7 = arith.addf %4, %6 : vector<16x96xf32>
    %8 = vector.extract_strided_slice %7 {offsets = [0, 0], sizes = [16, 32], strides = [1, 1]} : vector<16x96xf32> to vector<16x32xf32>
    %9 = vector.extract_strided_slice %7 {offsets = [0, 32], sizes = [16, 32], strides = [1, 1]} : vector<16x96xf32> to vector<16x32xf32>
    %10 = vector.extract_strided_slice %7 {offsets = [0, 64], sizes = [16, 32], strides = [1, 1]} : vector<16x96xf32> to vector<16x32xf32>
    %c0_6 = arith.constant 0 : index
    %c0_7 = arith.constant 0 : index
    %c0_8 = arith.constant 0 : index
    %11 = vector.load %arg2[%c0_6, %c0_7, %c0_8] : memref<2x8x1xf32, #tpu.memory_space<vmem>>, vector<2x8x1xf32>
    %12 = vector.extract_strided_slice %11 {offsets = [0, 0, 0], sizes = [1, 8, 1], strides = [1, 1, 1]} : vector<2x8x1xf32> to vector<1x8x1xf32>
    %13 = vector.shape_cast %12 : vector<1x8x1xf32> to vector<8x1xf32>
    %14 = vector.extract_strided_slice %9 {offsets = [0, 0], sizes = [8, 32], strides = [1, 1]} : vector<16x32xf32> to vector<8x32xf32>
    %15 = vector.broadcast %13 : vector<8x1xf32> to vector<8x32xf32>
    %16 = arith.mulf %14, %15 : vector<8x32xf32>
    %17 = arith.truncf %16 : vector<8x32xf32> to vector<8x32xbf16>
    %18 = vector.extract_strided_slice %10 {offsets = [0, 0], sizes = [8, 32], strides = [1, 1]} : vector<16x32xf32> to vector<8x32xf32>
    %19 = vector.broadcast %13 : vector<8x1xf32> to vector<8x32xf32>
    %20 = arith.mulf %18, %19 : vector<8x32xf32>
    %21 = arith.truncf %20 : vector<8x32xf32> to vector<8x32xbf16>
    %c0_9 = arith.constant 0 : index
    %c0_10 = arith.constant 0 : index
    %22 = vector.load %arg7[%c0_9, %c0_10] : memref<16x8xbf16, #tpu.memory_space<vmem>>, vector<16x8xbf16>
    %cst_11 = arith.constant dense<0.000000e+00> : vector<16x32xf32>
    %23 = tpu.matmul %22, %17, %cst_11 {dimension_numbers = #tpu.dot_dimension_numbers<[1], [0], [0], [1], [0, 0, 1, 1], [], []>} : vector<16x8xbf16>, vector<8x32xbf16>, vector<16x32xf32> -> vector<16x32xf32>
    %c0_12 = arith.constant 0 : index
    %c0_13 = arith.constant 0 : index
    %24 = vector.load %arg9[%c0_12, %c0_13] : memref<16x32xf32, #tpu.memory_space<vmem>>, vector<16x32xf32>
    %25 = arith.addf %23, %24 : vector<16x32xf32>
    %c0_14 = arith.constant 0 : index
    %c0_15 = arith.constant 0 : index
    %26 = vector.load %arg8[%c0_14, %c0_15] : memref<16x8xbf16, #tpu.memory_space<vmem>>, vector<16x8xbf16>
    %cst_16 = arith.constant dense<0.000000e+00> : vector<16x32xf32>
    %27 = tpu.matmul %26, %21, %cst_16 {dimension_numbers = #tpu.dot_dimension_numbers<[1], [0], [0], [1], [0, 0, 1, 1], [], []>} : vector<16x8xbf16>, vector<8x32xbf16>, vector<16x32xf32> -> vector<16x32xf32>
    %28 = vector.extract_strided_slice %8 {offsets = [0, 0], sizes = [8, 32], strides = [1, 1]} : vector<16x32xf32> to vector<8x32xf32>
    %29 = arith.truncf %28 : vector<8x32xf32> to vector<8x32xbf16>
    %30 = arith.truncf %25 : vector<16x32xf32> to vector<16x32xbf16>
    %31 = arith.truncf %27 : vector<16x32xf32> to vector<16x32xbf16>
    %32 = vector.extract_strided_slice %29 {offsets = [0, 0], sizes = [8, 8], strides = [1, 1]} : vector<8x32xbf16> to vector<8x8xbf16>
    %33 = vector.extract_strided_slice %30 {offsets = [0, 0], sizes = [16, 8], strides = [1, 1]} : vector<16x32xbf16> to vector<16x8xbf16>
    %cst_17 = arith.constant dense<0.000000e+00> : vector<8x16xf32>
    %34 = tpu.matmul %32, %33, %cst_17 {dimension_numbers = #tpu.dot_dimension_numbers<[1], [1], [0], [0], [0, 0, 1, 0], [], []>} : vector<8x8xbf16>, vector<16x8xbf16>, vector<8x16xf32> -> vector<8x16xf32>
    %cst_18 = arith.constant dense<0xFF800000> : vector<8xf32>
    %35 = vector.multi_reduction <maximumf>, %34, %cst_18 [1] : vector<8x16xf32> to vector<8xf32>
    %36 = vector.shape_cast %35 : vector<8xf32> to vector<8x1xf32>
    %37 = vector.broadcast %36 : vector<8x1xf32> to vector<8x16xf32>
    %38 = arith.subf %34, %37 : vector<8x16xf32>
    %39 = math.exp %38 : vector<8x16xf32>
    %cst_19 = arith.constant dense<0.000000e+00> : vector<8xf32>
    %40 = vector.multi_reduction <add>, %39, %cst_19 [1] : vector<8x16xf32> to vector<8xf32>
    %41 = vector.shape_cast %40 : vector<8xf32> to vector<8x1xf32>
    %42 = tpu.reciprocal %41 {approx = true} : vector<8x1xf32> -> vector<8x1xf32>
    %43 = vector.broadcast %42 : vector<8x1xf32> to vector<8x16xf32>
    %44 = arith.mulf %39, %43 : vector<8x16xf32>
    %45 = arith.truncf %44 : vector<8x16xf32> to vector<8x16xbf16>
    %46 = vector.extract_strided_slice %31 {offsets = [0, 0], sizes = [16, 8], strides = [1, 1]} : vector<16x32xbf16> to vector<16x8xbf16>
    %cst_20 = arith.constant dense<0.000000e+00> : vector<8x8xf32>
    %47 = tpu.matmul %45, %46, %cst_20 {dimension_numbers = #tpu.dot_dimension_numbers<[1], [0], [0], [1], [0, 0, 1, 1], [], []>} : vector<8x16xbf16>, vector<16x8xbf16>, vector<8x8xf32> -> vector<8x8xf32>
    %c0_21 = arith.constant 0 : index
    %c0_22 = arith.constant 0 : index
    %c0_23 = arith.constant 0 : index
    %48 = vector.load %arg19[%c0_21, %c0_22, %c0_23] : memref<2x8x32xf32, #tpu.memory_space<vmem>>, vector<1x8x8xf32>
    %49 = vector.shape_cast %48 : vector<1x8x8xf32> to vector<8x8xf32>
    %50 = vector.shape_cast %47 : vector<8x8xf32> to vector<1x8x8xf32>
    tpu.vector_store %arg19[%c0_21, %c0_22, %c0_23], %50 {strides = array<i32>} : memref<2x8x32xf32, #tpu.memory_space<vmem>>, vector<1x8x8xf32>,
    %51 = vector.extract_strided_slice %29 {offsets = [0, 8], sizes = [8, 8], strides = [1, 1]} : vector<8x32xbf16> to vector<8x8xbf16>
    %52 = vector.extract_strided_slice %30 {offsets = [0, 8], sizes = [16, 8], strides = [1, 1]} : vector<16x32xbf16> to vector<16x8xbf16>
    %cst_24 = arith.constant dense<0.000000e+00> : vector<8x16xf32>
    %53 = tpu.matmul %51, %52, %cst_24 {dimension_numbers = #tpu.dot_dimension_numbers<[1], [1], [0], [0], [0, 0, 1, 0], [], []>} : vector<8x8xbf16>, vector<16x8xbf16>, vector<8x16xf32> -> vector<8x16xf32>
    %cst_25 = arith.constant dense<0xFF800000> : vector<8xf32>
    %54 = vector.multi_reduction <maximumf>, %53, %cst_25 [1] : vector<8x16xf32> to vector<8xf32>
    %55 = vector.shape_cast %54 : vector<8xf32> to vector<8x1xf32>
    %56 = vector.broadcast %55 : vector<8x1xf32> to vector<8x16xf32>
    %57 = arith.subf %53, %56 : vector<8x16xf32>
    %58 = math.exp %57 : vector<8x16xf32>
    %cst_26 = arith.constant dense<0.000000e+00> : vector<8xf32>
    %59 = vector.multi_reduction <add>, %58, %cst_26 [1] : vector<8x16xf32> to vector<8xf32>
    %60 = vector.shape_cast %59 : vector<8xf32> to vector<8x1xf32>
    %61 = tpu.reciprocal %60 {approx = true} : vector<8x1xf32> -> vector<8x1xf32>
    %62 = vector.broadcast %61 : vector<8x1xf32> to vector<8x16xf32>
    %63 = arith.mulf %58, %62 : vector<8x16xf32>
    %64 = arith.truncf %63 : vector<8x16xf32> to vector<8x16xbf16>
    %65 = vector.extract_strided_slice %31 {offsets = [0, 8], sizes = [16, 8], strides = [1, 1]} : vector<16x32xbf16> to vector<16x8xbf16>
    %cst_27 = arith.constant dense<0.000000e+00> : vector<8x8xf32>
    %66 = tpu.matmul %64, %65, %cst_27 {dimension_numbers = #tpu.dot_dimension_numbers<[1], [0], [0], [1], [0, 0, 1, 1], [], []>} : vector<8x16xbf16>, vector<16x8xbf16>, vector<8x8xf32> -> vector<8x8xf32>
    %c0_28 = arith.constant 0 : index
    %c0_29 = arith.constant 0 : index
    %c8 = arith.constant 8 : index
    %67 = vector.load %arg19[%c0_28, %c0_29, %c8] : memref<2x8x32xf32, #tpu.memory_space<vmem>>, vector<1x8x8xf32>
    %68 = vector.shape_cast %67 : vector<1x8x8xf32> to vector<8x8xf32>
    %69 = vector.shape_cast %66 : vector<8x8xf32> to vector<1x8x8xf32>
    tpu.vector_store %arg19[%c0_28, %c0_29, %c8], %69 {strides = array<i32>} : memref<2x8x32xf32, #tpu.memory_space<vmem>>, vector<1x8x8xf32>,
    %70 = vector.extract_strided_slice %29 {offsets = [0, 16], sizes = [8, 8], strides = [1, 1]} : vector<8x32xbf16> to vector<8x8xbf16>
    %71 = vector.extract_strided_slice %30 {offsets = [0, 16], sizes = [16, 8], strides = [1, 1]} : vector<16x32xbf16> to vector<16x8xbf16>
    %cst_30 = arith.constant dense<0.000000e+00> : vector<8x16xf32>
    %72 = tpu.matmul %70, %71, %cst_30 {dimension_numbers = #tpu.dot_dimension_numbers<[1], [1], [0], [0], [0, 0, 1, 0], [], []>} : vector<8x8xbf16>, vector<16x8xbf16>, vector<8x16xf32> -> vector<8x16xf32>
    %cst_31 = arith.constant dense<0xFF800000> : vector<8xf32>
    %73 = vector.multi_reduction <maximumf>, %72, %cst_31 [1] : vector<8x16xf32> to vector<8xf32>
    %74 = vector.shape_cast %73 : vector<8xf32> to vector<8x1xf32>
    %75 = vector.broadcast %74 : vector<8x1xf32> to vector<8x16xf32>
    %76 = arith.subf %72, %75 : vector<8x16xf32>
    %77 = math.exp %76 : vector<8x16xf32>
    %cst_32 = arith.constant dense<0.000000e+00> : vector<8xf32>
    %78 = vector.multi_reduction <add>, %77, %cst_32 [1] : vector<8x16xf32> to vector<8xf32>
    %79 = vector.shape_cast %78 : vector<8xf32> to vector<8x1xf32>
    %80 = tpu.reciprocal %79 {approx = true} : vector<8x1xf32> -> vector<8x1xf32>
    %81 = vector.broadcast %80 : vector<8x1xf32> to vector<8x16xf32>
    %82 = arith.mulf %77, %81 : vector<8x16xf32>
    %83 = arith.truncf %82 : vector<8x16xf32> to vector<8x16xbf16>
    %84 = vector.extract_strided_slice %31 {offsets = [0, 16], sizes = [16, 8], strides = [1, 1]} : vector<16x32xbf16> to vector<16x8xbf16>
    %cst_33 = arith.constant dense<0.000000e+00> : vector<8x8xf32>
    %85 = tpu.matmul %83, %84, %cst_33 {dimension_numbers = #tpu.dot_dimension_numbers<[1], [0], [0], [1], [0, 0, 1, 1], [], []>} : vector<8x16xbf16>, vector<16x8xbf16>, vector<8x8xf32> -> vector<8x8xf32>
    %c0_34 = arith.constant 0 : index
    %c0_35 = arith.constant 0 : index
    %c16 = arith.constant 16 : index
    %86 = vector.load %arg19[%c0_34, %c0_35, %c16] : memref<2x8x32xf32, #tpu.memory_space<vmem>>, vector<1x8x8xf32>
    %87 = vector.shape_cast %86 : vector<1x8x8xf32> to vector<8x8xf32>
    %88 = vector.shape_cast %85 : vector<8x8xf32> to vector<1x8x8xf32>
    tpu.vector_store %arg19[%c0_34, %c0_35, %c16], %88 {strides = array<i32>} : memref<2x8x32xf32, #tpu.memory_space<vmem>>, vector<1x8x8xf32>,
    %89 = vector.extract_strided_slice %29 {offsets = [0, 24], sizes = [8, 8], strides = [1, 1]} : vector<8x32xbf16> to vector<8x8xbf16>
    %90 = vector.extract_strided_slice %30 {offsets = [0, 24], sizes = [16, 8], strides = [1, 1]} : vector<16x32xbf16> to vector<16x8xbf16>
    %cst_36 = arith.constant dense<0.000000e+00> : vector<8x16xf32>
    %91 = tpu.matmul %89, %90, %cst_36 {dimension_numbers = #tpu.dot_dimension_numbers<[1], [1], [0], [0], [0, 0, 1, 0], [], []>} : vector<8x8xbf16>, vector<16x8xbf16>, vector<8x16xf32> -> vector<8x16xf32>
    %cst_37 = arith.constant dense<0xFF800000> : vector<8xf32>
    %92 = vector.multi_reduction <maximumf>, %91, %cst_37 [1] : vector<8x16xf32> to vector<8xf32>
    %93 = vector.shape_cast %92 : vector<8xf32> to vector<8x1xf32>
    %94 = vector.broadcast %93 : vector<8x1xf32> to vector<8x16xf32>
    %95 = arith.subf %91, %94 : vector<8x16xf32>
    %96 = math.exp %95 : vector<8x16xf32>
    %cst_38 = arith.constant dense<0.000000e+00> : vector<8xf32>
    %97 = vector.multi_reduction <add>, %96, %cst_38 [1] : vector<8x16xf32> to vector<8xf32>
    %98 = vector.shape_cast %97 : vector<8xf32> to vector<8x1xf32>
    %99 = tpu.reciprocal %98 {approx = true} : vector<8x1xf32> -> vector<8x1xf32>
    %100 = vector.broadcast %99 : vector<8x1xf32> to vector<8x16xf32>
    %101 = arith.mulf %96, %100 : vector<8x16xf32>
    %102 = arith.truncf %101 : vector<8x16xf32> to vector<8x16xbf16>
    %103 = vector.extract_strided_slice %31 {offsets = [0, 24], sizes = [16, 8], strides = [1, 1]} : vector<16x32xbf16> to vector<16x8xbf16>
    %cst_39 = arith.constant dense<0.000000e+00> : vector<8x8xf32>
    %104 = tpu.matmul %102, %103, %cst_39 {dimension_numbers = #tpu.dot_dimension_numbers<[1], [0], [0], [1], [0, 0, 1, 1], [], []>} : vector<8x16xbf16>, vector<16x8xbf16>, vector<8x8xf32> -> vector<8x8xf32>
    %c0_40 = arith.constant 0 : index
    %c0_41 = arith.constant 0 : index
    %c24 = arith.constant 24 : index
    %105 = vector.load %arg19[%c0_40, %c0_41, %c24] : memref<2x8x32xf32, #tpu.memory_space<vmem>>, vector<1x8x8xf32>
    %106 = vector.shape_cast %105 : vector<1x8x8xf32> to vector<8x8xf32>
    %107 = vector.shape_cast %104 : vector<8x8xf32> to vector<1x8x8xf32>
    tpu.vector_store %arg19[%c0_40, %c0_41, %c24], %107 {strides = array<i32>} : memref<2x8x32xf32, #tpu.memory_space<vmem>>, vector<1x8x8xf32>,
    %108 = vector.extract_strided_slice %11 {offsets = [1, 0, 0], sizes = [1, 8, 1], strides = [1, 1, 1]} : vector<2x8x1xf32> to vector<1x8x1xf32>
    %109 = vector.shape_cast %108 : vector<1x8x1xf32> to vector<8x1xf32>
    %110 = vector.extract_strided_slice %9 {offsets = [8, 0], sizes = [8, 32], strides = [1, 1]} : vector<16x32xf32> to vector<8x32xf32>
    %111 = vector.broadcast %109 : vector<8x1xf32> to vector<8x32xf32>
    %112 = arith.mulf %110, %111 : vector<8x32xf32>
    %113 = arith.truncf %112 : vector<8x32xf32> to vector<8x32xbf16>
    %114 = vector.extract_strided_slice %10 {offsets = [8, 0], sizes = [8, 32], strides = [1, 1]} : vector<16x32xf32> to vector<8x32xf32>
    %115 = vector.broadcast %109 : vector<8x1xf32> to vector<8x32xf32>
    %116 = arith.mulf %114, %115 : vector<8x32xf32>
    %117 = arith.truncf %116 : vector<8x32xf32> to vector<8x32xbf16>
    %c0_42 = arith.constant 0 : index
    %c0_43 = arith.constant 0 : index
    %118 = vector.load %arg7[%c0_42, %c0_43] : memref<16x8xbf16, #tpu.memory_space<vmem>>, vector<16x8xbf16>
    %cst_44 = arith.constant dense<0.000000e+00> : vector<16x32xf32>
    %119 = tpu.matmul %118, %113, %cst_44 {dimension_numbers = #tpu.dot_dimension_numbers<[1], [0], [0], [1], [0, 0, 1, 1], [], []>} : vector<16x8xbf16>, vector<8x32xbf16>, vector<16x32xf32> -> vector<16x32xf32>
    %c0_45 = arith.constant 0 : index
    %c0_46 = arith.constant 0 : index
    %120 = vector.load %arg9[%c0_45, %c0_46] : memref<16x32xf32, #tpu.memory_space<vmem>>, vector<16x32xf32>
    %121 = arith.addf %119, %120 : vector<16x32xf32>
    %c0_47 = arith.constant 0 : index
    %c0_48 = arith.constant 0 : index
    %122 = vector.load %arg8[%c0_47, %c0_48] : memref<16x8xbf16, #tpu.memory_space<vmem>>, vector<16x8xbf16>
    %cst_49 = arith.constant dense<0.000000e+00> : vector<16x32xf32>
    %123 = tpu.matmul %122, %117, %cst_49 {dimension_numbers = #tpu.dot_dimension_numbers<[1], [0], [0], [1], [0, 0, 1, 1], [], []>} : vector<16x8xbf16>, vector<8x32xbf16>, vector<16x32xf32> -> vector<16x32xf32>
    %124 = vector.extract_strided_slice %8 {offsets = [8, 0], sizes = [8, 32], strides = [1, 1]} : vector<16x32xf32> to vector<8x32xf32>
    %125 = arith.truncf %124 : vector<8x32xf32> to vector<8x32xbf16>
    %126 = arith.truncf %121 : vector<16x32xf32> to vector<16x32xbf16>
    %127 = arith.truncf %123 : vector<16x32xf32> to vector<16x32xbf16>
    %128 = vector.extract_strided_slice %125 {offsets = [0, 0], sizes = [8, 8], strides = [1, 1]} : vector<8x32xbf16> to vector<8x8xbf16>
    %129 = vector.extract_strided_slice %126 {offsets = [0, 0], sizes = [16, 8], strides = [1, 1]} : vector<16x32xbf16> to vector<16x8xbf16>
    %cst_50 = arith.constant dense<0.000000e+00> : vector<8x16xf32>
    %130 = tpu.matmul %128, %129, %cst_50 {dimension_numbers = #tpu.dot_dimension_numbers<[1], [1], [0], [0], [0, 0, 1, 0], [], []>} : vector<8x8xbf16>, vector<16x8xbf16>, vector<8x16xf32> -> vector<8x16xf32>
    %cst_51 = arith.constant dense<0xFF800000> : vector<8xf32>
    %131 = vector.multi_reduction <maximumf>, %130, %cst_51 [1] : vector<8x16xf32> to vector<8xf32>
    %132 = vector.shape_cast %131 : vector<8xf32> to vector<8x1xf32>
    %133 = vector.broadcast %132 : vector<8x1xf32> to vector<8x16xf32>
    %134 = arith.subf %130, %133 : vector<8x16xf32>
    %135 = math.exp %134 : vector<8x16xf32>
    %cst_52 = arith.constant dense<0.000000e+00> : vector<8xf32>
    %136 = vector.multi_reduction <add>, %135, %cst_52 [1] : vector<8x16xf32> to vector<8xf32>
    %137 = vector.shape_cast %136 : vector<8xf32> to vector<8x1xf32>
    %138 = tpu.reciprocal %137 {approx = true} : vector<8x1xf32> -> vector<8x1xf32>
    %139 = vector.broadcast %138 : vector<8x1xf32> to vector<8x16xf32>
    %140 = arith.mulf %135, %139 : vector<8x16xf32>
    %141 = arith.truncf %140 : vector<8x16xf32> to vector<8x16xbf16>
    %142 = vector.extract_strided_slice %127 {offsets = [0, 0], sizes = [16, 8], strides = [1, 1]} : vector<16x32xbf16> to vector<16x8xbf16>
    %cst_53 = arith.constant dense<0.000000e+00> : vector<8x8xf32>
    %143 = tpu.matmul %141, %142, %cst_53 {dimension_numbers = #tpu.dot_dimension_numbers<[1], [0], [0], [1], [0, 0, 1, 1], [], []>} : vector<8x16xbf16>, vector<16x8xbf16>, vector<8x8xf32> -> vector<8x8xf32>
    %c1 = arith.constant 1 : index
    %c0_54 = arith.constant 0 : index
    %c0_55 = arith.constant 0 : index
    %144 = vector.load %arg19[%c1, %c0_54, %c0_55] : memref<2x8x32xf32, #tpu.memory_space<vmem>>, vector<1x8x8xf32>
    %145 = vector.shape_cast %144 : vector<1x8x8xf32> to vector<8x8xf32>
    %146 = vector.shape_cast %143 : vector<8x8xf32> to vector<1x8x8xf32>
    tpu.vector_store %arg19[%c1, %c0_54, %c0_55], %146 {strides = array<i32>} : memref<2x8x32xf32, #tpu.memory_space<vmem>>, vector<1x8x8xf32>,
    %147 = vector.extract_strided_slice %125 {offsets = [0, 8], sizes = [8, 8], strides = [1, 1]} : vector<8x32xbf16> to vector<8x8xbf16>
    %148 = vector.extract_strided_slice %126 {offsets = [0, 8], sizes = [16, 8], strides = [1, 1]} : vector<16x32xbf16> to vector<16x8xbf16>
    %cst_56 = arith.constant dense<0.000000e+00> : vector<8x16xf32>
    %149 = tpu.matmul %147, %148, %cst_56 {dimension_numbers = #tpu.dot_dimension_numbers<[1], [1], [0], [0], [0, 0, 1, 0], [], []>} : vector<8x8xbf16>, vector<16x8xbf16>, vector<8x16xf32> -> vector<8x16xf32>
    %cst_57 = arith.constant dense<0xFF800000> : vector<8xf32>
    %150 = vector.multi_reduction <maximumf>, %149, %cst_57 [1] : vector<8x16xf32> to vector<8xf32>
    %151 = vector.shape_cast %150 : vector<8xf32> to vector<8x1xf32>
    %152 = vector.broadcast %151 : vector<8x1xf32> to vector<8x16xf32>
    %153 = arith.subf %149, %152 : vector<8x16xf32>
    %154 = math.exp %153 : vector<8x16xf32>
    %cst_58 = arith.constant dense<0.000000e+00> : vector<8xf32>
    %155 = vector.multi_reduction <add>, %154, %cst_58 [1] : vector<8x16xf32> to vector<8xf32>
    %156 = vector.shape_cast %155 : vector<8xf32> to vector<8x1xf32>
    %157 = tpu.reciprocal %156 {approx = true} : vector<8x1xf32> -> vector<8x1xf32>
    %158 = vector.broadcast %157 : vector<8x1xf32> to vector<8x16xf32>
    %159 = arith.mulf %154, %158 : vector<8x16xf32>
    %160 = arith.truncf %159 : vector<8x16xf32> to vector<8x16xbf16>
    %161 = vector.extract_strided_slice %127 {offsets = [0, 8], sizes = [16, 8], strides = [1, 1]} : vector<16x32xbf16> to vector<16x8xbf16>
    %cst_59 = arith.constant dense<0.000000e+00> : vector<8x8xf32>
    %162 = tpu.matmul %160, %161, %cst_59 {dimension_numbers = #tpu.dot_dimension_numbers<[1], [0], [0], [1], [0, 0, 1, 1], [], []>} : vector<8x16xbf16>, vector<16x8xbf16>, vector<8x8xf32> -> vector<8x8xf32>
    %c1_60 = arith.constant 1 : index
    %c0_61 = arith.constant 0 : index
    %c8_62 = arith.constant 8 : index
    %163 = vector.load %arg19[%c1_60, %c0_61, %c8_62] : memref<2x8x32xf32, #tpu.memory_space<vmem>>, vector<1x8x8xf32>
    %164 = vector.shape_cast %163 : vector<1x8x8xf32> to vector<8x8xf32>
    %165 = vector.shape_cast %162 : vector<8x8xf32> to vector<1x8x8xf32>
    tpu.vector_store %arg19[%c1_60, %c0_61, %c8_62], %165 {strides = array<i32>} : memref<2x8x32xf32, #tpu.memory_space<vmem>>, vector<1x8x8xf32>,
    %166 = vector.extract_strided_slice %125 {offsets = [0, 16], sizes = [8, 8], strides = [1, 1]} : vector<8x32xbf16> to vector<8x8xbf16>
    %167 = vector.extract_strided_slice %126 {offsets = [0, 16], sizes = [16, 8], strides = [1, 1]} : vector<16x32xbf16> to vector<16x8xbf16>
    %cst_63 = arith.constant dense<0.000000e+00> : vector<8x16xf32>
    %168 = tpu.matmul %166, %167, %cst_63 {dimension_numbers = #tpu.dot_dimension_numbers<[1], [1], [0], [0], [0, 0, 1, 0], [], []>} : vector<8x8xbf16>, vector<16x8xbf16>, vector<8x16xf32> -> vector<8x16xf32>
    %cst_64 = arith.constant dense<0xFF800000> : vector<8xf32>
    %169 = vector.multi_reduction <maximumf>, %168, %cst_64 [1] : vector<8x16xf32> to vector<8xf32>
    %170 = vector.shape_cast %169 : vector<8xf32> to vector<8x1xf32>
    %171 = vector.broadcast %170 : vector<8x1xf32> to vector<8x16xf32>
    %172 = arith.subf %168, %171 : vector<8x16xf32>
    %173 = math.exp %172 : vector<8x16xf32>
    %cst_65 = arith.constant dense<0.000000e+00> : vector<8xf32>
    %174 = vector.multi_reduction <add>, %173, %cst_65 [1] : vector<8x16xf32> to vector<8xf32>
    %175 = vector.shape_cast %174 : vector<8xf32> to vector<8x1xf32>
    %176 = tpu.reciprocal %175 {approx = true} : vector<8x1xf32> -> vector<8x1xf32>
    %177 = vector.broadcast %176 : vector<8x1xf32> to vector<8x16xf32>
    %178 = arith.mulf %173, %177 : vector<8x16xf32>
    %179 = arith.truncf %178 : vector<8x16xf32> to vector<8x16xbf16>
    %180 = vector.extract_strided_slice %127 {offsets = [0, 16], sizes = [16, 8], strides = [1, 1]} : vector<16x32xbf16> to vector<16x8xbf16>
    %cst_66 = arith.constant dense<0.000000e+00> : vector<8x8xf32>
    %181 = tpu.matmul %179, %180, %cst_66 {dimension_numbers = #tpu.dot_dimension_numbers<[1], [0], [0], [1], [0, 0, 1, 1], [], []>} : vector<8x16xbf16>, vector<16x8xbf16>, vector<8x8xf32> -> vector<8x8xf32>
    %c1_67 = arith.constant 1 : index
    %c0_68 = arith.constant 0 : index
    %c16_69 = arith.constant 16 : index
    %182 = vector.load %arg19[%c1_67, %c0_68, %c16_69] : memref<2x8x32xf32, #tpu.memory_space<vmem>>, vector<1x8x8xf32>
    %183 = vector.shape_cast %182 : vector<1x8x8xf32> to vector<8x8xf32>
    %184 = vector.shape_cast %181 : vector<8x8xf32> to vector<1x8x8xf32>
    tpu.vector_store %arg19[%c1_67, %c0_68, %c16_69], %184 {strides = array<i32>} : memref<2x8x32xf32, #tpu.memory_space<vmem>>, vector<1x8x8xf32>,
    %185 = vector.extract_strided_slice %125 {offsets = [0, 24], sizes = [8, 8], strides = [1, 1]} : vector<8x32xbf16> to vector<8x8xbf16>
    %186 = vector.extract_strided_slice %126 {offsets = [0, 24], sizes = [16, 8], strides = [1, 1]} : vector<16x32xbf16> to vector<16x8xbf16>
    %cst_70 = arith.constant dense<0.000000e+00> : vector<8x16xf32>
    %187 = tpu.matmul %185, %186, %cst_70 {dimension_numbers = #tpu.dot_dimension_numbers<[1], [1], [0], [0], [0, 0, 1, 0], [], []>} : vector<8x8xbf16>, vector<16x8xbf16>, vector<8x16xf32> -> vector<8x16xf32>
    %cst_71 = arith.constant dense<0xFF800000> : vector<8xf32>
    %188 = vector.multi_reduction <maximumf>, %187, %cst_71 [1] : vector<8x16xf32> to vector<8xf32>
    %189 = vector.shape_cast %188 : vector<8xf32> to vector<8x1xf32>
    %190 = vector.broadcast %189 : vector<8x1xf32> to vector<8x16xf32>
    %191 = arith.subf %187, %190 : vector<8x16xf32>
    %192 = math.exp %191 : vector<8x16xf32>
    %cst_72 = arith.constant dense<0.000000e+00> : vector<8xf32>
    %193 = vector.multi_reduction <add>, %192, %cst_72 [1] : vector<8x16xf32> to vector<8xf32>
    %194 = vector.shape_cast %193 : vector<8xf32> to vector<8x1xf32>
    %195 = tpu.reciprocal %194 {approx = true} : vector<8x1xf32> -> vector<8x1xf32>
    %196 = vector.broadcast %195 : vector<8x1xf32> to vector<8x16xf32>
    %197 = arith.mulf %192, %196 : vector<8x16xf32>
    %198 = arith.truncf %197 : vector<8x16xf32> to vector<8x16xbf16>
    %199 = vector.extract_strided_slice %127 {offsets = [0, 24], sizes = [16, 8], strides = [1, 1]} : vector<16x32xbf16> to vector<16x8xbf16>
    %cst_73 = arith.constant dense<0.000000e+00> : vector<8x8xf32>
    %200 = tpu.matmul %198, %199, %cst_73 {dimension_numbers = #tpu.dot_dimension_numbers<[1], [0], [0], [1], [0, 0, 1, 1], [], []>} : vector<8x16xbf16>, vector<16x8xbf16>, vector<8x8xf32> -> vector<8x8xf32>
    %c1_74 = arith.constant 1 : index
    %c0_75 = arith.constant 0 : index
    %c24_76 = arith.constant 24 : index
    %201 = vector.load %arg19[%c1_74, %c0_75, %c24_76] : memref<2x8x32xf32, #tpu.memory_space<vmem>>, vector<1x8x8xf32>
    %202 = vector.shape_cast %201 : vector<1x8x8xf32> to vector<8x8xf32>
    %203 = vector.shape_cast %200 : vector<8x8xf32> to vector<1x8x8xf32>
    tpu.vector_store %arg19[%c1_74, %c0_75, %c24_76], %203 {strides = array<i32>} : memref<2x8x32xf32, #tpu.memory_space<vmem>>, vector<1x8x8xf32>,
    %c0_77 = arith.constant 0 : index
    %c0_78 = arith.constant 0 : index
    %c0_79 = arith.constant 0 : index
    %204 = vector.load %arg19[%c0_77, %c0_78, %c0_79] : memref<2x8x32xf32, #tpu.memory_space<vmem>>, vector<2x8x32xf32>
    %205 = vector.shape_cast %204 : vector<2x8x32xf32> to vector<16x32xf32>
    %206 = arith.truncf %205 : vector<16x32xf32> to vector<16x32xbf16>
    %c0_80 = arith.constant 0 : index
    %c0_81 = arith.constant 0 : index
    %207 = vector.load %arg5[%c0_80, %c0_81] : memref<32x32xbf16, #tpu.memory_space<vmem>>, vector<32x32xbf16>
    %cst_82 = arith.constant dense<0.000000e+00> : vector<16x32xf32>
    %208 = tpu.matmul %206, %207, %cst_82 {dimension_numbers = #tpu.dot_dimension_numbers<[1], [0], [0], [1], [0, 0, 1, 1], [], []>} : vector<16x32xbf16>, vector<32x32xbf16>, vector<16x32xf32> -> vector<16x32xf32>
    %c0_83 = arith.constant 0 : index
    %c0_84 = arith.constant 0 : index
    %209 = vector.load %arg6[%c0_83, %c0_84] : memref<1x32xf32, #tpu.memory_space<vmem>>, vector<1x32xf32>
    %210 = vector.broadcast %209 : vector<1x32xf32> to vector<16x32xf32>
    %211 = arith.addf %208, %210 : vector<16x32xf32>
    %212 = arith.addf %1, %211 : vector<16x32xf32>
    %cst_85 = arith.constant dense<0.000000e+00> : vector<16xf32>
    %213 = vector.multi_reduction <add>, %212, %cst_85 [1] : vector<16x32xf32> to vector<16xf32>
    %214 = vector.shape_cast %213 : vector<16xf32> to vector<16x1xf32>
    %cst_86 = arith.constant 3.200000e+01 : f32
    %215 = vector.broadcast %cst_86 : f32 to vector<16x1xf32>
    %216 = arith.divf %214, %215 : vector<16x1xf32>
    %217 = vector.broadcast %216 : vector<16x1xf32> to vector<16x32xf32>
    %218 = arith.subf %212, %217 : vector<16x32xf32>
    %219 = arith.mulf %218, %218 : vector<16x32xf32>
    %cst_87 = arith.constant dense<0.000000e+00> : vector<16xf32>
    %220 = vector.multi_reduction <add>, %219, %cst_87 [1] : vector<16x32xf32> to vector<16xf32>
    %221 = vector.shape_cast %220 : vector<16xf32> to vector<16x1xf32>
    %cst_88 = arith.constant 3.200000e+01 : f32
    %222 = vector.broadcast %cst_88 : f32 to vector<16x1xf32>
    %223 = arith.divf %221, %222 : vector<16x1xf32>
    %cst_89 = arith.constant 9.99999974E-6 : f32
    %224 = vector.broadcast %cst_89 : f32 to vector<16x1xf32>
    %225 = arith.addf %223, %224 : vector<16x1xf32>
    %226 = math.rsqrt %225 : vector<16x1xf32>
    %227 = vector.broadcast %226 : vector<16x1xf32> to vector<16x32xf32>
    %228 = arith.mulf %218, %227 : vector<16x32xf32>
    %c0_90 = arith.constant 0 : index
    %c0_91 = arith.constant 0 : index
    %229 = vector.load %arg10[%c0_90, %c0_91] : memref<1x32xf32, #tpu.memory_space<vmem>>, vector<1x32xf32>
    %230 = vector.broadcast %229 : vector<1x32xf32> to vector<16x32xf32>
    %231 = arith.mulf %228, %230 : vector<16x32xf32>
    %c0_92 = arith.constant 0 : index
    %c0_93 = arith.constant 0 : index
    %232 = vector.load %arg11[%c0_92, %c0_93] : memref<1x32xf32, #tpu.memory_space<vmem>>, vector<1x32xf32>
    %233 = vector.broadcast %232 : vector<1x32xf32> to vector<16x32xf32>
    %234 = arith.addf %231, %233 : vector<16x32xf32>
    %235 = arith.truncf %234 : vector<16x32xf32> to vector<16x32xbf16>
    %c0_94 = arith.constant 0 : index
    %c0_95 = arith.constant 0 : index
    %236 = vector.load %arg12[%c0_94, %c0_95] : memref<32x64xbf16, #tpu.memory_space<vmem>>, vector<32x64xbf16>
    %cst_96 = arith.constant dense<0.000000e+00> : vector<16x64xf32>
    %237 = tpu.matmul %235, %236, %cst_96 {dimension_numbers = #tpu.dot_dimension_numbers<[1], [0], [0], [1], [0, 0, 1, 1], [], []>} : vector<16x32xbf16>, vector<32x64xbf16>, vector<16x64xf32> -> vector<16x64xf32>
    %c0_97 = arith.constant 0 : index
    %c0_98 = arith.constant 0 : index
    %238 = vector.load %arg13[%c0_97, %c0_98] : memref<1x64xf32, #tpu.memory_space<vmem>>, vector<1x64xf32>
    %239 = vector.broadcast %238 : vector<1x64xf32> to vector<16x64xf32>
    %240 = arith.addf %237, %239 : vector<16x64xf32>
    %cst_99 = arith.constant 0.000000e+00 : f32
    %241 = vector.broadcast %cst_99 : f32 to vector<16x64xf32>
    %242 = arith.maximumf %240, %241 : vector<16x64xf32>
    %243 = arith.truncf %242 : vector<16x64xf32> to vector<16x64xbf16>
    %c0_100 = arith.constant 0 : index
    %c0_101 = arith.constant 0 : index
    %244 = vector.load %arg14[%c0_100, %c0_101] : memref<64x32xbf16, #tpu.memory_space<vmem>>, vector<64x32xbf16>
    %cst_102 = arith.constant dense<0.000000e+00> : vector<16x32xf32>
    %245 = tpu.matmul %243, %244, %cst_102 {dimension_numbers = #tpu.dot_dimension_numbers<[1], [0], [0], [1], [0, 0, 1, 1], [], []>} : vector<16x64xbf16>, vector<64x32xbf16>, vector<16x32xf32> -> vector<16x32xf32>
    %c0_103 = arith.constant 0 : index
    %c0_104 = arith.constant 0 : index
    %246 = vector.load %arg15[%c0_103, %c0_104] : memref<1x32xf32, #tpu.memory_space<vmem>>, vector<1x32xf32>
    %247 = vector.broadcast %246 : vector<1x32xf32> to vector<16x32xf32>
    %248 = arith.addf %245, %247 : vector<16x32xf32>
    %249 = arith.addf %234, %248 : vector<16x32xf32>
    %cst_105 = arith.constant dense<0.000000e+00> : vector<16xf32>
    %250 = vector.multi_reduction <add>, %249, %cst_105 [1] : vector<16x32xf32> to vector<16xf32>
    %251 = vector.shape_cast %250 : vector<16xf32> to vector<16x1xf32>
    %cst_106 = arith.constant 3.200000e+01 : f32
    %252 = vector.broadcast %cst_106 : f32 to vector<16x1xf32>
    %253 = arith.divf %251, %252 : vector<16x1xf32>
    %254 = vector.broadcast %253 : vector<16x1xf32> to vector<16x32xf32>
    %255 = arith.subf %249, %254 : vector<16x32xf32>
    %256 = arith.mulf %255, %255 : vector<16x32xf32>
    %cst_107 = arith.constant dense<0.000000e+00> : vector<16xf32>
    %257 = vector.multi_reduction <add>, %256, %cst_107 [1] : vector<16x32xf32> to vector<16xf32>
    %258 = vector.shape_cast %257 : vector<16xf32> to vector<16x1xf32>
    %cst_108 = arith.constant 3.200000e+01 : f32
    %259 = vector.broadcast %cst_108 : f32 to vector<16x1xf32>
    %260 = arith.divf %258, %259 : vector<16x1xf32>
    %cst_109 = arith.constant 9.99999974E-6 : f32
    %261 = vector.broadcast %cst_109 : f32 to vector<16x1xf32>
    %262 = arith.addf %260, %261 : vector<16x1xf32>
    %263 = math.rsqrt %262 : vector<16x1xf32>
    %264 = vector.broadcast %263 : vector<16x1xf32> to vector<16x32xf32>
    %265 = arith.mulf %255, %264 : vector<16x32xf32>
    %c0_110 = arith.constant 0 : index
    %c0_111 = arith.constant 0 : index
    %266 = vector.load %arg16[%c0_110, %c0_111] : memref<1x32xf32, #tpu.memory_space<vmem>>, vector<1x32xf32>
    %267 = vector.broadcast %266 : vector<1x32xf32> to vector<16x32xf32>
    %268 = arith.mulf %265, %267 : vector<16x32xf32>
    %c0_112 = arith.constant 0 : index
    %c0_113 = arith.constant 0 : index
    %269 = vector.load %arg17[%c0_112, %c0_113] : memref<1x32xf32, #tpu.memory_space<vmem>>, vector<1x32xf32>
    %270 = vector.broadcast %269 : vector<1x32xf32> to vector<16x32xf32>
    %271 = arith.addf %268, %270 : vector<16x32xf32>
    %272 = vector.shape_cast %271 : vector<16x32xf32> to vector<2x8x32xf32>
    %c0_114 = arith.constant 0 : index
    %c0_115 = arith.constant 0 : index
    %c0_116 = arith.constant 0 : index
    %273 = vector.load %arg18[%c0_114, %c0_115, %c0_116] : memref<2x8x32xf32, #tpu.memory_space<vmem>>, vector<2x8x32xf32>
    tpu.vector_store %arg18[%c0_114, %c0_115, %c0_116], %272 {strides = array<i32>} : memref<2x8x32xf32, #tpu.memory_space<vmem>>, vector<2x8x32xf32>,
    return
  }
  func.func @transform_0(%arg0: i32) -> (i32, i32, i32) {
    %c0_i32 = arith.constant 0 : i32
    %c0_i32_0 = arith.constant 0 : i32
    %c0_i32_1 = arith.constant 0 : i32
    return %arg0, %c0_i32, %c0_i32_0 : i32, i32, i32
  }
  func.func @transform_1(%arg0: i32) -> (i32, i32, i32) {
    %c0_i32 = arith.constant 0 : i32
    %c0_i32_0 = arith.constant 0 : i32
    %c0_i32_1 = arith.constant 0 : i32
    return %arg0, %c0_i32, %c0_i32_0 : i32, i32, i32
  }
  func.func @transform_2(%arg0: i32) -> (i32, i32) {
    %c0_i32 = arith.constant 0 : i32
    %c0_i32_0 = arith.constant 0 : i32
    %c0_i32_1 = arith.constant 0 : i32
    return %c0_i32, %c0_i32_0 : i32, i32
  }
  func.func @transform_3(%arg0: i32) -> (i32, i32) {
    %c0_i32 = arith.constant 0 : i32
    %c0_i32_0 = arith.constant 0 : i32
    %c0_i32_1 = arith.constant 0 : i32
    return %c0_i32, %c0_i32_0 : i32, i32
  }
  func.func @transform_4(%arg0: i32) -> (i32, i32) {
    %c0_i32 = arith.constant 0 : i32
    %c0_i32_0 = arith.constant 0 : i32
    %c0_i32_1 = arith.constant 0 : i32
    return %c0_i32, %c0_i32_0 : i32, i32
  }
  func.func @transform_5(%arg0: i32) -> (i32, i32) {
    %c0_i32 = arith.constant 0 : i32
    %c0_i32_0 = arith.constant 0 : i32
    %c0_i32_1 = arith.constant 0 : i32
    return %c0_i32, %c0_i32_0 : i32, i32
  }
  func.func @transform_6(%arg0: i32) -> (i32, i32) {
    %c0_i32 = arith.constant 0 : i32
    %c0_i32_0 = arith.constant 0 : i32
    %c0_i32_1 = arith.constant 0 : i32
    return %c0_i32, %c0_i32_0 : i32, i32
  }
  func.func @transform_7(%arg0: i32) -> (i32, i32) {
    %c0_i32 = arith.constant 0 : i32
    %c0_i32_0 = arith.constant 0 : i32
    %c0_i32_1 = arith.constant 0 : i32
    return %c0_i32, %c0_i32_0 : i32, i32
  }
  func.func @transform_8(%arg0: i32) -> (i32, i32) {
    %c0_i32 = arith.constant 0 : i32
    %c0_i32_0 = arith.constant 0 : i32
    %c0_i32_1 = arith.constant 0 : i32
    return %c0_i32, %c0_i32_0 : i32, i32
  }
  func.func @transform_9(%arg0: i32) -> (i32, i32) {
    %c0_i32 = arith.constant 0 : i32
    %c0_i32_0 = arith.constant 0 : i32
    %c0_i32_1 = arith.constant 0 : i32
    return %c0_i32, %c0_i32_0 : i32, i32
  }
  func.func @transform_10(%arg0: i32) -> (i32, i32) {
    %c0_i32 = arith.constant 0 : i32
    %c0_i32_0 = arith.constant 0 : i32
    %c0_i32_1 = arith.constant 0 : i32
    return %c0_i32, %c0_i32_0 : i32, i32
  }
  func.func @transform_11(%arg0: i32) -> (i32, i32) {
    %c0_i32 = arith.constant 0 : i32
    %c0_i32_0 = arith.constant 0 : i32
    %c0_i32_1 = arith.constant 0 : i32
    return %c0_i32, %c0_i32_0 : i32, i32
  }
  func.func @transform_12(%arg0: i32) -> (i32, i32) {
    %c0_i32 = arith.constant 0 : i32
    %c0_i32_0 = arith.constant 0 : i32
    %c0_i32_1 = arith.constant 0 : i32
    return %c0_i32, %c0_i32_0 : i32, i32
  }
  func.func @transform_13(%arg0: i32) -> (i32, i32) {
    %c0_i32 = arith.constant 0 : i32
    %c0_i32_0 = arith.constant 0 : i32
    %c0_i32_1 = arith.constant 0 : i32
    return %c0_i32, %c0_i32_0 : i32, i32
  }
  func.func @transform_14(%arg0: i32) -> (i32, i32) {
    %c0_i32 = arith.constant 0 : i32
    %c0_i32_0 = arith.constant 0 : i32
    %c0_i32_1 = arith.constant 0 : i32
    return %c0_i32, %c0_i32_0 : i32, i32
  }
  func.func @transform_15(%arg0: i32) -> (i32, i32) {
    %c0_i32 = arith.constant 0 : i32
    %c0_i32_0 = arith.constant 0 : i32
    %c0_i32_1 = arith.constant 0 : i32
    return %c0_i32, %c0_i32_0 : i32, i32
  }
  func.func @transform_16(%arg0: i32) -> (i32, i32) {
    %c0_i32 = arith.constant 0 : i32
    %c0_i32_0 = arith.constant 0 : i32
    %c0_i32_1 = arith.constant 0 : i32
    return %c0_i32, %c0_i32_0 : i32, i32
  }
  func.func @transform_17(%arg0: i32) -> (i32, i32, i32) {
    %c0_i32 = arith.constant 0 : i32
    %c0_i32_0 = arith.constant 0 : i32
    %c0_i32_1 = arith.constant 0 : i32
    return %arg0, %c0_i32, %c0_i32_0 : i32, i32, i32
  }
}

module attributes {stable_mosaic.version = 11 : i64} {
  func.func @moon_encoder_layer_kernel(%arg0: i32, %arg1: memref<2x8x32xf32, #tpu.memory_space<vmem>>, %arg2: memref<2x8x1xf32, #tpu.memory_space<vmem>>, %arg3: memref<32x96xbf16, #tpu.memory_space<vmem>>, %arg4: memref<1x96xf32, #tpu.memory_space<vmem>>, %arg5: memref<32x32xbf16, #tpu.memory_space<vmem>>, %arg6: memref<1x32xf32, #tpu.memory_space<vmem>>, %arg7: memref<16x8xbf16, #tpu.memory_space<vmem>>, %arg8: memref<16x8xbf16, #tpu.memory_space<vmem>>, %arg9: memref<16x32xf32, #tpu.memory_space<vmem>>, %arg10: memref<1x32xf32, #tpu.memory_space<vmem>>, %arg11: memref<1x32xf32, #tpu.memory_space<vmem>>, %arg12: memref<32x64xbf16, #tpu.memory_space<vmem>>, %arg13: memref<1x64xf32, #tpu.memory_space<vmem>>, %arg14: memref<64x32xbf16, #tpu.memory_space<vmem>>, %arg15: memref<1x32xf32, #tpu.memory_space<vmem>>, %arg16: memref<1x32xf32, #tpu.memory_space<vmem>>, %arg17: memref<1x32xf32, #tpu.memory_space<vmem>>, %arg18: memref<2x8x32xf32, #tpu.memory_space<vmem>>, %arg19: memref<2x8x32xf32, #tpu.memory_space<vmem>>) attributes {dimension_semantics = [#tpu.dimension_semantics<parallel>], iteration_bounds = array<i64: 1>, scalar_prefetch = 0 : i64, scratch_operands = 1 : i64, tpu.core_type = #tpu.core_type<tc>, window_params = [{transform_indices = @transform_0, window_bounds = array<i64: 2, 8, 32>}, {transform_indices = @transform_1, window_bounds = array<i64: 2, 8, 1>}, {pipeline_mode = #tpu.pipeline_mode<synchronous>, transform_indices = @transform_2, window_bounds = array<i64: 32, 96>}, {pipeline_mode = #tpu.pipeline_mode<synchronous>, transform_indices = @transform_3, window_bounds = array<i64: 1, 96>}, {pipeline_mode = #tpu.pipeline_mode<synchronous>, transform_indices = @transform_4, window_bounds = array<i64: 32, 32>}, {pipeline_mode = #tpu.pipeline_mode<synchronous>, transform_indices = @transform_5, window_bounds = array<i64: 1, 32>}, {pipeline_mode = #tpu.pipeline_mode<synchronous>, transform_indices = @transform_6, window_bounds = array<i64: 16, 8>}, {pipeline_mode = #tpu.pipeline_mode<synchronous>, transform_indices = @transform_7, window_bounds = array<i64: 16, 8>}, {pipeline_mode = #tpu.pipeline_mode<synchronous>, transform_indices = @transform_8, window_bounds = array<i64: 16, 32>}, {pipeline_mode = #tpu.pipeline_mode<synchronous>, transform_indices = @transform_9, window_bounds = array<i64: 1, 32>}, {pipeline_mode = #tpu.pipeline_mode<synchronous>, transform_indices = @transform_10, window_bounds = array<i64: 1, 32>}, {pipeline_mode = #tpu.pipeline_mode<synchronous>, transform_indices = @transform_11, window_bounds = array<i64: 32, 64>}, {pipeline_mode = #tpu.pipeline_mode<synchronous>, transform_indices = @transform_12, window_bounds = array<i64: 1, 64>}, {pipeline_mode = #tpu.pipeline_mode<synchronous>, transform_indices = @transform_13, window_bounds = array<i64: 64, 32>}, {pipeline_mode = #tpu.pipeline_mode<synchronous>, transform_indices = @transform_14, window_bounds = array<i64: 1, 32>}, {pipeline_mode = #tpu.pipeline_mode<synchronous>, transform_indices = @transform_15, window_bounds = array<i64: 1, 32>}, {pipeline_mode = #tpu.pipeline_mode<synchronous>, transform_indices = @transform_16, window_bounds = array<i64: 1, 32>}, {transform_indices = @transform_17, window_bounds = array<i64: 2, 8, 32>}]} {
    %c0 = arith.constant 0 : index
    %c0_0 = arith.constant 0 : index
    %c0_1 = arith.constant 0 : index
    %0 = vector.load %arg1[%c0, %c0_0, %c0_1] : memref<2x8x32xf32, #tpu.memory_space<vmem>>, vector<2x8x32xf32>
    %1 = vector.shape_cast %0 : vector<2x8x32xf32> to vector<16x32xf32>
    %2 = arith.truncf %1 : vector<16x32xf32> to vector<16x32xbf16>
    %c0_2 = arith.constant 0 : index
    %c0_3 = arith.constant 0 : index
    %3 = vector.load %arg3[%c0_2, %c0_3] : memref<32x96xbf16, #tpu.memory_space<vmem>>, vector<32x96xbf16>
    %cst = arith.constant dense<0.000000e+00> : vector<16x96xf32>
    %4 = tpu.matmul %2, %3, %cst {dimension_numbers = #tpu.dot_dimension_numbers<[1], [0], [0], [1], [0, 0, 1, 1], [], []>} : vector<16x32xbf16>, vector<32x96xbf16>, vector<16x96xf32> -> vector<16x96xf32>
    %c0_4 = arith.constant 0 : index
    %c0_5 = arith.constant 0 : index
    %5 = vector.load %arg4[%c0_4, %c0_5] : memref<1x96xf32, #tpu.memory_space<vmem>>, vector<1x96xf32>
    %6 = vector.broadcast %5 : vector<1x96xf32> to vector<16x96xf32>
    %7 = arith.addf %4, %6 : vector<16x96xf32>
    %8 = vector.extract_strided_slice %7 {offsets = [0, 0], sizes = [16, 32], strides = [1, 1]} : vector<16x96xf32> to vector<16x32xf32>
    %9 = vector.extract_strided_slice %7 {offsets = [0, 32], sizes = [16, 32], strides = [1, 1]} : vector<16x96xf32> to vector<16x32xf32>
    %10 = vector.extract_strided_slice %7 {offsets = [0, 64], sizes = [16, 32], strides = [1, 1]} : vector<16x96xf32> to vector<16x32xf32>
    %c0_6 = arith.constant 0 : index
    %c0_7 = arith.constant 0 : index
    %c0_8 = arith.constant 0 : index
    %11 = vector.load %arg2[%c0_6, %c0_7, %c0_8] : memref<2x8x1xf32, #tpu.memory_space<vmem>>, vector<2x8x1xf32>
    %12 = vector.extract_strided_slice %11 {offsets = [0, 0, 0], sizes = [1, 8, 1], strides = [1, 1, 1]} : vector<2x8x1xf32> to vector<1x8x1xf32>
    %13 = vector.shape_cast %12 : vector<1x8x1xf32> to vector<8x1xf32>
    %14 = vector.extract_strided_slice %9 {offsets = [0, 0], sizes = [8, 32], strides = [1, 1]} : vector<16x32xf32> to vector<8x32xf32>
    %15 = vector.broadcast %13 : vector<8x1xf32> to vector<8x32xf32>
    %16 = arith.mulf %14, %15 : vector<8x32xf32>
    %17 = arith.truncf %16 : vector<8x32xf32> to vector<8x32xbf16>
    %18 = vector.extract_strided_slice %10 {offsets = [0, 0], sizes = [8, 32], strides = [1, 1]} : vector<16x32xf32> to vector<8x32xf32>
    %19 = vector.broadcast %13 : vector<8x1xf32> to vector<8x32xf32>
    %20 = arith.mulf %18, %19 : vector<8x32xf32>
    %21 = arith.truncf %20 : vector<8x32xf32> to vector<8x32xbf16>
    %c0_9 = arith.constant 0 : index
    %c0_10 = arith.constant 0 : index
    %22 = vector.load %arg7[%c0_9, %c0_10] : memref<16x8xbf16, #tpu.memory_space<vmem>>, vector<16x8xbf16>
    %cst_11 = arith.constant dense<0.000000e+00> : vector<16x32xf32>
    %23 = tpu.matmul %22, %17, %cst_11 {dimension_numbers = #tpu.dot_dimension_numbers<[1], [0], [0], [1], [0, 0, 1, 1], [], []>} : vector<16x8xbf16>, vector<8x32xbf16>, vector<16x32xf32> -> vector<16x32xf32>
    %c0_12 = arith.constant 0 : index
    %c0_13 = arith.constant 0 : index
    %24 = vector.load %arg9[%c0_12, %c0_13] : memref<16x32xf32, #tpu.memory_space<vmem>>, vector<16x32xf32>
    %25 = arith.addf %23, %24 : vector<16x32xf32>
    %c0_14 = arith.constant 0 : index
    %c0_15 = arith.constant 0 : index
    %26 = vector.load %arg8[%c0_14, %c0_15] : memref<16x8xbf16, #tpu.memory_space<vmem>>, vector<16x8xbf16>
    %cst_16 = arith.constant dense<0.000000e+00> : vector<16x32xf32>
    %27 = tpu.matmul %26, %21, %cst_16 {dimension_numbers = #tpu.dot_dimension_numbers<[1], [0], [0], [1], [0, 0, 1, 1], [], []>} : vector<16x8xbf16>, vector<8x32xbf16>, vector<16x32xf32> -> vector<16x32xf32>
    %28 = vector.extract_strided_slice %8 {offsets = [0, 0], sizes = [8, 32], strides = [1, 1]} : vector<16x32xf32> to vector<8x32xf32>
    %29 = arith.truncf %28 : vector<8x32xf32> to vector<8x32xbf16>
    %30 = arith.truncf %25 : vector<16x32xf32> to vector<16x32xbf16>
    %31 = arith.truncf %27 : vector<16x32xf32> to vector<16x32xbf16>
    %32 = vector.extract_strided_slice %29 {offsets = [0, 0], sizes = [8, 8], strides = [1, 1]} : vector<8x32xbf16> to vector<8x8xbf16>
    %33 = vector.extract_strided_slice %30 {offsets = [0, 0], sizes = [16, 8], strides = [1, 1]} : vector<16x32xbf16> to vector<16x8xbf16>
    %cst_17 = arith.constant dense<0.000000e+00> : vector<8x16xf32>
    %34 = tpu.matmul %32, %33, %cst_17 {dimension_numbers = #tpu.dot_dimension_numbers<[1], [1], [0], [0], [0, 0, 1, 0], [], []>} : vector<8x8xbf16>, vector<16x8xbf16>, vector<8x16xf32> -> vector<8x16xf32>
    %cst_18 = arith.constant dense<0xFF800000> : vector<8xf32>
    %35 = vector.multi_reduction <maximumf>, %34, %cst_18 [1] : vector<8x16xf32> to vector<8xf32>
    %36 = vector.shape_cast %35 : vector<8xf32> to vector<8x1xf32>
    %37 = vector.broadcast %36 : vector<8x1xf32> to vector<8x16xf32>
    %38 = arith.subf %34, %37 : vector<8x16xf32>
    %39 = math.exp %38 : vector<8x16xf32>
    %cst_19 = arith.constant dense<0.000000e+00> : vector<8xf32>
    %40 = vector.multi_reduction <add>, %39, %cst_19 [1] : vector<8x16xf32> to vector<8xf32>
    %41 = vector.shape_cast %40 : vector<8xf32> to vector<8x1xf32>
    %42 = tpu.reciprocal %41 {approx = true} : vector<8x1xf32> -> vector<8x1xf32>
    %43 = vector.broadcast %42 : vector<8x1xf32> to vector<8x16xf32>
    %44 = arith.mulf %39, %43 : vector<8x16xf32>
    %45 = arith.truncf %44 : vector<8x16xf32> to vector<8x16xbf16>
    %46 = vector.extract_strided_slice %31 {offsets = [0, 0], sizes = [16, 8], strides = [1, 1]} : vector<16x32xbf16> to vector<16x8xbf16>
    %cst_20 = arith.constant dense<0.000000e+00> : vector<8x8xf32>
    %47 = tpu.matmul %45, %46, %cst_20 {dimension_numbers = #tpu.dot_dimension_numbers<[1], [0], [0], [1], [0, 0, 1, 1], [], []>} : vector<8x16xbf16>, vector<16x8xbf16>, vector<8x8xf32> -> vector<8x8xf32>
    %c0_21 = arith.constant 0 : index
    %c0_22 = arith.constant 0 : index
    %c0_23 = arith.constant 0 : index
    %48 = vector.load %arg19[%c0_21, %c0_22, %c0_23] : memref<2x8x32xf32, #tpu.memory_space<vmem>>, vector<1x8x8xf32>
    %49 = vector.shape_cast %48 : vector<1x8x8xf32> to vector<8x8xf32>
    %50 = vector.shape_cast %47 : vector<8x8xf32> to vector<1x8x8xf32>
    tpu.vector_store %arg19[%c0_21, %c0_22, %c0_23], %50 {strides = array<i32>} : memref<2x8x32xf32, #tpu.memory_space<vmem>>, vector<1x8x8xf32>,
    %51 = vector.extract_strided_slice %29 {offsets = [0, 8], sizes = [8, 8], strides = [1, 1]} : vector<8x32xbf16> to vector<8x8xbf16>
    %52 = vector.extract_strided_slice %30 {offsets = [0, 8], sizes = [16, 8], strides = [1, 1]} : vector<16x32xbf16> to vector<16x8xbf16>
    %cst_24 = arith.constant dense<0.000000e+00> : vector<8x16xf32>
    %53 = tpu.matmul %51, %52, %cst_24 {dimension_numbers = #tpu.dot_dimension_numbers<[1], [1], [0], [0], [0, 0, 1, 0], [], []>} : vector<8x8xbf16>, vector<16x8xbf16>, vector<8x16xf32> -> vector<8x16xf32>
    %cst_25 = arith.constant dense<0xFF800000> : vector<8xf32>
    %54 = vector.multi_reduction <maximumf>, %53, %cst_25 [1] : vector<8x16xf32> to vector<8xf32>
    %55 = vector.shape_cast %54 : vector<8xf32> to vector<8x1xf32>
    %56 = vector.broadcast %55 : vector<8x1xf32> to vector<8x16xf32>
    %57 = arith.subf %53, %56 : vector<8x16xf32>
    %58 = math.exp %57 : vector<8x16xf32>
    %cst_26 = arith.constant dense<0.000000e+00> : vector<8xf32>
    %59 = vector.multi_reduction <add>, %58, %cst_26 [1] : vector<8x16xf32> to vector<8xf32>
    %60 = vector.shape_cast %59 : vector<8xf32> to vector<8x1xf32>
    %61 = tpu.reciprocal %60 {approx = true} : vector<8x1xf32> -> vector<8x1xf32>
    %62 = vector.broadcast %61 : vector<8x1xf32> to vector<8x16xf32>
    %63 = arith.mulf %58, %62 : vector<8x16xf32>
    %64 = arith.truncf %63 : vector<8x16xf32> to vector<8x16xbf16>
    %65 = vector.extract_strided_slice %31 {offsets = [0, 8], sizes = [16, 8], strides = [1, 1]} : vector<16x32xbf16> to vector<16x8xbf16>
    %cst_27 = arith.constant dense<0.000000e+00> : vector<8x8xf32>
    %66 = tpu.matmul %64, %65, %cst_27 {dimension_numbers = #tpu.dot_dimension_numbers<[1], [0], [0], [1], [0, 0, 1, 1], [], []>} : vector<8x16xbf16>, vector<16x8xbf16>, vector<8x8xf32> -> vector<8x8xf32>
    %c0_28 = arith.constant 0 : index
    %c0_29 = arith.constant 0 : index
    %c8 = arith.constant 8 : index
    %67 = vector.load %arg19[%c0_28, %c0_29, %c8] : memref<2x8x32xf32, #tpu.memory_space<vmem>>, vector<1x8x8xf32>
    %68 = vector.shape_cast %67 : vector<1x8x8xf32> to vector<8x8xf32>
    %69 = vector.shape_cast %66 : vector<8x8xf32> to vector<1x8x8xf32>
    tpu.vector_store %arg19[%c0_28, %c0_29, %c8], %69 {strides = array<i32>} : memref<2x8x32xf32, #tpu.memory_space<vmem>>, vector<1x8x8xf32>,
    %70 = vector.extract_strided_slice %29 {offsets = [0, 16], sizes = [8, 8], strides = [1, 1]} : vector<8x32xbf16> to vector<8x8xbf16>
    %71 = vector.extract_strided_slice %30 {offsets = [0, 16], sizes = [16, 8], strides = [1, 1]} : vector<16x32xbf16> to vector<16x8xbf16>
    %cst_30 = arith.constant dense<0.000000e+00> : vector<8x16xf32>
    %72 = tpu.matmul %70, %71, %cst_30 {dimension_numbers = #tpu.dot_dimension_numbers<[1], [1], [0], [0], [0, 0, 1, 0], [], []>} : vector<8x8xbf16>, vector<16x8xbf16>, vector<8x16xf32> -> vector<8x16xf32>
    %cst_31 = arith.constant dense<0xFF800000> : vector<8xf32>
    %73 = vector.multi_reduction <maximumf>, %72, %cst_31 [1] : vector<8x16xf32> to vector<8xf32>
    %74 = vector.shape_cast %73 : vector<8xf32> to vector<8x1xf32>
    %75 = vector.broadcast %74 : vector<8x1xf32> to vector<8x16xf32>
    %76 = arith.subf %72, %75 : vector<8x16xf32>
    %77 = math.exp %76 : vector<8x16xf32>
    %cst_32 = arith.constant dense<0.000000e+00> : vector<8xf32>
    %78 = vector.multi_reduction <add>, %77, %cst_32 [1] : vector<8x16xf32> to vector<8xf32>
    %79 = vector.shape_cast %78 : vector<8xf32> to vector<8x1xf32>
    %80 = tpu.reciprocal %79 {approx = true} : vector<8x1xf32> -> vector<8x1xf32>
    %81 = vector.broadcast %80 : vector<8x1xf32> to vector<8x16xf32>
    %82 = arith.mulf %77, %81 : vector<8x16xf32>
    %83 = arith.truncf %82 : vector<8x16xf32> to vector<8x16xbf16>
    %84 = vector.extract_strided_slice %31 {offsets = [0, 16], sizes = [16, 8], strides = [1, 1]} : vector<16x32xbf16> to vector<16x8xbf16>
    %cst_33 = arith.constant dense<0.000000e+00> : vector<8x8xf32>
    %85 = tpu.matmul %83, %84, %cst_33 {dimension_numbers = #tpu.dot_dimension_numbers<[1], [0], [0], [1], [0, 0, 1, 1], [], []>} : vector<8x16xbf16>, vector<16x8xbf16>, vector<8x8xf32> -> vector<8x8xf32>
    %c0_34 = arith.constant 0 : index
    %c0_35 = arith.constant 0 : index
    %c16 = arith.constant 16 : index
    %86 = vector.load %arg19[%c0_34, %c0_35, %c16] : memref<2x8x32xf32, #tpu.memory_space<vmem>>, vector<1x8x8xf32>
    %87 = vector.shape_cast %86 : vector<1x8x8xf32> to vector<8x8xf32>
    %88 = vector.shape_cast %85 : vector<8x8xf32> to vector<1x8x8xf32>
    tpu.vector_store %arg19[%c0_34, %c0_35, %c16], %88 {strides = array<i32>} : memref<2x8x32xf32, #tpu.memory_space<vmem>>, vector<1x8x8xf32>,
    %89 = vector.extract_strided_slice %29 {offsets = [0, 24], sizes = [8, 8], strides = [1, 1]} : vector<8x32xbf16> to vector<8x8xbf16>
    %90 = vector.extract_strided_slice %30 {offsets = [0, 24], sizes = [16, 8], strides = [1, 1]} : vector<16x32xbf16> to vector<16x8xbf16>
    %cst_36 = arith.constant dense<0.000000e+00> : vector<8x16xf32>
    %91 = tpu.matmul %89, %90, %cst_36 {dimension_numbers = #tpu.dot_dimension_numbers<[1], [1], [0], [0], [0, 0, 1, 0], [], []>} : vector<8x8xbf16>, vector<16x8xbf16>, vector<8x16xf32> -> vector<8x16xf32>
    %cst_37 = arith.constant dense<0xFF800000> : vector<8xf32>
    %92 = vector.multi_reduction <maximumf>, %91, %cst_37 [1] : vector<8x16xf32> to vector<8xf32>
    %93 = vector.shape_cast %92 : vector<8xf32> to vector<8x1xf32>
    %94 = vector.broadcast %93 : vector<8x1xf32> to vector<8x16xf32>
    %95 = arith.subf %91, %94 : vector<8x16xf32>
    %96 = math.exp %95 : vector<8x16xf32>
    %cst_38 = arith.constant dense<0.000000e+00> : vector<8xf32>
    %97 = vector.multi_reduction <add>, %96, %cst_38 [1] : vector<8x16xf32> to vector<8xf32>
    %98 = vector.shape_cast %97 : vector<8xf32> to vector<8x1xf32>
    %99 = tpu.reciprocal %98 {approx = true} : vector<8x1xf32> -> vector<8x1xf32>
    %100 = vector.broadcast %99 : vector<8x1xf32> to vector<8x16xf32>
    %101 = arith.mulf %96, %100 : vector<8x16xf32>
    %102 = arith.truncf %101 : vector<8x16xf32> to vector<8x16xbf16>
    %103 = vector.extract_strided_slice %31 {offsets = [0, 24], sizes = [16, 8], strides = [1, 1]} : vector<16x32xbf16> to vector<16x8xbf16>
    %cst_39 = arith.constant dense<0.000000e+00> : vector<8x8xf32>
    %104 = tpu.matmul %102, %103, %cst_39 {dimension_numbers = #tpu.dot_dimension_numbers<[1], [0], [0], [1], [0, 0, 1, 1], [], []>} : vector<8x16xbf16>, vector<16x8xbf16>, vector<8x8xf32> -> vector<8x8xf32>
    %c0_40 = arith.constant 0 : index
    %c0_41 = arith.constant 0 : index
    %c24 = arith.constant 24 : index
    %105 = vector.load %arg19[%c0_40, %c0_41, %c24] : memref<2x8x32xf32, #tpu.memory_space<vmem>>, vector<1x8x8xf32>
    %106 = vector.shape_cast %105 : vector<1x8x8xf32> to vector<8x8xf32>
    %107 = vector.shape_cast %104 : vector<8x8xf32> to vector<1x8x8xf32>
    tpu.vector_store %arg19[%c0_40, %c0_41, %c24], %107 {strides = array<i32>} : memref<2x8x32xf32, #tpu.memory_space<vmem>>, vector<1x8x8xf32>,
    %108 = vector.extract_strided_slice %11 {offsets = [1, 0, 0], sizes = [1, 8, 1], strides = [1, 1, 1]} : vector<2x8x1xf32> to vector<1x8x1xf32>
    %109 = vector.shape_cast %108 : vector<1x8x1xf32> to vector<8x1xf32>
    %110 = vector.extract_strided_slice %9 {offsets = [8, 0], sizes = [8, 32], strides = [1, 1]} : vector<16x32xf32> to vector<8x32xf32>
    %111 = vector.broadcast %109 : vector<8x1xf32> to vector<8x32xf32>
    %112 = arith.mulf %110, %111 : vector<8x32xf32>
    %113 = arith.truncf %112 : vector<8x32xf32> to vector<8x32xbf16>
    %114 = vector.extract_strided_slice %10 {offsets = [8, 0], sizes = [8, 32], strides = [1, 1]} : vector<16x32xf32> to vector<8x32xf32>
    %115 = vector.broadcast %109 : vector<8x1xf32> to vector<8x32xf32>
    %116 = arith.mulf %114, %115 : vector<8x32xf32>
    %117 = arith.truncf %116 : vector<8x32xf32> to vector<8x32xbf16>
    %c0_42 = arith.constant 0 : index
    %c0_43 = arith.constant 0 : index
    %118 = vector.load %arg7[%c0_42, %c0_43] : memref<16x8xbf16, #tpu.memory_space<vmem>>, vector<16x8xbf16>
    %cst_44 = arith.constant dense<0.000000e+00> : vector<16x32xf32>
    %119 = tpu.matmul %118, %113, %cst_44 {dimension_numbers = #tpu.dot_dimension_numbers<[1], [0], [0], [1], [0, 0, 1, 1], [], []>} : vector<16x8xbf16>, vector<8x32xbf16>, vector<16x32xf32> -> vector<16x32xf32>
    %c0_45 = arith.constant 0 : index
    %c0_46 = arith.constant 0 : index
    %120 = vector.load %arg9[%c0_45, %c0_46] : memref<16x32xf32, #tpu.memory_space<vmem>>, vector<16x32xf32>
    %121 = arith.addf %119, %120 : vector<16x32xf32>
    %c0_47 = arith.constant 0 : index
    %c0_48 = arith.constant 0 : index
    %122 = vector.load %arg8[%c0_47, %c0_48] : memref<16x8xbf16, #tpu.memory_space<vmem>>, vector<16x8xbf16>
    %cst_49 = arith.constant dense<0.000000e+00> : vector<16x32xf32>
    %123 = tpu.matmul %122, %117, %cst_49 {dimension_numbers = #tpu.dot_dimension_numbers<[1], [0], [0], [1], [0, 0, 1, 1], [], []>} : vector<16x8xbf16>, vector<8x32xbf16>, vector<16x32xf32> -> vector<16x32xf32>
    %124 = vector.extract_strided_slice %8 {offsets = [8, 0], sizes = [8, 32], strides = [1, 1]} : vector<16x32xf32> to vector<8x32xf32>
    %125 = arith.truncf %124 : vector<8x32xf32> to vector<8x32xbf16>
    %126 = arith.truncf %121 : vector<16x32xf32> to vector<16x32xbf16>
    %127 = arith.truncf %123 : vector<16x32xf32> to vector<16x32xbf16>
    %128 = vector.extract_strided_slice %125 {offsets = [0, 0], sizes = [8, 8], strides = [1, 1]} : vector<8x32xbf16> to vector<8x8xbf16>
    %129 = vector.extract_strided_slice %126 {offsets = [0, 0], sizes = [16, 8], strides = [1, 1]} : vector<16x32xbf16> to vector<16x8xbf16>
    %cst_50 = arith.constant dense<0.000000e+00> : vector<8x16xf32>
    %130 = tpu.matmul %128, %129, %cst_50 {dimension_numbers = #tpu.dot_dimension_numbers<[1], [1], [0], [0], [0, 0, 1, 0], [], []>} : vector<8x8xbf16>, vector<16x8xbf16>, vector<8x16xf32> -> vector<8x16xf32>
    %cst_51 = arith.constant dense<0xFF800000> : vector<8xf32>
    %131 = vector.multi_reduction <maximumf>, %130, %cst_51 [1] : vector<8x16xf32> to vector<8xf32>
    %132 = vector.shape_cast %131 : vector<8xf32> to vector<8x1xf32>
    %133 = vector.broadcast %132 : vector<8x1xf32> to vector<8x16xf32>
    %134 = arith.subf %130, %133 : vector<8x16xf32>
    %135 = math.exp %134 : vector<8x16xf32>
    %cst_52 = arith.constant dense<0.000000e+00> : vector<8xf32>
    %136 = vector.multi_reduction <add>, %135, %cst_52 [1] : vector<8x16xf32> to vector<8xf32>
    %137 = vector.shape_cast %136 : vector<8xf32> to vector<8x1xf32>
    %138 = tpu.reciprocal %137 {approx = true} : vector<8x1xf32> -> vector<8x1xf32>
    %139 = vector.broadcast %138 : vector<8x1xf32> to vector<8x16xf32>
    %140 = arith.mulf %135, %139 : vector<8x16xf32>
    %141 = arith.truncf %140 : vector<8x16xf32> to vector<8x16xbf16>
    %142 = vector.extract_strided_slice %127 {offsets = [0, 0], sizes = [16, 8], strides = [1, 1]} : vector<16x32xbf16> to vector<16x8xbf16>
    %cst_53 = arith.constant dense<0.000000e+00> : vector<8x8xf32>
    %143 = tpu.matmul %141, %142, %cst_53 {dimension_numbers = #tpu.dot_dimension_numbers<[1], [0], [0], [1], [0, 0, 1, 1], [], []>} : vector<8x16xbf16>, vector<16x8xbf16>, vector<8x8xf32> -> vector<8x8xf32>
    %c1 = arith.constant 1 : index
    %c0_54 = arith.constant 0 : index
    %c0_55 = arith.constant 0 : index
    %144 = vector.load %arg19[%c1, %c0_54, %c0_55] : memref<2x8x32xf32, #tpu.memory_space<vmem>>, vector<1x8x8xf32>
    %145 = vector.shape_cast %144 : vector<1x8x8xf32> to vector<8x8xf32>
    %146 = vector.shape_cast %143 : vector<8x8xf32> to vector<1x8x8xf32>
    tpu.vector_store %arg19[%c1, %c0_54, %c0_55], %146 {strides = array<i32>} : memref<2x8x32xf32, #tpu.memory_space<vmem>>, vector<1x8x8xf32>,
    %147 = vector.extract_strided_slice %125 {offsets = [0, 8], sizes = [8, 8], strides = [1, 1]} : vector<8x32xbf16> to vector<8x8xbf16>
    %148 = vector.extract_strided_slice %126 {offsets = [0, 8], sizes = [16, 8], strides = [1, 1]} : vector<16x32xbf16> to vector<16x8xbf16>
    %cst_56 = arith.constant dense<0.000000e+00> : vector<8x16xf32>
    %149 = tpu.matmul %147, %148, %cst_56 {dimension_numbers = #tpu.dot_dimension_numbers<[1], [1], [0], [0], [0, 0, 1, 0], [], []>} : vector<8x8xbf16>, vector<16x8xbf16>, vector<8x16xf32> -> vector<8x16xf32>
    %cst_57 = arith.constant dense<0xFF800000> : vector<8xf32>
    %150 = vector.multi_reduction <maximumf>, %149, %cst_57 [1] : vector<8x16xf32> to vector<8xf32>
    %151 = vector.shape_cast %150 : vector<8xf32> to vector<8x1xf32>
    %152 = vector.broadcast %151 : vector<8x1xf32> to vector<8x16xf32>
    %153 = arith.subf %149, %152 : vector<8x16xf32>
    %154 = math.exp %153 : vector<8x16xf32>
    %cst_58 = arith.constant dense<0.000000e+00> : vector<8xf32>
    %155 = vector.multi_reduction <add>, %154, %cst_58 [1] : vector<8x16xf32> to vector<8xf32>
    %156 = vector.shape_cast %155 : vector<8xf32> to vector<8x1xf32>
    %157 = tpu.reciprocal %156 {approx = true} : vector<8x1xf32> -> vector<8x1xf32>
    %158 = vector.broadcast %157 : vector<8x1xf32> to vector<8x16xf32>
    %159 = arith.mulf %154, %158 : vector<8x16xf32>
    %160 = arith.truncf %159 : vector<8x16xf32> to vector<8x16xbf16>
    %161 = vector.extract_strided_slice %127 {offsets = [0, 8], sizes = [16, 8], strides = [1, 1]} : vector<16x32xbf16> to vector<16x8xbf16>
    %cst_59 = arith.constant dense<0.000000e+00> : vector<8x8xf32>
    %162 = tpu.matmul %160, %161, %cst_59 {dimension_numbers = #tpu.dot_dimension_numbers<[1], [0], [0], [1], [0, 0, 1, 1], [], []>} : vector<8x16xbf16>, vector<16x8xbf16>, vector<8x8xf32> -> vector<8x8xf32>
    %c1_60 = arith.constant 1 : index
    %c0_61 = arith.constant 0 : index
    %c8_62 = arith.constant 8 : index
    %163 = vector.load %arg19[%c1_60, %c0_61, %c8_62] : memref<2x8x32xf32, #tpu.memory_space<vmem>>, vector<1x8x8xf32>
    %164 = vector.shape_cast %163 : vector<1x8x8xf32> to vector<8x8xf32>
    %165 = vector.shape_cast %162 : vector<8x8xf32> to vector<1x8x8xf32>
    tpu.vector_store %arg19[%c1_60, %c0_61, %c8_62], %165 {strides = array<i32>} : memref<2x8x32xf32, #tpu.memory_space<vmem>>, vector<1x8x8xf32>,
    %166 = vector.extract_strided_slice %125 {offsets = [0, 16], sizes = [8, 8], strides = [1, 1]} : vector<8x32xbf16> to vector<8x8xbf16>
    %167 = vector.extract_strided_slice %126 {offsets = [0, 16], sizes = [16, 8], strides = [1, 1]} : vector<16x32xbf16> to vector<16x8xbf16>
    %cst_63 = arith.constant dense<0.000000e+00> : vector<8x16xf32>
    %168 = tpu.matmul %166, %167, %cst_63 {dimension_numbers = #tpu.dot_dimension_numbers<[1], [1], [0], [0], [0, 0, 1, 0], [], []>} : vector<8x8xbf16>, vector<16x8xbf16>, vector<8x16xf32> -> vector<8x16xf32>
    %cst_64 = arith.constant dense<0xFF800000> : vector<8xf32>
    %169 = vector.multi_reduction <maximumf>, %168, %cst_64 [1] : vector<8x16xf32> to vector<8xf32>
    %170 = vector.shape_cast %169 : vector<8xf32> to vector<8x1xf32>
    %171 = vector.broadcast %170 : vector<8x1xf32> to vector<8x16xf32>
    %172 = arith.subf %168, %171 : vector<8x16xf32>
    %173 = math.exp %172 : vector<8x16xf32>
    %cst_65 = arith.constant dense<0.000000e+00> : vector<8xf32>
    %174 = vector.multi_reduction <add>, %173, %cst_65 [1] : vector<8x16xf32> to vector<8xf32>
    %175 = vector.shape_cast %174 : vector<8xf32> to vector<8x1xf32>
    %176 = tpu.reciprocal %175 {approx = true} : vector<8x1xf32> -> vector<8x1xf32>
    %177 = vector.broadcast %176 : vector<8x1xf32> to vector<8x16xf32>
    %178 = arith.mulf %173, %177 : vector<8x16xf32>
    %179 = arith.truncf %178 : vector<8x16xf32> to vector<8x16xbf16>
    %180 = vector.extract_strided_slice %127 {offsets = [0, 16], sizes = [16, 8], strides = [1, 1]} : vector<16x32xbf16> to vector<16x8xbf16>
    %cst_66 = arith.constant dense<0.000000e+00> : vector<8x8xf32>
    %181 = tpu.matmul %179, %180, %cst_66 {dimension_numbers = #tpu.dot_dimension_numbers<[1], [0], [0], [1], [0, 0, 1, 1], [], []>} : vector<8x16xbf16>, vector<16x8xbf16>, vector<8x8xf32> -> vector<8x8xf32>
    %c1_67 = arith.constant 1 : index
    %c0_68 = arith.constant 0 : index
    %c16_69 = arith.constant 16 : index
    %182 = vector.load %arg19[%c1_67, %c0_68, %c16_69] : memref<2x8x32xf32, #tpu.memory_space<vmem>>, vector<1x8x8xf32>
    %183 = vector.shape_cast %182 : vector<1x8x8xf32> to vector<8x8xf32>
    %184 = vector.shape_cast %181 : vector<8x8xf32> to vector<1x8x8xf32>
    tpu.vector_store %arg19[%c1_67, %c0_68, %c16_69], %184 {strides = array<i32>} : memref<2x8x32xf32, #tpu.memory_space<vmem>>, vector<1x8x8xf32>,
    %185 = vector.extract_strided_slice %125 {offsets = [0, 24], sizes = [8, 8], strides = [1, 1]} : vector<8x32xbf16> to vector<8x8xbf16>
    %186 = vector.extract_strided_slice %126 {offsets = [0, 24], sizes = [16, 8], strides = [1, 1]} : vector<16x32xbf16> to vector<16x8xbf16>
    %cst_70 = arith.constant dense<0.000000e+00> : vector<8x16xf32>
    %187 = tpu.matmul %185, %186, %cst_70 {dimension_numbers = #tpu.dot_dimension_numbers<[1], [1], [0], [0], [0, 0, 1, 0], [], []>} : vector<8x8xbf16>, vector<16x8xbf16>, vector<8x16xf32> -> vector<8x16xf32>
    %cst_71 = arith.constant dense<0xFF800000> : vector<8xf32>
    %188 = vector.multi_reduction <maximumf>, %187, %cst_71 [1] : vector<8x16xf32> to vector<8xf32>
    %189 = vector.shape_cast %188 : vector<8xf32> to vector<8x1xf32>
    %190 = vector.broadcast %189 : vector<8x1xf32> to vector<8x16xf32>
    %191 = arith.subf %187, %190 : vector<8x16xf32>
    %192 = math.exp %191 : vector<8x16xf32>
    %cst_72 = arith.constant dense<0.000000e+00> : vector<8xf32>
    %193 = vector.multi_reduction <add>, %192, %cst_72 [1] : vector<8x16xf32> to vector<8xf32>
    %194 = vector.shape_cast %193 : vector<8xf32> to vector<8x1xf32>
    %195 = tpu.reciprocal %194 {approx = true} : vector<8x1xf32> -> vector<8x1xf32>
    %196 = vector.broadcast %195 : vector<8x1xf32> to vector<8x16xf32>
    %197 = arith.mulf %192, %196 : vector<8x16xf32>
    %198 = arith.truncf %197 : vector<8x16xf32> to vector<8x16xbf16>
    %199 = vector.extract_strided_slice %127 {offsets = [0, 24], sizes = [16, 8], strides = [1, 1]} : vector<16x32xbf16> to vector<16x8xbf16>
    %cst_73 = arith.constant dense<0.000000e+00> : vector<8x8xf32>
    %200 = tpu.matmul %198, %199, %cst_73 {dimension_numbers = #tpu.dot_dimension_numbers<[1], [0], [0], [1], [0, 0, 1, 1], [], []>} : vector<8x16xbf16>, vector<16x8xbf16>, vector<8x8xf32> -> vector<8x8xf32>
    %c1_74 = arith.constant 1 : index
    %c0_75 = arith.constant 0 : index
    %c24_76 = arith.constant 24 : index
    %201 = vector.load %arg19[%c1_74, %c0_75, %c24_76] : memref<2x8x32xf32, #tpu.memory_space<vmem>>, vector<1x8x8xf32>
    %202 = vector.shape_cast %201 : vector<1x8x8xf32> to vector<8x8xf32>
    %203 = vector.shape_cast %200 : vector<8x8xf32> to vector<1x8x8xf32>
    tpu.vector_store %arg19[%c1_74, %c0_75, %c24_76], %203 {strides = array<i32>} : memref<2x8x32xf32, #tpu.memory_space<vmem>>, vector<1x8x8xf32>,
    %c0_77 = arith.constant 0 : index
    %c0_78 = arith.constant 0 : index
    %c0_79 = arith.constant 0 : index
    %204 = vector.load %arg19[%c0_77, %c0_78, %c0_79] : memref<2x8x32xf32, #tpu.memory_space<vmem>>, vector<2x8x32xf32>
    %205 = vector.shape_cast %204 : vector<2x8x32xf32> to vector<16x32xf32>
    %206 = arith.truncf %205 : vector<16x32xf32> to vector<16x32xbf16>
    %c0_80 = arith.constant 0 : index
    %c0_81 = arith.constant 0 : index
    %207 = vector.load %arg5[%c0_80, %c0_81] : memref<32x32xbf16, #tpu.memory_space<vmem>>, vector<32x32xbf16>
    %cst_82 = arith.constant dense<0.000000e+00> : vector<16x32xf32>
    %208 = tpu.matmul %206, %207, %cst_82 {dimension_numbers = #tpu.dot_dimension_numbers<[1], [0], [0], [1], [0, 0, 1, 1], [], []>} : vector<16x32xbf16>, vector<32x32xbf16>, vector<16x32xf32> -> vector<16x32xf32>
    %c0_83 = arith.constant 0 : index
    %c0_84 = arith.constant 0 : index
    %209 = vector.load %arg6[%c0_83, %c0_84] : memref<1x32xf32, #tpu.memory_space<vmem>>, vector<1x32xf32>
    %210 = vector.broadcast %209 : vector<1x32xf32> to vector<16x32xf32>
    %211 = arith.addf %208, %210 : vector<16x32xf32>
    %212 = arith.addf %1, %211 : vector<16x32xf32>
    %cst_85 = arith.constant dense<0.000000e+00> : vector<16xf32>
    %213 = vector.multi_reduction <add>, %212, %cst_85 [1] : vector<16x32xf32> to vector<16xf32>
    %214 = vector.shape_cast %213 : vector<16xf32> to vector<16x1xf32>
    %cst_86 = arith.constant 3.200000e+01 : f32
    %215 = vector.broadcast %cst_86 : f32 to vector<16x1xf32>
    %216 = arith.divf %214, %215 : vector<16x1xf32>
    %217 = vector.broadcast %216 : vector<16x1xf32> to vector<16x32xf32>
    %218 = arith.subf %212, %217 : vector<16x32xf32>
    %219 = arith.mulf %218, %218 : vector<16x32xf32>
    %cst_87 = arith.constant dense<0.000000e+00> : vector<16xf32>
    %220 = vector.multi_reduction <add>, %219, %cst_87 [1] : vector<16x32xf32> to vector<16xf32>
    %221 = vector.shape_cast %220 : vector<16xf32> to vector<16x1xf32>
    %cst_88 = arith.constant 3.200000e+01 : f32
    %222 = vector.broadcast %cst_88 : f32 to vector<16x1xf32>
    %223 = arith.divf %221, %222 : vector<16x1xf32>
    %cst_89 = arith.constant 9.99999974E-6 : f32
    %224 = vector.broadcast %cst_89 : f32 to vector<16x1xf32>
    %225 = arith.addf %223, %224 : vector<16x1xf32>
    %226 = math.rsqrt %225 : vector<16x1xf32>
    %227 = vector.broadcast %226 : vector<16x1xf32> to vector<16x32xf32>
    %228 = arith.mulf %218, %227 : vector<16x32xf32>
    %c0_90 = arith.constant 0 : index
    %c0_91 = arith.constant 0 : index
    %229 = vector.load %arg10[%c0_90, %c0_91] : memref<1x32xf32, #tpu.memory_space<vmem>>, vector<1x32xf32>
    %230 = vector.broadcast %229 : vector<1x32xf32> to vector<16x32xf32>
    %231 = arith.mulf %228, %230 : vector<16x32xf32>
    %c0_92 = arith.constant 0 : index
    %c0_93 = arith.constant 0 : index
    %232 = vector.load %arg11[%c0_92, %c0_93] : memref<1x32xf32, #tpu.memory_space<vmem>>, vector<1x32xf32>
    %233 = vector.broadcast %232 : vector<1x32xf32> to vector<16x32xf32>
    %234 = arith.addf %231, %233 : vector<16x32xf32>
    %235 = arith.truncf %234 : vector<16x32xf32> to vector<16x32xbf16>
    %c0_94 = arith.constant 0 : index
    %c0_95 = arith.constant 0 : index
    %236 = vector.load %arg12[%c0_94, %c0_95] : memref<32x64xbf16, #tpu.memory_space<vmem>>, vector<32x64xbf16>
    %cst_96 = arith.constant dense<0.000000e+00> : vector<16x64xf32>
    %237 = tpu.matmul %235, %236, %cst_96 {dimension_numbers = #tpu.dot_dimension_numbers<[1], [0], [0], [1], [0, 0, 1, 1], [], []>} : vector<16x32xbf16>, vector<32x64xbf16>, vector<16x64xf32> -> vector<16x64xf32>
    %c0_97 = arith.constant 0 : index
    %c0_98 = arith.constant 0 : index
    %238 = vector.load %arg13[%c0_97, %c0_98] : memref<1x64xf32, #tpu.memory_space<vmem>>, vector<1x64xf32>
    %239 = vector.broadcast %238 : vector<1x64xf32> to vector<16x64xf32>
    %240 = arith.addf %237, %239 : vector<16x64xf32>
    %cst_99 = arith.constant 0.000000e+00 : f32
    %241 = vector.broadcast %cst_99 : f32 to vector<16x64xf32>
    %242 = arith.maximumf %240, %241 : vector<16x64xf32>
    %243 = arith.truncf %242 : vector<16x64xf32> to vector<16x64xbf16>
    %c0_100 = arith.constant 0 : index
    %c0_101 = arith.constant 0 : index
    %244 = vector.load %arg14[%c0_100, %c0_101] : memref<64x32xbf16, #tpu.memory_space<vmem>>, vector<64x32xbf16>
    %cst_102 = arith.constant dense<0.000000e+00> : vector<16x32xf32>
    %245 = tpu.matmul %243, %244, %cst_102 {dimension_numbers = #tpu.dot_dimension_numbers<[1], [0], [0], [1], [0, 0, 1, 1], [], []>} : vector<16x64xbf16>, vector<64x32xbf16>, vector<16x32xf32> -> vector<16x32xf32>
    %c0_103 = arith.constant 0 : index
    %c0_104 = arith.constant 0 : index
    %246 = vector.load %arg15[%c0_103, %c0_104] : memref<1x32xf32, #tpu.memory_space<vmem>>, vector<1x32xf32>
    %247 = vector.broadcast %246 : vector<1x32xf32> to vector<16x32xf32>
    %248 = arith.addf %245, %247 : vector<16x32xf32>
    %249 = arith.addf %234, %248 : vector<16x32xf32>
    %cst_105 = arith.constant dense<0.000000e+00> : vector<16xf32>
    %250 = vector.multi_reduction <add>, %249, %cst_105 [1] : vector<16x32xf32> to vector<16xf32>
    %251 = vector.shape_cast %250 : vector<16xf32> to vector<16x1xf32>
    %cst_106 = arith.constant 3.200000e+01 : f32
    %252 = vector.broadcast %cst_106 : f32 to vector<16x1xf32>
    %253 = arith.divf %251, %252 : vector<16x1xf32>
    %254 = vector.broadcast %253 : vector<16x1xf32> to vector<16x32xf32>
    %255 = arith.subf %249, %254 : vector<16x32xf32>
    %256 = arith.mulf %255, %255 : vector<16x32xf32>
    %cst_107 = arith.constant dense<0.000000e+00> : vector<16xf32>
    %257 = vector.multi_reduction <add>, %256, %cst_107 [1] : vector<16x32xf32> to vector<16xf32>
    %258 = vector.shape_cast %257 : vector<16xf32> to vector<16x1xf32>
    %cst_108 = arith.constant 3.200000e+01 : f32
    %259 = vector.broadcast %cst_108 : f32 to vector<16x1xf32>
    %260 = arith.divf %258, %259 : vector<16x1xf32>
    %cst_109 = arith.constant 9.99999974E-6 : f32
    %261 = vector.broadcast %cst_109 : f32 to vector<16x1xf32>
    %262 = arith.addf %260, %261 : vector<16x1xf32>
    %263 = math.rsqrt %262 : vector<16x1xf32>
    %264 = vector.broadcast %263 : vector<16x1xf32> to vector<16x32xf32>
    %265 = arith.mulf %255, %264 : vector<16x32xf32>
    %c0_110 = arith.constant 0 : index
    %c0_111 = arith.constant 0 : index
    %266 = vector.load %arg16[%c0_110, %c0_111] : memref<1x32xf32, #tpu.memory_space<vmem>>, vector<1x32xf32>
    %267 = vector.broadcast %266 : vector<1x32xf32> to vector<16x32xf32>
    %268 = arith.mulf %265, %267 : vector<16x32xf32>
    %c0_112 = arith.constant 0 : index
    %c0_113 = arith.constant 0 : index
    %269 = vector.load %arg17[%c0_112, %c0_113] : memref<1x32xf32, #tpu.memory_space<vmem>>, vector<1x32xf32>
    %270 = vector.broadcast %269 : vector<1x32xf32> to vector<16x32xf32>
    %271 = arith.addf %268, %270 : vector<16x32xf32>
    %272 = vector.shape_cast %271 : vector<16x32xf32> to vector<2x8x32xf32>
    %c0_114 = arith.constant 0 : index
    %c0_115 = arith.constant 0 : index
    %c0_116 = arith.constant 0 : index
    %273 = vector.load %arg18[%c0_114, %c0_115, %c0_116] : memref<2x8x32xf32, #tpu.memory_space<vmem>>, vector<2x8x32xf32>
    tpu.vector_store %arg18[%c0_114, %c0_115, %c0_116], %272 {strides = array<i32>} : memref<2x8x32xf32, #tpu.memory_space<vmem>>, vector<2x8x32xf32>,
    return
  }
  func.func @transform_0(%arg0: i32) -> (i32, i32, i32) {
    %c0_i32 = arith.constant 0 : i32
    %c0_i32_0 = arith.constant 0 : i32
    %c0_i32_1 = arith.constant 0 : i32
    return %arg0, %c0_i32, %c0_i32_0 : i32, i32, i32
  }
  func.func @transform_1(%arg0: i32) -> (i32, i32, i32) {
    %c0_i32 = arith.constant 0 : i32
    %c0_i32_0 = arith.constant 0 : i32
    %c0_i32_1 = arith.constant 0 : i32
    return %arg0, %c0_i32, %c0_i32_0 : i32, i32, i32
  }
  func.func @transform_2(%arg0: i32) -> (i32, i32) {
    %c0_i32 = arith.constant 0 : i32
    %c0_i32_0 = arith.constant 0 : i32
    %c0_i32_1 = arith.constant 0 : i32
    return %c0_i32, %c0_i32_0 : i32, i32
  }
  func.func @transform_3(%arg0: i32) -> (i32, i32) {
    %c0_i32 = arith.constant 0 : i32
    %c0_i32_0 = arith.constant 0 : i32
    %c0_i32_1 = arith.constant 0 : i32
    return %c0_i32, %c0_i32_0 : i32, i32
  }
  func.func @transform_4(%arg0: i32) -> (i32, i32) {
    %c0_i32 = arith.constant 0 : i32
    %c0_i32_0 = arith.constant 0 : i32
    %c0_i32_1 = arith.constant 0 : i32
    return %c0_i32, %c0_i32_0 : i32, i32
  }
  func.func @transform_5(%arg0: i32) -> (i32, i32) {
    %c0_i32 = arith.constant 0 : i32
    %c0_i32_0 = arith.constant 0 : i32
    %c0_i32_1 = arith.constant 0 : i32
    return %c0_i32, %c0_i32_0 : i32, i32
  }
  func.func @transform_6(%arg0: i32) -> (i32, i32) {
    %c0_i32 = arith.constant 0 : i32
    %c0_i32_0 = arith.constant 0 : i32
    %c0_i32_1 = arith.constant 0 : i32
    return %c0_i32, %c0_i32_0 : i32, i32
  }
  func.func @transform_7(%arg0: i32) -> (i32, i32) {
    %c0_i32 = arith.constant 0 : i32
    %c0_i32_0 = arith.constant 0 : i32
    %c0_i32_1 = arith.constant 0 : i32
    return %c0_i32, %c0_i32_0 : i32, i32
  }
  func.func @transform_8(%arg0: i32) -> (i32, i32) {
    %c0_i32 = arith.constant 0 : i32
    %c0_i32_0 = arith.constant 0 : i32
    %c0_i32_1 = arith.constant 0 : i32
    return %c0_i32, %c0_i32_0 : i32, i32
  }
  func.func @transform_9(%arg0: i32) -> (i32, i32) {
    %c0_i32 = arith.constant 0 : i32
    %c0_i32_0 = arith.constant 0 : i32
    %c0_i32_1 = arith.constant 0 : i32
    return %c0_i32, %c0_i32_0 : i32, i32
  }
  func.func @transform_10(%arg0: i32) -> (i32, i32) {
    %c0_i32 = arith.constant 0 : i32
    %c0_i32_0 = arith.constant 0 : i32
    %c0_i32_1 = arith.constant 0 : i32
    return %c0_i32, %c0_i32_0 : i32, i32
  }
  func.func @transform_11(%arg0: i32) -> (i32, i32) {
    %c0_i32 = arith.constant 0 : i32
    %c0_i32_0 = arith.constant 0 : i32
    %c0_i32_1 = arith.constant 0 : i32
    return %c0_i32, %c0_i32_0 : i32, i32
  }
  func.func @transform_12(%arg0: i32) -> (i32, i32) {
    %c0_i32 = arith.constant 0 : i32
    %c0_i32_0 = arith.constant 0 : i32
    %c0_i32_1 = arith.constant 0 : i32
    return %c0_i32, %c0_i32_0 : i32, i32
  }
  func.func @transform_13(%arg0: i32) -> (i32, i32) {
    %c0_i32 = arith.constant 0 : i32
    %c0_i32_0 = arith.constant 0 : i32
    %c0_i32_1 = arith.constant 0 : i32
    return %c0_i32, %c0_i32_0 : i32, i32
  }
  func.func @transform_14(%arg0: i32) -> (i32, i32) {
    %c0_i32 = arith.constant 0 : i32
    %c0_i32_0 = arith.constant 0 : i32
    %c0_i32_1 = arith.constant 0 : i32
    return %c0_i32, %c0_i32_0 : i32, i32
  }
  func.func @transform_15(%arg0: i32) -> (i32, i32) {
    %c0_i32 = arith.constant 0 : i32
    %c0_i32_0 = arith.constant 0 : i32
    %c0_i32_1 = arith.constant 0 : i32
    return %c0_i32, %c0_i32_0 : i32, i32
  }
  func.func @transform_16(%arg0: i32) -> (i32, i32) {
    %c0_i32 = arith.constant 0 : i32
    %c0_i32_0 = arith.constant 0 : i32
    %c0_i32_1 = arith.constant 0 : i32
    return %c0_i32, %c0_i32_0 : i32, i32
  }
  func.func @transform_17(%arg0: i32) -> (i32, i32, i32) {
    %c0_i32 = arith.constant 0 : i32
    %c0_i32_0 = arith.constant 0 : i32
    %c0_i32_1 = arith.constant 0 : i32
    return %arg0, %c0_i32, %c0_i32_0 : i32, i32, i32
  }
}

</mosaic_0001>

<llo_original>
// kernel: tpu_custom_call.1
$region0: #{tpu_custom_call.1}
  #allocation0 [shape = 'u32[]', space=smem, size = 0x4, offset = 0x4, fixed_abs, tag = 'smem constant byte address 0x4 - core index']
  #allocation1 [shape = 'u32[72,128]{1,0:T(1,128)}', space=vmem, size = 0x9000, scoped, tag = 'internal scratch']
  #allocation2 [shape = 'f32[2,8,32]{2,1,0:T(8,128)}', space=vmem, size = 0x2000, scoped, tag = 'scratch operand']
  %s0 = inlined_call_operand.vmem [shape: f32[2,8,32], index: 0, kind: input, shape index: {}]
  %s1 = inlined_call_operand.vmem [shape: f32[2,8,1], index: 1, kind: input, shape index: {}]
  %s2 = inlined_call_operand.vmem [shape: bf16[32,96], index: 2, kind: input, shape index: {}]
  %s3 = inlined_call_operand.vmem [shape: f32[1,96], index: 3, kind: input, shape index: {}]
  %s4 = inlined_call_operand.vmem [shape: bf16[32,32], index: 4, kind: input, shape index: {}]
  %s5 = inlined_call_operand.vmem [shape: f32[1,32], index: 5, kind: input, shape index: {}]
  %s6 = inlined_call_operand.vmem [shape: bf16[16,8], index: 6, kind: input, shape index: {}]
  %s7 = inlined_call_operand.vmem [shape: bf16[16,8], index: 7, kind: input, shape index: {}]
  %s8 = inlined_call_operand.vmem [shape: f32[16,32], index: 8, kind: input, shape index: {}]
  %s9 = inlined_call_operand.vmem [shape: f32[1,32], index: 9, kind: input, shape index: {}]
  %s10 = inlined_call_operand.vmem [shape: f32[1,32], index: 10, kind: input, shape index: {}]
  %s11 = inlined_call_operand.hbm [shape: bf16[32,64], index: 11, kind: input, shape index: {}]
  %s12 = inlined_call_operand.vmem [shape: f32[1,64], index: 12, kind: input, shape index: {}]
  %s13 = inlined_call_operand.vmem [shape: bf16[64,32], index: 13, kind: input, shape index: {}]
  %s14 = inlined_call_operand.vmem [shape: f32[1,32], index: 14, kind: input, shape index: {}]
  %s15 = inlined_call_operand.vmem [shape: f32[1,32], index: 15, kind: input, shape index: {}]
  %s16 = inlined_call_operand.vmem [shape: f32[1,32], index: 16, kind: input, shape index: {}]
  %s17 = inlined_call_operand.hbm [shape: f32[2,8,32], index: 17, kind: output, shape index: {}]
  %s18 = sld [smem:[#allocation0]]
  $region82: #{tpu_custom_call.1} parent=0
    _
  %s20 = ssub.s32 1, %s18
  %s21 = scalar_select 0, %s20, %s18
  $region1: #{tpu_custom_call.1} parent=0
    #allocation3 [shape = 'u8[8192]{0}', space=vmem, size = 0x2000, scoped, tag = 'input window, operand 11, single buffered']
    #allocation4 [shape = 's32[1]{0}', space=sflag, size = 0x4, scoped, tag = 'scoped memory for tpu_custom_call.1']
    #allocation5 [shape = 's32[1]{0}', space=sflag, size = 0x4, scoped, tag = 'scoped memory for tpu_custom_call.1']
    #allocation6 [shape = 'u8[8192]{0}', space=vmem, size = 0x2000, scoped, tag = 'output window, operand 0, single buffered']
    %22 = vsyncpa [#allocation4], 0
    %23 = vsyncpa [#allocation5], 0
    // Predicated region
    $region2: #{tpu_custom_call.1} parent=1 // pred_check
      _
    $region3: #{tpu_custom_call.1} parent=1 // pred_check_branch
      %25 = sbr.rel (0) target = $region5
    $region4: #{tpu_custom_call.1} parent=1 // pred_region
      _
    $region5: #{tpu_custom_call.1} parent=1 // pred_fallthru
      _
    // Predicated region
    $region6: #{tpu_custom_call.1} parent=1 // pred_check
      _
    $region7: #{tpu_custom_call.1} parent=1 // pred_check_branch
      %27 = sbr.rel (0) target = $region9
    $region8: #{tpu_custom_call.1} parent=1 // pred_region
      _
    $region9: #{tpu_custom_call.1} parent=1 // pred_fallthru
      _
    // Predicated region
    $region10: #{tpu_custom_call.1} parent=1 // pred_check
      _
    $region11: #{tpu_custom_call.1} parent=1 // pred_check_branch
      %29 = sbr.rel (0) target = $region13
    $region12: #{tpu_custom_call.1} parent=1 // pred_region
      _
    $region13: #{tpu_custom_call.1} parent=1 // pred_fallthru
      _
    // Predicated region
    $region14: #{tpu_custom_call.1} parent=1 // pred_check
      _
    $region15: #{tpu_custom_call.1} parent=1 // pred_check_branch
      %31 = sbr.rel (0) target = $region17
    $region16: #{tpu_custom_call.1} parent=1 // pred_region
      _
    $region17: #{tpu_custom_call.1} parent=1 // pred_fallthru
      _
    // Predicated region
    $region18: #{tpu_custom_call.1} parent=1 // pred_check
      _
    $region19: #{tpu_custom_call.1} parent=1 // pred_check_branch
      %33 = sbr.rel (0) target = $region21
    $region20: #{tpu_custom_call.1} parent=1 // pred_region
      _
    $region21: #{tpu_custom_call.1} parent=1 // pred_fallthru
      _
    // Predicated region
    $region22: #{tpu_custom_call.1} parent=1 // pred_check
      _
    $region23: #{tpu_custom_call.1} parent=1 // pred_check_branch
      %35 = sbr.rel (0) target = $region25
    $region24: #{tpu_custom_call.1} parent=1 // pred_region
      _
    $region25: #{tpu_custom_call.1} parent=1 // pred_fallthru
      _
    // Predicated region
    $region26: #{tpu_custom_call.1} parent=1 // pred_check
      _
    $region27: #{tpu_custom_call.1} parent=1 // pred_check_branch
      %37 = sbr.rel (0) target = $region29
    $region28: #{tpu_custom_call.1} parent=1 // pred_region
      _
    $region29: #{tpu_custom_call.1} parent=1 // pred_fallthru
      _
    // Predicated region
    $region30: #{tpu_custom_call.1} parent=1 // pred_check
      _
    $region31: #{tpu_custom_call.1} parent=1 // pred_check_branch
      %39 = sbr.rel (0) target = $region33
    $region32: #{tpu_custom_call.1} parent=1 // pred_region
      _
    $region33: #{tpu_custom_call.1} parent=1 // pred_fallthru
      _
    // Predicated region
    $region34: #{tpu_custom_call.1} parent=1 // pred_check
      _
    $region35: #{tpu_custom_call.1} parent=1 // pred_check_branch
      %41 = sbr.rel (0) target = $region37
    $region36: #{tpu_custom_call.1} parent=1 // pred_region
      _
    $region37: #{tpu_custom_call.1} parent=1 // pred_fallthru
      _
    // Predicated region
    $region38: #{tpu_custom_call.1} parent=1 // pred_check
      _
    $region39: #{tpu_custom_call.1} parent=1 // pred_check_branch
      %43 = sbr.rel (0) target = $region41
    $region40: #{tpu_custom_call.1} parent=1 // pred_region
      _
    $region41: #{tpu_custom_call.1} parent=1 // pred_fallthru
      _
    // Predicated region
    $region42: #{tpu_custom_call.1} parent=1 // pred_check
      _
    $region43: #{tpu_custom_call.1} parent=1 // pred_check_branch
      %45 = sbr.rel (0) target = $region45
    $region44: #{tpu_custom_call.1} parent=1 // pred_region
      _
    $region45: #{tpu_custom_call.1} parent=1 // pred_fallthru
      _
    // Predicated region
    $region46: #{tpu_custom_call.1} parent=1 // pred_check
      _
    $region47: #{tpu_custom_call.1} parent=1 // pred_check_branch
      %47 = sbr.rel (0) target = $region49
    $region48: #{tpu_custom_call.1} parent=1 // pred_region
      %49 = vsyncadd [#allocation4], 0
      %s50 = sshll.u32 %s11, 4
      %s51 = int_to_ptr.hbm [resolvable:$true] %s50
      %s52 = sshll.u32 [#allocation3], 4
      %s53 = int_to_ptr.vmem [resolvable:$true] %s52
      %58 = dma.hbm_to_vmem [thread:$0]  %s51, 256, %s53, [#allocation4], 64, 64, 4
    $region49: #{tpu_custom_call.1} parent=1 // pred_fallthru
      _
    // Predicated region
    $region50: #{tpu_custom_call.1} parent=1 // pred_check
      _
    $region51: #{tpu_custom_call.1} parent=1 // pred_check_branch
      %60 = sbr.rel (0) target = $region53
    $region52: #{tpu_custom_call.1} parent=1 // pred_region
      _
    $region53: #{tpu_custom_call.1} parent=1 // pred_fallthru
      _
    // Predicated region
    $region54: #{tpu_custom_call.1} parent=1 // pred_check
      _
    $region55: #{tpu_custom_call.1} parent=1 // pred_check_branch
      %62 = sbr.rel (0) target = $region57
    $region56: #{tpu_custom_call.1} parent=1 // pred_region
      _
    $region57: #{tpu_custom_call.1} parent=1 // pred_fallthru
      _
    // Predicated region
    $region58: #{tpu_custom_call.1} parent=1 // pred_check
      _
    $region59: #{tpu_custom_call.1} parent=1 // pred_check_branch
      %64 = sbr.rel (0) target = $region61
    $region60: #{tpu_custom_call.1} parent=1 // pred_region
      _
    $region61: #{tpu_custom_call.1} parent=1 // pred_fallthru
      _
    // Predicated region
    $region62: #{tpu_custom_call.1} parent=1 // pred_check
      _
    $region63: #{tpu_custom_call.1} parent=1 // pred_check_branch
      %66 = sbr.rel (0) target = $region65
    $region64: #{tpu_custom_call.1} parent=1 // pred_region
      _
    $region65: #{tpu_custom_call.1} parent=1 // pred_fallthru
      _
    // Predicated region
    $region66: #{tpu_custom_call.1} parent=1 // pred_check
      _
    $region67: #{tpu_custom_call.1} parent=1 // pred_check_branch
      %68 = sbr.rel (0) target = $region69
    $region68: #{tpu_custom_call.1} parent=1 // pred_region
      _
    $region69: #{tpu_custom_call.1} parent=1 // pred_fallthru
      _
    // Predicated region
    $region70: #{tpu_custom_call.1} parent=1 // pred_check
      _
    $region71: #{tpu_custom_call.1} parent=1 // pred_check_branch
      %70 = sbr.rel (0) target = $region73
    $region72: #{tpu_custom_call.1} parent=1 // pred_region
      %72 = dma.done [#allocation4], 256
    $region73: #{tpu_custom_call.1} parent=1 // pred_fallthru
      _
    %v74 = vld [vmem:[%s0] sm:$0xff]
    %v75 = vld [vmem:[%s0 + $0x8] sm:$0xff]
    %v76 = vpack.c.bf16 %v75, %v74
    %v77 = vld [vmem:[%s2] sm:$0xf]
    %v78 = vld [vmem:[%s2 + $0x4] sm:$0xf]
    %v79 = vld [vmem:[%s2 + $0x8] sm:$0xf]
    %v80 = vld [vmem:[%s2 + $0xc] sm:$0xf]
    %v81 = vld [vmem:[%s3] sm:$0x1]
    %v83 = vperm.slane %v81, 0
    %v89 = vunpack.c.l.b16 %v77
    %v90 = vunpack.c.l.b16 %v78
    %v91 = vunpack.c.l.b16 %v79
    %v92 = vunpack.c.l.b16 %v80
    %v93 = vpack.c.b16 %v90, %v89
    %v94 = vpack.c.b16 %v92, %v91
    %vm97 = vcmask 261120
    %v99 = vsel %vm97, %v76, 0
    %101 = vmatpush.bf16.msra.mxu0 0
    %102 = vmatpush.bf16.msra.mxu0 0
    %103 = vmatpush.bf16.msra.mxu0 0
    %104 = vmatpush.bf16.msra.mxu0 0
    %105 = vmatpush.bf16.msra.mxu0 0
    %106 = vmatpush.bf16.msra.mxu0 0
    %107 = vmatpush.bf16.msra.mxu0 %v94
    %108 = vmatpush.bf16.msra.mxu0 %v93
    %109 = vmatmul.bf16.gmra.mxu0 %v99
    %v110 = vpop.f32.mrf.mxu0
    %v111 = vadd.f32 %v83, %v110
    %v112 = vpop.f32.mrf.mxu0
    %v113 = vadd.f32 %v83, %v112
    %114 = vdwg.mxu0
    %v115 = vld [vmem:[%s1] sm:$0xff]
    %v116 = vld [vmem:[%s1 + $0x8] sm:$0xff]
    %118 = vset.pattern.permute.xlu0 0
    %119 = vperm.xlu0 %118, %v115
    %v120 = vpop.permute.xlu0 %119
    %v122 = vmul.f32 %v111, %v120
    %v123 = vpack.c.bf16 %v122, %v122
    %v124 = vld [vmem:[%s6] sm:$0xf]
    %v125 = vld [vmem:[%s6 + $0x4] sm:$0xf]
    %v126 = vld [vmem:[%s8] sm:$0xff]
    %v127 = vld [vmem:[%s8 + $0x8] sm:$0xff]
    %v130 = vunpack.c.l.b16 %v124
    %v131 = vunpack.c.l.b16 %v125
    %v132 = vpack.c.b16 %v131, %v130
    %134 = vrot.lane.b32.xlu0 %v123, 96
    %v135 = vpop.permute.xlu0 %134
    %vm136 = vcmask 64512
    %v138 = vsel %vm136, %v132, 0
    %vm140 = vcmask 1043456
    %v142 = vsel %vm140, %v135, 0
    %144 = vmatpush.bf16.msra.mxu0 0
    %145 = vmatpush.bf16.msra.mxu0 0
    %146 = vmatpush.bf16.msra.mxu0 0
    %147 = vmatpush.bf16.msra.mxu0 0
    %148 = vmatpush.bf16.msra.mxu0 0
    %149 = vmatpush.bf16.msra.mxu0 0
    %150 = vmatpush.bf16.msra.mxu0 0
    %151 = vmatpush.bf16.msra.mxu0 %v142
    %152 = vmatmul.bf16.gmra.mxu0 %v138
    %v153 = vpop.f32.mrf.mxu0
    %v154 = vadd.f32 %v126, %v153
    %v155 = vpop.f32.mrf.mxu0
    %v156 = vadd.f32 %v127, %v155
    %157 = vdwg.mxu0
    %v158 = vld [vmem:[%s7] sm:$0xf]
    %v159 = vld [vmem:[%s7 + $0x4] sm:$0xf]
    %v162 = vunpack.c.l.b16 %v158
    %v163 = vunpack.c.l.b16 %v159
    %v164 = vpack.c.b16 %v163, %v162
    %165 = vrot.lane.b32.xlu0 %v123, 64
    %v166 = vpop.permute.xlu0 %165
    %v168 = vsel %vm136, %v164, 0
    %v171 = vsel %vm140, %v166, 0
    %173 = vmatpush.bf16.msra.mxu0 0
    %174 = vmatpush.bf16.msra.mxu0 0
    %175 = vmatpush.bf16.msra.mxu0 0
    %176 = vmatpush.bf16.msra.mxu0 0
    %177 = vmatpush.bf16.msra.mxu0 0
    %178 = vmatpush.bf16.msra.mxu0 0
    %179 = vmatpush.bf16.msra.mxu0 0
    %180 = vmatpush.bf16.msra.mxu0 %v171
    %181 = vmatmul.bf16.gmra.mxu0 %v168
    %v182 = vpop.f32.mrf.mxu0
    %v183 = vadd.f32 0.0, %v182
    %v184 = vpop.f32.mrf.mxu0
    %v185 = vadd.f32 0.0, %v184
    %186 = vdwg.mxu0
    %v187 = vpack.c.bf16 %v111, %v111
    %v188 = vpack.c.bf16 %v154, %v154
    %v189 = vpack.c.bf16 %v156, %v156
    %v190 = vpack.c.bf16 %v183, %v183
    %v191 = vpack.c.bf16 %v185, %v185
    %v194 = vunpack.c.l.b16 %v188
    %v195 = vunpack.c.l.b16 %v189
    %v196 = vpack.c.b16 %v195, %v194
    %v198 = vsel %vm136, %v187, 0
    %v201 = vsel %vm136, %v196, 0
    %203 = vmatpush.bf16.xpose.msra.mxu0 0
    %204 = vmatpush.bf16.xpose.msra.mxu0 0
    %205 = vmatpush.bf16.xpose.msra.mxu0 0
    %206 = vmatpush.bf16.xpose.msra.mxu0 0
    %207 = vmatpush.bf16.xpose.msra.mxu0 0
    %208 = vmatpush.bf16.xpose.msra.mxu0 0
    %209 = vmatpush.bf16.xpose.msra.mxu0 0
    %210 = vmatpush.bf16.xpose.msra.mxu0 %v201
    %211 = vmatmul.bf16.gmra.mxu0 %v198
    %v212 = vpop.f32.mrf.mxu0
    %v213 = vadd.f32 0.0, %v212
    %v214 = vpop.f32.mrf.mxu0
    %215 = vdwg.mxu0
    %vm216 = vcmask 130048
    %v217 = vsel %vm216, %v213, -inf
    %218 = vmax.xlane.f32.xlu0 %v217
    %v219 = vpop.xlane.xlu0 %218
    %v220 = vsub.f32 %v213, %v219
    %v221 = vmul.f32 %v220, 1.442695
    %v222 = vpow.pop %v221
    %v223 = vsel %vm216, %v222, 0.0
    %224 = vadd.xlane.f32.xlu0 %v223
    %v225 = vpop.xlane.xlu0 %224
    %v226 = vrcp.pop %v225
    %v227 = vmul.f32 %v222, %v226
    %v228 = vpack.c.bf16 %v227, %v227
    %v231 = vunpack.c.l.b16 %v190
    %v232 = vunpack.c.l.b16 %v191
    %v233 = vpack.c.b16 %v232, %v231
    %v236 = vsel %vm216, %v228, 0
    %238 = vmatpush.bf16.msra.mxu0 0
    %239 = vmatpush.bf16.msra.mxu0 0
    %240 = vmatpush.bf16.msra.mxu0 0
    %241 = vmatpush.bf16.msra.mxu0 0
    %242 = vmatpush.bf16.msra.mxu0 0
    %243 = vmatpush.bf16.msra.mxu0 0
    %244 = vmatpush.bf16.msra.mxu0 0
    %245 = vmatpush.bf16.msra.mxu0 %v233
    %246 = vmatmul.bf16.gmra.mxu0 %v236
    %v247 = vpop.f32.mrf.mxu0
    %v248 = vadd.f32 0.0, %v247
    %v249 = vpop.f32.mrf.mxu0
    %250 = vdwg.mxu0
    %251 = vst.msk [vmem:[#allocation2] sm:$0xff] %vm136, %v248
    %v253 = vunpack.c.l.b16 %v187
    %v254 = vpack.c.b16 %v253, %v253
    %255 = vrot.lane.b32.xlu0 %v254, 120
    %v256 = vpop.permute.xlu0 %255
    %257 = vrot.lane.b32.xlu0 %v196, 120
    %v258 = vpop.permute.xlu0 %257
    %v260 = vsel %vm136, %v256, 0
    %v263 = vsel %vm136, %v258, 0
    %265 = vmatpush.bf16.xpose.msra.mxu0 0
    %266 = vmatpush.bf16.xpose.msra.mxu0 0
    %267 = vmatpush.bf16.xpose.msra.mxu0 0
    %268 = vmatpush.bf16.xpose.msra.mxu0 0
    %269 = vmatpush.bf16.xpose.msra.mxu0 0
    %270 = vmatpush.bf16.xpose.msra.mxu0 0
    %271 = vmatpush.bf16.xpose.msra.mxu0 0
    %272 = vmatpush.bf16.xpose.msra.mxu0 %v263
    %273 = vmatmul.bf16.gmra.mxu0 %v260
    %v274 = vpop.f32.mrf.mxu0
    %v275 = vadd.f32 0.0, %v274
    %v276 = vpop.f32.mrf.mxu0
    %277 = vdwg.mxu0
    %v278 = vsel %vm216, %v275, -inf
    %279 = vmax.xlane.f32.xlu0 %v278
    %v280 = vpop.xlane.xlu0 %279
    %v281 = vsub.f32 %v275, %v280
    %v282 = vmul.f32 %v281, 1.442695
    %v283 = vpow.pop %v282
    %v284 = vsel %vm216, %v283, 0.0
    %285 = vadd.xlane.f32.xlu0 %v284
    %v286 = vpop.xlane.xlu0 %285
    %v287 = vrcp.pop %v286
    %v288 = vmul.f32 %v283, %v287
    %v289 = vpack.c.bf16 %v288, %v288
    %290 = vrot.lane.b32.xlu0 %v233, 120
    %v291 = vpop.permute.xlu0 %290
    %v294 = vsel %vm216, %v289, 0
    %296 = vmatpush.bf16.msra.mxu0 0
    %297 = vmatpush.bf16.msra.mxu0 0
    %298 = vmatpush.bf16.msra.mxu0 0
    %299 = vmatpush.bf16.msra.mxu0 0
    %300 = vmatpush.bf16.msra.mxu0 0
    %301 = vmatpush.bf16.msra.mxu0 0
    %302 = vmatpush.bf16.msra.mxu0 0
    %303 = vmatpush.bf16.msra.mxu0 %v291
    %304 = vmatmul.bf16.gmra.mxu0 %v294
    %v305 = vpop.f32.mrf.mxu0
    %v306 = vadd.f32 0.0, %v305
    %v307 = vpop.f32.mrf.mxu0
    %308 = vdwg.mxu0
    %310 = vrot.lane.b32.xlu0 %v306, 8
    %v311 = vpop.permute.xlu0 %310
    %vm313 = vcmask 130112
    %314 = vst.msk [vmem:[#allocation2] sm:$0xff] %vm313, %v311
    %315 = vrot.lane.b32.xlu0 %v254, 112
    %v316 = vpop.permute.xlu0 %315
    %317 = vrot.lane.b32.xlu0 %v196, 112
    %v318 = vpop.permute.xlu0 %317
    %v320 = vsel %vm136, %v316, 0
    %v323 = vsel %vm136, %v318, 0
    %325 = vmatpush.bf16.xpose.msra.mxu0 0
    %326 = vmatpush.bf16.xpose.msra.mxu0 0
    %327 = vmatpush.bf16.xpose.msra.mxu0 0
    %328 = vmatpush.bf16.xpose.msra.mxu0 0
    %329 = vmatpush.bf16.xpose.msra.mxu0 0
    %330 = vmatpush.bf16.xpose.msra.mxu0 0
    %331 = vmatpush.bf16.xpose.msra.mxu0 0
    %332 = vmatpush.bf16.xpose.msra.mxu0 %v323
    %333 = vmatmul.bf16.gmra.mxu0 %v320
    %v334 = vpop.f32.mrf.mxu0
    %v335 = vadd.f32 0.0, %v334
    %v336 = vpop.f32.mrf.mxu0
    %337 = vdwg.mxu0
    %v338 = vsel %vm216, %v335, -inf
    %339 = vmax.xlane.f32.xlu0 %v338
    %v340 = vpop.xlane.xlu0 %339
    %v341 = vsub.f32 %v335, %v340
    %v342 = vmul.f32 %v341, 1.442695
    %v343 = vpow.pop %v342
    %v344 = vsel %vm216, %v343, 0.0
    %345 = vadd.xlane.f32.xlu0 %v344
    %v346 = vpop.xlane.xlu0 %345
    %v347 = vrcp.pop %v346
    %v348 = vmul.f32 %v343, %v347
    %v349 = vpack.c.bf16 %v348, %v348
    %350 = vrot.lane.b32.xlu0 %v233, 112
    %v351 = vpop.permute.xlu0 %350
    %v354 = vsel %vm216, %v349, 0
    %356 = vmatpush.bf16.msra.mxu0 0
    %357 = vmatpush.bf16.msra.mxu0 0
    %358 = vmatpush.bf16.msra.mxu0 0
    %359 = vmatpush.bf16.msra.mxu0 0
    %360 = vmatpush.bf16.msra.mxu0 0
    %361 = vmatpush.bf16.msra.mxu0 0
    %362 = vmatpush.bf16.msra.mxu0 0
    %363 = vmatpush.bf16.msra.mxu0 %v351
    %364 = vmatmul.bf16.gmra.mxu0 %v354
    %v365 = vpop.f32.mrf.mxu0
    %v366 = vadd.f32 0.0, %v365
    %v367 = vpop.f32.mrf.mxu0
    %368 = vdwg.mxu0
    %370 = vrot.lane.b32.xlu0 %v366, 16
    %v371 = vpop.permute.xlu0 %370
    %vm373 = vcmask 195712
    %374 = vst.msk [vmem:[#allocation2] sm:$0xff] %vm373, %v371
    %375 = vrot.lane.b32.xlu0 %v254, 104
    %v376 = vpop.permute.xlu0 %375
    %377 = vrot.lane.b32.xlu0 %v196, 104
    %v378 = vpop.permute.xlu0 %377
    %v380 = vsel %vm136, %v376, 0
    %v383 = vsel %vm136, %v378, 0
    %385 = vmatpush.bf16.xpose.msra.mxu0 0
    %386 = vmatpush.bf16.xpose.msra.mxu0 0
    %387 = vmatpush.bf16.xpose.msra.mxu0 0
    %388 = vmatpush.bf16.xpose.msra.mxu0 0
    %389 = vmatpush.bf16.xpose.msra.mxu0 0
    %390 = vmatpush.bf16.xpose.msra.mxu0 0
    %391 = vmatpush.bf16.xpose.msra.mxu0 0
    %392 = vmatpush.bf16.xpose.msra.mxu0 %v383
    %393 = vmatmul.bf16.gmra.mxu0 %v380
    %v394 = vpop.f32.mrf.mxu0
    %v395 = vadd.f32 0.0, %v394
    %v396 = vpop.f32.mrf.mxu0
    %397 = vdwg.mxu0
    %v398 = vsel %vm216, %v395, -inf
    %399 = vmax.xlane.f32.xlu0 %v398
    %v400 = vpop.xlane.xlu0 %399
    %v401 = vsub.f32 %v395, %v400
    %v402 = vmul.f32 %v401, 1.442695
    %v403 = vpow.pop %v402
    %v404 = vsel %vm216, %v403, 0.0
    %405 = vadd.xlane.f32.xlu0 %v404
    %v406 = vpop.xlane.xlu0 %405
    %v407 = vrcp.pop %v406
    %v408 = vmul.f32 %v403, %v407
    %v409 = vpack.c.bf16 %v408, %v408
    %410 = vrot.lane.b32.xlu0 %v233, 104
    %v411 = vpop.permute.xlu0 %410
    %v414 = vsel %vm216, %v409, 0
    %416 = vmatpush.bf16.msra.mxu0 0
    %417 = vmatpush.bf16.msra.mxu0 0
    %418 = vmatpush.bf16.msra.mxu0 0
    %419 = vmatpush.bf16.msra.mxu0 0
    %420 = vmatpush.bf16.msra.mxu0 0
    %421 = vmatpush.bf16.msra.mxu0 0
    %422 = vmatpush.bf16.msra.mxu0 0
    %423 = vmatpush.bf16.msra.mxu0 %v411
    %424 = vmatmul.bf16.gmra.mxu0 %v414
    %v425 = vpop.f32.mrf.mxu0
    %v426 = vadd.f32 0.0, %v425
    %v427 = vpop.f32.mrf.mxu0
    %428 = vdwg.mxu0
    %430 = vrot.lane.b32.xlu0 %v426, 24
    %v431 = vpop.permute.xlu0 %430
    %vm433 = vcmask 261312
    %434 = vst.msk [vmem:[#allocation2] sm:$0xff] %vm433, %v431
    %436 = vset.pattern.permute.xlu0 0
    %437 = vperm.xlu0 %436, %v116
    %v438 = vpop.permute.xlu0 %437
    %v440 = vmul.f32 %v113, %v438
    %v441 = vpack.c.bf16 %v440, %v440
    %v442 = vld [vmem:[%s6] sm:$0xf]
    %v443 = vld [vmem:[%s6 + $0x4] sm:$0xf]
    %v444 = vld [vmem:[%s8] sm:$0xff]
    %v445 = vld [vmem:[%s8 + $0x8] sm:$0xff]
    %v448 = vunpack.c.l.b16 %v442
    %v449 = vunpack.c.l.b16 %v443
    %v450 = vpack.c.b16 %v449, %v448
    %452 = vrot.lane.b32.xlu0 %v441, 96
    %v453 = vpop.permute.xlu0 %452
    %v455 = vsel %vm136, %v450, 0
    %v458 = vsel %vm140, %v453, 0
    %460 = vmatpush.bf16.msra.mxu0 0
    %461 = vmatpush.bf16.msra.mxu0 0
    %462 = vmatpush.bf16.msra.mxu0 0
    %463 = vmatpush.bf16.msra.mxu0 0
    %464 = vmatpush.bf16.msra.mxu0 0
    %465 = vmatpush.bf16.msra.mxu0 0
    %466 = vmatpush.bf16.msra.mxu0 0
    %467 = vmatpush.bf16.msra.mxu0 %v458
    %468 = vmatmul.bf16.gmra.mxu0 %v455
    %v469 = vpop.f32.mrf.mxu0
    %v470 = vadd.f32 %v444, %v469
    %v471 = vpop.f32.mrf.mxu0
    %v472 = vadd.f32 %v445, %v471
    %473 = vdwg.mxu0
    %v474 = vld [vmem:[%s7] sm:$0xf]
    %v475 = vld [vmem:[%s7 + $0x4] sm:$0xf]
    %v478 = vunpack.c.l.b16 %v474
    %v479 = vunpack.c.l.b16 %v475
    %v480 = vpack.c.b16 %v479, %v478
    %481 = vrot.lane.b32.xlu0 %v441, 64
    %v482 = vpop.permute.xlu0 %481
    %v484 = vsel %vm136, %v480, 0
    %v487 = vsel %vm140, %v482, 0
    %489 = vmatpush.bf16.msra.mxu0 0
    %490 = vmatpush.bf16.msra.mxu0 0
    %491 = vmatpush.bf16.msra.mxu0 0
    %492 = vmatpush.bf16.msra.mxu0 0
    %493 = vmatpush.bf16.msra.mxu0 0
    %494 = vmatpush.bf16.msra.mxu0 0
    %495 = vmatpush.bf16.msra.mxu0 0
    %496 = vmatpush.bf16.msra.mxu0 %v487
    %497 = vmatmul.bf16.gmra.mxu0 %v484
    %v498 = vpop.f32.mrf.mxu0
    %v499 = vadd.f32 0.0, %v498
    %v500 = vpop.f32.mrf.mxu0
    %v501 = vadd.f32 0.0, %v500
    %502 = vdwg.mxu0
    %v503 = vpack.c.bf16 %v113, %v113
    %v504 = vpack.c.bf16 %v470, %v470
    %v505 = vpack.c.bf16 %v472, %v472
    %v506 = vpack.c.bf16 %v499, %v499
    %v507 = vpack.c.bf16 %v501, %v501
    %v510 = vunpack.c.l.b16 %v504
    %v511 = vunpack.c.l.b16 %v505
    %v512 = vpack.c.b16 %v511, %v510
    %v514 = vsel %vm136, %v503, 0
    %v517 = vsel %vm136, %v512, 0
    %519 = vmatpush.bf16.xpose.msra.mxu0 0
    %520 = vmatpush.bf16.xpose.msra.mxu0 0
    %521 = vmatpush.bf16.xpose.msra.mxu0 0
    %522 = vmatpush.bf16.xpose.msra.mxu0 0
    %523 = vmatpush.bf16.xpose.msra.mxu0 0
    %524 = vmatpush.bf16.xpose.msra.mxu0 0
    %525 = vmatpush.bf16.xpose.msra.mxu0 0
    %526 = vmatpush.bf16.xpose.msra.mxu0 %v517
    %527 = vmatmul.bf16.gmra.mxu0 %v514
    %v528 = vpop.f32.mrf.mxu0
    %v529 = vadd.f32 0.0, %v528
    %v530 = vpop.f32.mrf.mxu0
    %531 = vdwg.mxu0
    %v532 = vsel %vm216, %v529, -inf
    %533 = vmax.xlane.f32.xlu0 %v532
    %v534 = vpop.xlane.xlu0 %533
    %v535 = vsub.f32 %v529, %v534
    %v536 = vmul.f32 %v535, 1.442695
    %v537 = vpow.pop %v536
    %v538 = vsel %vm216, %v537, 0.0
    %539 = vadd.xlane.f32.xlu0 %v538
    %v540 = vpop.xlane.xlu0 %539
    %v541 = vrcp.pop %v540
    %v542 = vmul.f32 %v537, %v541
    %v543 = vpack.c.bf16 %v542, %v542
    %v546 = vunpack.c.l.b16 %v506
    %v547 = vunpack.c.l.b16 %v507
    %v548 = vpack.c.b16 %v547, %v546
    %v551 = vsel %vm216, %v543, 0
    %553 = vmatpush.bf16.msra.mxu0 0
    %554 = vmatpush.bf16.msra.mxu0 0
    %555 = vmatpush.bf16.msra.mxu0 0
    %556 = vmatpush.bf16.msra.mxu0 0
    %557 = vmatpush.bf16.msra.mxu0 0
    %558 = vmatpush.bf16.msra.mxu0 0
    %559 = vmatpush.bf16.msra.mxu0 0
    %560 = vmatpush.bf16.msra.mxu0 %v548
    %561 = vmatmul.bf16.gmra.mxu0 %v551
    %v562 = vpop.f32.mrf.mxu0
    %v563 = vadd.f32 0.0, %v562
    %v564 = vpop.f32.mrf.mxu0
    %565 = vdwg.mxu0
    %s566 = scalar_lea.vmem [#allocation2], 8
    %567 = vst.msk [vmem:[%s566] sm:$0xff] %vm136, %v563
    %v569 = vunpack.c.l.b16 %v503
    %v570 = vpack.c.b16 %v569, %v569
    %571 = vrot.lane.b32.xlu0 %v570, 120
    %v572 = vpop.permute.xlu0 %571
    %573 = vrot.lane.b32.xlu0 %v512, 120
    %v574 = vpop.permute.xlu0 %573
    %v576 = vsel %vm136, %v572, 0
    %v579 = vsel %vm136, %v574, 0
    %581 = vmatpush.bf16.xpose.msra.mxu0 0
    %582 = vmatpush.bf16.xpose.msra.mxu0 0
    %583 = vmatpush.bf16.xpose.msra.mxu0 0
    %584 = vmatpush.bf16.xpose.msra.mxu0 0
    %585 = vmatpush.bf16.xpose.msra.mxu0 0
    %586 = vmatpush.bf16.xpose.msra.mxu0 0
    %587 = vmatpush.bf16.xpose.msra.mxu0 0
    %588 = vmatpush.bf16.xpose.msra.mxu0 %v579
    %589 = vmatmul.bf16.gmra.mxu0 %v576
    %v590 = vpop.f32.mrf.mxu0
    %v591 = vadd.f32 0.0, %v590
    %v592 = vpop.f32.mrf.mxu0
    %593 = vdwg.mxu0
    %v594 = vsel %vm216, %v591, -inf
    %595 = vmax.xlane.f32.xlu0 %v594
    %v596 = vpop.xlane.xlu0 %595
    %v597 = vsub.f32 %v591, %v596
    %v598 = vmul.f32 %v597, 1.442695
    %v599 = vpow.pop %v598
    %v600 = vsel %vm216, %v599, 0.0
    %601 = vadd.xlane.f32.xlu0 %v600
    %v602 = vpop.xlane.xlu0 %601
    %v603 = vrcp.pop %v602
    %v604 = vmul.f32 %v599, %v603
    %v605 = vpack.c.bf16 %v604, %v604
    %606 = vrot.lane.b32.xlu0 %v548, 120
    %v607 = vpop.permute.xlu0 %606
    %v610 = vsel %vm216, %v605, 0
    %612 = vmatpush.bf16.msra.mxu0 0
    %613 = vmatpush.bf16.msra.mxu0 0
    %614 = vmatpush.bf16.msra.mxu0 0
    %615 = vmatpush.bf16.msra.mxu0 0
    %616 = vmatpush.bf16.msra.mxu0 0
    %617 = vmatpush.bf16.msra.mxu0 0
    %618 = vmatpush.bf16.msra.mxu0 0
    %619 = vmatpush.bf16.msra.mxu0 %v607
    %620 = vmatmul.bf16.gmra.mxu0 %v610
    %v621 = vpop.f32.mrf.mxu0
    %v622 = vadd.f32 0.0, %v621
    %v623 = vpop.f32.mrf.mxu0
    %624 = vdwg.mxu0
    %626 = vrot.lane.b32.xlu0 %v622, 8
    %v627 = vpop.permute.xlu0 %626
    %629 = vst.msk [vmem:[%s566] sm:$0xff] %vm313, %v627
    %630 = vrot.lane.b32.xlu0 %v570, 112
    %v631 = vpop.permute.xlu0 %630
    %632 = vrot.lane.b32.xlu0 %v512, 112
    %v633 = vpop.permute.xlu0 %632
    %v635 = vsel %vm136, %v631, 0
    %v638 = vsel %vm136, %v633, 0
    %640 = vmatpush.bf16.xpose.msra.mxu0 0
    %641 = vmatpush.bf16.xpose.msra.mxu0 0
    %642 = vmatpush.bf16.xpose.msra.mxu0 0
    %643 = vmatpush.bf16.xpose.msra.mxu0 0
    %644 = vmatpush.bf16.xpose.msra.mxu0 0
    %645 = vmatpush.bf16.xpose.msra.mxu0 0
    %646 = vmatpush.bf16.xpose.msra.mxu0 0
    %647 = vmatpush.bf16.xpose.msra.mxu0 %v638
    %648 = vmatmul.bf16.gmra.mxu0 %v635
    %v649 = vpop.f32.mrf.mxu0
    %v650 = vadd.f32 0.0, %v649
    %v651 = vpop.f32.mrf.mxu0
    %652 = vdwg.mxu0
    %v653 = vsel %vm216, %v650, -inf
    %654 = vmax.xlane.f32.xlu0 %v653
    %v655 = vpop.xlane.xlu0 %654
    %v656 = vsub.f32 %v650, %v655
    %v657 = vmul.f32 %v656, 1.442695
    %v658 = vpow.pop %v657
    %v659 = vsel %vm216, %v658, 0.0
    %660 = vadd.xlane.f32.xlu0 %v659
    %v661 = vpop.xlane.xlu0 %660
    %v662 = vrcp.pop %v661
    %v663 = vmul.f32 %v658, %v662
    %v664 = vpack.c.bf16 %v663, %v663
    %665 = vrot.lane.b32.xlu0 %v548, 112
    %v666 = vpop.permute.xlu0 %665
    %v669 = vsel %vm216, %v664, 0
    %671 = vmatpush.bf16.msra.mxu0 0
    %672 = vmatpush.bf16.msra.mxu0 0
    %673 = vmatpush.bf16.msra.mxu0 0
    %674 = vmatpush.bf16.msra.mxu0 0
    %675 = vmatpush.bf16.msra.mxu0 0
    %676 = vmatpush.bf16.msra.mxu0 0
    %677 = vmatpush.bf16.msra.mxu0 0
    %678 = vmatpush.bf16.msra.mxu0 %v666
    %679 = vmatmul.bf16.gmra.mxu0 %v669
    %v680 = vpop.f32.mrf.mxu0
    %v681 = vadd.f32 0.0, %v680
    %v682 = vpop.f32.mrf.mxu0
    %683 = vdwg.mxu0
    %685 = vrot.lane.b32.xlu0 %v681, 16
    %v686 = vpop.permute.xlu0 %685
    %688 = vst.msk [vmem:[%s566] sm:$0xff] %vm373, %v686
    %689 = vrot.lane.b32.xlu0 %v570, 104
    %v690 = vpop.permute.xlu0 %689
    %691 = vrot.lane.b32.xlu0 %v512, 104
    %v692 = vpop.permute.xlu0 %691
    %v694 = vsel %vm136, %v690, 0
    %v697 = vsel %vm136, %v692, 0
    %699 = vmatpush.bf16.xpose.msra.mxu0 0
    %700 = vmatpush.bf16.xpose.msra.mxu0 0
    %701 = vmatpush.bf16.xpose.msra.mxu0 0
    %702 = vmatpush.bf16.xpose.msra.mxu0 0
    %703 = vmatpush.bf16.xpose.msra.mxu0 0
    %704 = vmatpush.bf16.xpose.msra.mxu0 0
    %705 = vmatpush.bf16.xpose.msra.mxu0 0
    %706 = vmatpush.bf16.xpose.msra.mxu0 %v697
    %707 = vmatmul.bf16.gmra.mxu0 %v694
    %v708 = vpop.f32.mrf.mxu0
    %v709 = vadd.f32 0.0, %v708
    %v710 = vpop.f32.mrf.mxu0
    %711 = vdwg.mxu0
    %v712 = vsel %vm216, %v709, -inf
    %713 = vmax.xlane.f32.xlu0 %v712
    %v714 = vpop.xlane.xlu0 %713
    %v715 = vsub.f32 %v709, %v714
    %v716 = vmul.f32 %v715, 1.442695
    %v717 = vpow.pop %v716
    %v718 = vsel %vm216, %v717, 0.0
    %719 = vadd.xlane.f32.xlu0 %v718
    %v720 = vpop.xlane.xlu0 %719
    %v721 = vrcp.pop %v720
    %v722 = vmul.f32 %v717, %v721
    %v723 = vpack.c.bf16 %v722, %v722
    %724 = vrot.lane.b32.xlu0 %v548, 104
    %v725 = vpop.permute.xlu0 %724
    %v728 = vsel %vm216, %v723, 0
    %730 = vmatpush.bf16.msra.mxu0 0
    %731 = vmatpush.bf16.msra.mxu0 0
    %732 = vmatpush.bf16.msra.mxu0 0
    %733 = vmatpush.bf16.msra.mxu0 0
    %734 = vmatpush.bf16.msra.mxu0 0
    %735 = vmatpush.bf16.msra.mxu0 0
    %736 = vmatpush.bf16.msra.mxu0 0
    %737 = vmatpush.bf16.msra.mxu0 %v725
    %738 = vmatmul.bf16.gmra.mxu0 %v728
    %v739 = vpop.f32.mrf.mxu0
    %v740 = vadd.f32 0.0, %v739
    %v741 = vpop.f32.mrf.mxu0
    %742 = vdwg.mxu0
    %744 = vrot.lane.b32.xlu0 %v740, 24
    %v745 = vpop.permute.xlu0 %744
    %747 = vst.msk [vmem:[%s566] sm:$0xff] %vm433, %v745
    %v748 = vld [vmem:[#allocation2] sm:$0xff]
    %v749 = vld [vmem:[#allocation2 + $0x8] sm:$0xff]
    %v750 = vpack.c.bf16 %v749, %v748
    %v751 = vld [vmem:[%s4] sm:$0xf]
    %v752 = vld [vmem:[%s4 + $0x4] sm:$0xf]
    %v753 = vld [vmem:[%s4 + $0x8] sm:$0xf]
    %v754 = vld [vmem:[%s4 + $0xc] sm:$0xf]
    %v755 = vld [vmem:[%s5] sm:$0x1]
    %v757 = vperm.slane %v755, 0
    %v763 = vunpack.c.l.b16 %v751
    %v764 = vunpack.c.l.b16 %v752
    %v765 = vunpack.c.l.b16 %v753
    %v766 = vunpack.c.l.b16 %v754
    %v767 = vpack.c.b16 %v764, %v763
    %v768 = vpack.c.b16 %v766, %v765
    %v772 = vsel %vm97, %v750, 0
    %774 = vmatpush.bf16.msra.mxu0 0
    %775 = vmatpush.bf16.msra.mxu0 0
    %776 = vmatpush.bf16.msra.mxu0 0
    %777 = vmatpush.bf16.msra.mxu0 0
    %778 = vmatpush.bf16.msra.mxu0 0
    %779 = vmatpush.bf16.msra.mxu0 0
    %780 = vmatpush.bf16.msra.mxu0 %v768
    %781 = vmatpush.bf16.msra.mxu0 %v767
    %782 = vmatmul.bf16.gmra.mxu0 %v772
    %v783 = vpop.f32.mrf.mxu0
    %v784 = vadd.f32 %v757, %v783
    %v785 = vpop.f32.mrf.mxu0
    %v786 = vadd.f32 %v757, %v785
    %787 = vdwg.mxu0
    %v788 = vadd.f32 %v74, %v784
    %v789 = vadd.f32 %v75, %v786
    %v790 = vsel %vm97, %v788, 0.0
    %791 = vadd.xlane.f32.xlu0 %v790
    %v792 = vpop.xlane.xlu0 %791
    %v793 = vsel %vm97, %v789, 0.0
    %794 = vadd.xlane.f32.xlu0 %v793
    %v795 = vpop.xlane.xlu0 %794
    %v796 = vrcp.pop 32.0
    %v797 = vmul.f32 32.0, %v796
    %v798 = vsub.f32 1.0, %v797
    %v799 = vmul.f32 %v796, %v798
    %v800 = vadd.f32 %v796, %v799
    %vm801 = vweird.f32 %v796
    %v802 = vsel %vm801, %v796, %v800
    %v803 = vmul.f32 %v792, %v802
    %v804 = vmul.f32 %v795, %v802
    %v805 = vsub.f32 %v788, %v803
    %v806 = vsub.f32 %v789, %v804
    %v807 = vmul.f32 %v805, %v805
    %v808 = vmul.f32 %v806, %v806
    %v809 = vsel %vm97, %v807, 0.0
    %810 = vadd.xlane.f32.xlu0 %v809
    %v811 = vpop.xlane.xlu0 %810
    %v812 = vsel %vm97, %v808, 0.0
    %813 = vadd.xlane.f32.xlu0 %v812
    %v814 = vpop.xlane.xlu0 %813
    %v815 = vmul.f32 %v811, %v802
    %v816 = vmul.f32 %v814, %v802
    %v817 = vadd.f32 %v815, 1e-05
    %v818 = vadd.f32 %v816, 1e-05
    %v819 = vrsqrt.pop %v817
    %v820 = vmul.f32 %v819, %v817
    %v821 = vmul.f32 %v820, %v819
    %v822 = vmul.f32 0.5, %v821
    %v823 = vsub.f32 1.5, %v822
    %v824 = vmul.f32 %v819, %v823
    %vm825 = vweird.f32 %v817
    %vm826 = vweird.f32 %v819
    %vm827 = vmor %vm825, %vm826
    %v828 = vsel %vm827, %v819, %v824
    %v829 = vrsqrt.pop %v818
    %v830 = vmul.f32 %v829, %v818
    %v831 = vmul.f32 %v830, %v829
    %v832 = vmul.f32 0.5, %v831
    %v833 = vsub.f32 1.5, %v832
    %v834 = vmul.f32 %v829, %v833
    %vm835 = vweird.f32 %v818
    %vm836 = vweird.f32 %v829
    %vm837 = vmor %vm835, %vm836
    %v838 = vsel %vm837, %v829, %v834
    %v839 = vmul.f32 %v805, %v828
    %v840 = vmul.f32 %v806, %v838
    %v841 = vld [vmem:[%s9] sm:$0x1]
    %v843 = vperm.slane %v841, 0
    %v845 = vmul.f32 %v839, %v843
    %v846 = vmul.f32 %v840, %v843
    %v847 = vld [vmem:[%s10] sm:$0x1]
    %v849 = vperm.slane %v847, 0
    %v851 = vadd.f32 %v845, %v849
    %v852 = vadd.f32 %v846, %v849
    %v853 = vpack.c.bf16 %v852, %v851
    %v854 = vld [vmem:[#allocation3] sm:$0xf]
    %v855 = vld [vmem:[#allocation3 + $0x4] sm:$0xf]
    %v856 = vld [vmem:[#allocation3 + $0x8] sm:$0xf]
    %v857 = vld [vmem:[#allocation3 + $0xc] sm:$0xf]
    %v858 = vld [vmem:[%s12] sm:$0x1]
    %v860 = vperm.slane %v858, 0
    %v866 = vunpack.c.l.b16 %v854
    %v867 = vunpack.c.l.b16 %v855
    %v868 = vunpack.c.l.b16 %v856
    %v869 = vunpack.c.l.b16 %v857
    %v870 = vpack.c.b16 %v867, %v866
    %v871 = vpack.c.b16 %v869, %v868
    %v875 = vsel %vm97, %v853, 0
    %877 = vmatpush.bf16.msra.mxu0 0
    %878 = vmatpush.bf16.msra.mxu0 0
    %879 = vmatpush.bf16.msra.mxu0 0
    %880 = vmatpush.bf16.msra.mxu0 0
    %881 = vmatpush.bf16.msra.mxu0 0
    %882 = vmatpush.bf16.msra.mxu0 0
    %883 = vmatpush.bf16.msra.mxu0 %v871
    %884 = vmatpush.bf16.msra.mxu0 %v870
    %885 = vmatmul.bf16.gmra.mxu0 %v875
    %v886 = vpop.f32.mrf.mxu0
    %v887 = vadd.f32 %v860, %v886
    %v888 = vpop.f32.mrf.mxu0
    %v889 = vadd.f32 %v860, %v888
    %890 = vdwg.mxu0
    %v891 = vmax.f32 %v887, 0.0
    %v892 = vmax.f32 %v889, 0.0
    %v893 = vpack.c.bf16 %v892, %v891
    %v894 = vld [vmem:[%s13] sm:$0xf]
    %v895 = vld [vmem:[%s13 + $0x4] sm:$0xf]
    %v896 = vld [vmem:[%s13 + $0x8] sm:$0xf]
    %v897 = vld [vmem:[%s13 + $0xc] sm:$0xf]
    %v898 = vld [vmem:[%s13 + $0x10] sm:$0xf]
    %v899 = vld [vmem:[%s13 + $0x14] sm:$0xf]
    %v900 = vld [vmem:[%s13 + $0x18] sm:$0xf]
    %v901 = vld [vmem:[%s13 + $0x1c] sm:$0xf]
    %v902 = vld [vmem:[%s14] sm:$0x1]
    %v904 = vperm.slane %v902, 0
    %v914 = vunpack.c.l.b16 %v894
    %v915 = vunpack.c.l.b16 %v895
    %v916 = vunpack.c.l.b16 %v896
    %v917 = vunpack.c.l.b16 %v897
    %v918 = vunpack.c.l.b16 %v898
    %v919 = vunpack.c.l.b16 %v899
    %v920 = vunpack.c.l.b16 %v900
    %v921 = vunpack.c.l.b16 %v901
    %v922 = vpack.c.b16 %v915, %v914
    %v923 = vpack.c.b16 %v917, %v916
    %v924 = vpack.c.b16 %v919, %v918
    %v925 = vpack.c.b16 %v921, %v920
    %vm930 = vcmask 523264
    %v932 = vsel %vm930, %v893, 0
    %934 = vmatpush.bf16.msra.mxu0 0
    %935 = vmatpush.bf16.msra.mxu0 0
    %936 = vmatpush.bf16.msra.mxu0 0
    %937 = vmatpush.bf16.msra.mxu0 0
    %938 = vmatpush.bf16.msra.mxu0 %v925
    %939 = vmatpush.bf16.msra.mxu0 %v924
    %940 = vmatpush.bf16.msra.mxu0 %v923
    %941 = vmatpush.bf16.msra.mxu0 %v922
    %942 = vmatmul.bf16.gmra.mxu0 %v932
    %v943 = vpop.f32.mrf.mxu0
    %v944 = vadd.f32 %v904, %v943
    %v945 = vpop.f32.mrf.mxu0
    %v946 = vadd.f32 %v904, %v945
    %947 = vdwg.mxu0
    %v948 = vadd.f32 %v851, %v944
    %v949 = vadd.f32 %v852, %v946
    %v950 = vsel %vm97, %v948, 0.0
    %951 = vadd.xlane.f32.xlu0 %v950
    %v952 = vpop.xlane.xlu0 %951
    %v953 = vsel %vm97, %v949, 0.0
    %954 = vadd.xlane.f32.xlu0 %v953
    %v955 = vpop.xlane.xlu0 %954
    %v956 = vmul.f32 %v952, %v802
    %v957 = vmul.f32 %v955, %v802
    %v958 = vsub.f32 %v948, %v956
    %v959 = vsub.f32 %v949, %v957
    %v960 = vmul.f32 %v958, %v958
    %v961 = vmul.f32 %v959, %v959
    %v962 = vsel %vm97, %v960, 0.0
    %963 = vadd.xlane.f32.xlu0 %v962
    %v964 = vpop.xlane.xlu0 %963
    %v965 = vsel %vm97, %v961, 0.0
    %966 = vadd.xlane.f32.xlu0 %v965
    %v967 = vpop.xlane.xlu0 %966
    %v968 = vmul.f32 %v964, %v802
    %v969 = vmul.f32 %v967, %v802
    %v970 = vadd.f32 %v968, 1e-05
    %v971 = vadd.f32 %v969, 1e-05
    %v972 = vrsqrt.pop %v970
    %v973 = vmul.f32 %v972, %v970
    %v974 = vmul.f32 %v973, %v972
    %v975 = vmul.f32 0.5, %v974
    %v976 = vsub.f32 1.5, %v975
    %v977 = vmul.f32 %v972, %v976
    %vm978 = vweird.f32 %v970
    %vm979 = vweird.f32 %v972
    %vm980 = vmor %vm978, %vm979
    %v981 = vsel %vm980, %v972, %v977
    %v982 = vrsqrt.pop %v971
    %v983 = vmul.f32 %v982, %v971
    %v984 = vmul.f32 %v983, %v982
    %v985 = vmul.f32 0.5, %v984
    %v986 = vsub.f32 1.5, %v985
    %v987 = vmul.f32 %v982, %v986
    %vm988 = vweird.f32 %v971
    %vm989 = vweird.f32 %v982
    %vm990 = vmor %vm988, %vm989
    %v991 = vsel %vm990, %v982, %v987
    %v992 = vmul.f32 %v958, %v981
    %v993 = vmul.f32 %v959, %v991
    %v994 = vld [vmem:[%s15] sm:$0x1]
    %v996 = vperm.slane %v994, 0
    %v998 = vmul.f32 %v992, %v996
    %v999 = vmul.f32 %v993, %v996
    %v1000 = vld [vmem:[%s16] sm:$0x1]
    %v1002 = vperm.slane %v1000, 0
    %v1004 = vadd.f32 %v998, %v1002
    %v1005 = vadd.f32 %v999, %v1002
    %1006 = vst.msk [vmem:[#allocation6] sm:$0xff] %vm97, %v1004
    %1007 = vst.msk [vmem:[#allocation6 + $0x8] sm:$0xff] %vm97, %v1005
    // Predicated region
    $region74: #{tpu_custom_call.1} parent=1 // pred_check
      _
    $region75: #{tpu_custom_call.1} parent=1 // pred_check_branch
      %1009 = sbr.rel (0) target = $region77
    $region76: #{tpu_custom_call.1} parent=1 // pred_region
      %1011 = vsyncadd [#allocation5], 0
      %s1012 = sshll.u32 [#allocation6], 4
      %s1013 = int_to_ptr.vmem [resolvable:$true] %s1012
      %s1014 = sshll.u32 %s17, 4
      %s1015 = int_to_ptr.hbm [resolvable:$true] %s1014
      %1020 = dma.vmem_to_hbm [thread:$0]  %s1013, 256, %s1015, [#allocation5], 128, 128, 8
    $region77: #{tpu_custom_call.1} parent=1 // pred_fallthru
      _
    // Predicated region
    $region78: #{tpu_custom_call.1} parent=1 // pred_check
      _
    $region79: #{tpu_custom_call.1} parent=1 // pred_check_branch
      %1022 = sbr.rel (0) target = $region81
    $region80: #{tpu_custom_call.1} parent=1 // pred_region
      %1024 = dma.done [#allocation5], 256
    $region81: #{tpu_custom_call.1} parent=1 // pred_fallthru
      _
    %1025 = vsyncpa [#allocation4], 1
    %1026 = vsyncpa [#allocation5], 1

// kernel: tpu_custom_call.1
$region0: #{tpu_custom_call.1}
  #allocation0 [shape = 'u32[]', space=smem, size = 0x4, offset = 0x4, fixed_abs, tag = 'smem constant byte address 0x4 - core index']
  #allocation1 [shape = 'u32[72,128]{1,0:T(1,128)}', space=vmem, size = 0x9000, scoped, tag = 'internal scratch']
  #allocation2 [shape = 'f32[2,8,32]{2,1,0:T(8,128)}', space=vmem, size = 0x2000, scoped, tag = 'scratch operand']
  %s0 = inlined_call_operand.vmem [shape: f32[2,8,32], index: 0, kind: input, shape index: {}]
  %s1 = inlined_call_operand.vmem [shape: f32[2,8,1], index: 1, kind: input, shape index: {}]
  %s2 = inlined_call_operand.vmem [shape: bf16[32,96], index: 2, kind: input, shape index: {}]
  %s3 = inlined_call_operand.vmem [shape: f32[1,96], index: 3, kind: input, shape index: {}]
  %s4 = inlined_call_operand.vmem [shape: bf16[32,32], index: 4, kind: input, shape index: {}]
  %s5 = inlined_call_operand.vmem [shape: f32[1,32], index: 5, kind: input, shape index: {}]
  %s6 = inlined_call_operand.vmem [shape: bf16[16,8], index: 6, kind: input, shape index: {}]
  %s7 = inlined_call_operand.vmem [shape: bf16[16,8], index: 7, kind: input, shape index: {}]
  %s8 = inlined_call_operand.vmem [shape: f32[16,32], index: 8, kind: input, shape index: {}]
  %s9 = inlined_call_operand.vmem [shape: f32[1,32], index: 9, kind: input, shape index: {}]
  %s10 = inlined_call_operand.vmem [shape: f32[1,32], index: 10, kind: input, shape index: {}]
  %s11 = inlined_call_operand.hbm [shape: bf16[32,64], index: 11, kind: input, shape index: {}]
  %s12 = inlined_call_operand.vmem [shape: f32[1,64], index: 12, kind: input, shape index: {}]
  %s13 = inlined_call_operand.vmem [shape: bf16[64,32], index: 13, kind: input, shape index: {}]
  %s14 = inlined_call_operand.vmem [shape: f32[1,32], index: 14, kind: input, shape index: {}]
  %s15 = inlined_call_operand.vmem [shape: f32[1,32], index: 15, kind: input, shape index: {}]
  %s16 = inlined_call_operand.vmem [shape: f32[1,32], index: 16, kind: input, shape index: {}]
  %s17 = inlined_call_operand.hbm [shape: f32[2,8,32], index: 17, kind: output, shape index: {}]
  %s18 = sld [smem:[#allocation0]]
  $region82: #{tpu_custom_call.1} parent=0
    _
  %s20 = ssub.s32 1, %s18
  %s21 = scalar_select 0, %s20, %s18
  $region1: #{tpu_custom_call.1} parent=0
    #allocation3 [shape = 'u8[8192]{0}', space=vmem, size = 0x2000, scoped, tag = 'input window, operand 11, single buffered']
    #allocation4 [shape = 's32[1]{0}', space=sflag, size = 0x4, scoped, tag = 'scoped memory for tpu_custom_call.1']
    #allocation5 [shape = 's32[1]{0}', space=sflag, size = 0x4, scoped, tag = 'scoped memory for tpu_custom_call.1']
    #allocation6 [shape = 'u8[8192]{0}', space=vmem, size = 0x2000, scoped, tag = 'output window, operand 0, single buffered']
    %22 = vsyncpa [#allocation4], 0
    %23 = vsyncpa [#allocation5], 0
    // Predicated region
    $region2: #{tpu_custom_call.1} parent=1 // pred_check
      _
    $region3: #{tpu_custom_call.1} parent=1 // pred_check_branch
      %25 = sbr.rel (0) target = $region5
    $region4: #{tpu_custom_call.1} parent=1 // pred_region
      _
    $region5: #{tpu_custom_call.1} parent=1 // pred_fallthru
      _
    // Predicated region
    $region6: #{tpu_custom_call.1} parent=1 // pred_check
      _
    $region7: #{tpu_custom_call.1} parent=1 // pred_check_branch
      %27 = sbr.rel (0) target = $region9
    $region8: #{tpu_custom_call.1} parent=1 // pred_region
      _
    $region9: #{tpu_custom_call.1} parent=1 // pred_fallthru
      _
    // Predicated region
    $region10: #{tpu_custom_call.1} parent=1 // pred_check
      _
    $region11: #{tpu_custom_call.1} parent=1 // pred_check_branch
      %29 = sbr.rel (0) target = $region13
    $region12: #{tpu_custom_call.1} parent=1 // pred_region
      _
    $region13: #{tpu_custom_call.1} parent=1 // pred_fallthru
      _
    // Predicated region
    $region14: #{tpu_custom_call.1} parent=1 // pred_check
      _
    $region15: #{tpu_custom_call.1} parent=1 // pred_check_branch
      %31 = sbr.rel (0) target = $region17
    $region16: #{tpu_custom_call.1} parent=1 // pred_region
      _
    $region17: #{tpu_custom_call.1} parent=1 // pred_fallthru
      _
    // Predicated region
    $region18: #{tpu_custom_call.1} parent=1 // pred_check
      _
    $region19: #{tpu_custom_call.1} parent=1 // pred_check_branch
      %33 = sbr.rel (0) target = $region21
    $region20: #{tpu_custom_call.1} parent=1 // pred_region
      _
    $region21: #{tpu_custom_call.1} parent=1 // pred_fallthru
      _
    // Predicated region
    $region22: #{tpu_custom_call.1} parent=1 // pred_check
      _
    $region23: #{tpu_custom_call.1} parent=1 // pred_check_branch
      %35 = sbr.rel (0) target = $region25
    $region24: #{tpu_custom_call.1} parent=1 // pred_region
      _
    $region25: #{tpu_custom_call.1} parent=1 // pred_fallthru
      _
    // Predicated region
    $region26: #{tpu_custom_call.1} parent=1 // pred_check
      _
    $region27: #{tpu_custom_call.1} parent=1 // pred_check_branch
      %37 = sbr.rel (0) target = $region29
    $region28: #{tpu_custom_call.1} parent=1 // pred_region
      _
    $region29: #{tpu_custom_call.1} parent=1 // pred_fallthru
      _
    // Predicated region
    $region30: #{tpu_custom_call.1} parent=1 // pred_check
      _
    $region31: #{tpu_custom_call.1} parent=1 // pred_check_branch
      %39 = sbr.rel (0) target = $region33
    $region32: #{tpu_custom_call.1} parent=1 // pred_region
      _
    $region33: #{tpu_custom_call.1} parent=1 // pred_fallthru
      _
    // Predicated region
    $region34: #{tpu_custom_call.1} parent=1 // pred_check
      _
    $region35: #{tpu_custom_call.1} parent=1 // pred_check_branch
      %41 = sbr.rel (0) target = $region37
    $region36: #{tpu_custom_call.1} parent=1 // pred_region
      _
    $region37: #{tpu_custom_call.1} parent=1 // pred_fallthru
      _
    // Predicated region
    $region38: #{tpu_custom_call.1} parent=1 // pred_check
      _
    $region39: #{tpu_custom_call.1} parent=1 // pred_check_branch
      %43 = sbr.rel (0) target = $region41
    $region40: #{tpu_custom_call.1} parent=1 // pred_region
      _
    $region41: #{tpu_custom_call.1} parent=1 // pred_fallthru
      _
    // Predicated region
    $region42: #{tpu_custom_call.1} parent=1 // pred_check
      _
    $region43: #{tpu_custom_call.1} parent=1 // pred_check_branch
      %45 = sbr.rel (0) target = $region45
    $region44: #{tpu_custom_call.1} parent=1 // pred_region
      _
    $region45: #{tpu_custom_call.1} parent=1 // pred_fallthru
      _
    // Predicated region
    $region46: #{tpu_custom_call.1} parent=1 // pred_check
      _
    $region47: #{tpu_custom_call.1} parent=1 // pred_check_branch
      %47 = sbr.rel (0) target = $region49
    $region48: #{tpu_custom_call.1} parent=1 // pred_region
      %49 = vsyncadd [#allocation4], 0
      %s50 = sshll.u32 %s11, 4
      %s51 = int_to_ptr.hbm [resolvable:$true] %s50
      %s52 = sshll.u32 [#allocation3], 4
      %s53 = int_to_ptr.vmem [resolvable:$true] %s52
      %58 = dma.hbm_to_vmem [thread:$0]  %s51, 256, %s53, [#allocation4], 64, 64, 4
    $region49: #{tpu_custom_call.1} parent=1 // pred_fallthru
      _
    // Predicated region
    $region50: #{tpu_custom_call.1} parent=1 // pred_check
      _
    $region51: #{tpu_custom_call.1} parent=1 // pred_check_branch
      %60 = sbr.rel (0) target = $region53
    $region52: #{tpu_custom_call.1} parent=1 // pred_region
      _
    $region53: #{tpu_custom_call.1} parent=1 // pred_fallthru
      _
    // Predicated region
    $region54: #{tpu_custom_call.1} parent=1 // pred_check
      _
    $region55: #{tpu_custom_call.1} parent=1 // pred_check_branch
      %62 = sbr.rel (0) target = $region57
    $region56: #{tpu_custom_call.1} parent=1 // pred_region
      _
    $region57: #{tpu_custom_call.1} parent=1 // pred_fallthru
      _
    // Predicated region
    $region58: #{tpu_custom_call.1} parent=1 // pred_check
      _
    $region59: #{tpu_custom_call.1} parent=1 // pred_check_branch
      %64 = sbr.rel (0) target = $region61
    $region60: #{tpu_custom_call.1} parent=1 // pred_region
      _
    $region61: #{tpu_custom_call.1} parent=1 // pred_fallthru
      _
    // Predicated region
    $region62: #{tpu_custom_call.1} parent=1 // pred_check
      _
    $region63: #{tpu_custom_call.1} parent=1 // pred_check_branch
      %66 = sbr.rel (0) target = $region65
    $region64: #{tpu_custom_call.1} parent=1 // pred_region
      _
    $region65: #{tpu_custom_call.1} parent=1 // pred_fallthru
      _
    // Predicated region
    $region66: #{tpu_custom_call.1} parent=1 // pred_check
      _
    $region67: #{tpu_custom_call.1} parent=1 // pred_check_branch
      %68 = sbr.rel (0) target = $region69
    $region68: #{tpu_custom_call.1} parent=1 // pred_region
      _
    $region69: #{tpu_custom_call.1} parent=1 // pred_fallthru
      _
    // Predicated region
    $region70: #{tpu_custom_call.1} parent=1 // pred_check
      _
    $region71: #{tpu_custom_call.1} parent=1 // pred_check_branch
      %70 = sbr.rel (0) target = $region73
    $region72: #{tpu_custom_call.1} parent=1 // pred_region
      %72 = dma.done [#allocation4], 256
    $region73: #{tpu_custom_call.1} parent=1 // pred_fallthru
      _
    %v74 = vld [vmem:[%s0] sm:$0xff]
    %v75 = vld [vmem:[%s0 + $0x8] sm:$0xff]
    %v76 = vpack.c.bf16 %v75, %v74
    %v77 = vld [vmem:[%s2] sm:$0xf]
    %v78 = vld [vmem:[%s2 + $0x4] sm:$0xf]
    %v79 = vld [vmem:[%s2 + $0x8] sm:$0xf]
    %v80 = vld [vmem:[%s2 + $0xc] sm:$0xf]
    %v81 = vld [vmem:[%s3] sm:$0x1]
    %v83 = vperm.slane %v81, 0
    %v89 = vunpack.c.l.b16 %v77
    %v90 = vunpack.c.l.b16 %v78
    %v91 = vunpack.c.l.b16 %v79
    %v92 = vunpack.c.l.b16 %v80
    %v93 = vpack.c.b16 %v90, %v89
    %v94 = vpack.c.b16 %v92, %v91
    %vm97 = vcmask 261120
    %v99 = vsel %vm97, %v76, 0
    %101 = vmatpush.bf16.msra.mxu0 0
    %102 = vmatpush.bf16.msra.mxu0 0
    %103 = vmatpush.bf16.msra.mxu0 0
    %104 = vmatpush.bf16.msra.mxu0 0
    %105 = vmatpush.bf16.msra.mxu0 0
    %106 = vmatpush.bf16.msra.mxu0 0
    %107 = vmatpush.bf16.msra.mxu0 %v94
    %108 = vmatpush.bf16.msra.mxu0 %v93
    %109 = vmatmul.bf16.gmra.mxu0 %v99
    %v110 = vpop.f32.mrf.mxu0
    %v111 = vadd.f32 %v83, %v110
    %v112 = vpop.f32.mrf.mxu0
    %v113 = vadd.f32 %v83, %v112
    %114 = vdwg.mxu0
    %v115 = vld [vmem:[%s1] sm:$0xff]
    %v116 = vld [vmem:[%s1 + $0x8] sm:$0xff]
    %118 = vset.pattern.permute.xlu0 0
    %119 = vperm.xlu0 %118, %v115
    %v120 = vpop.permute.xlu0 %119
    %v122 = vmul.f32 %v111, %v120
    %v123 = vpack.c.bf16 %v122, %v122
    %v124 = vld [vmem:[%s6] sm:$0xf]
    %v125 = vld [vmem:[%s6 + $0x4] sm:$0xf]
    %v126 = vld [vmem:[%s8] sm:$0xff]
    %v127 = vld [vmem:[%s8 + $0x8] sm:$0xff]
    %v130 = vunpack.c.l.b16 %v124
    %v131 = vunpack.c.l.b16 %v125
    %v132 = vpack.c.b16 %v131, %v130
    %134 = vrot.lane.b32.xlu0 %v123, 96
    %v135 = vpop.permute.xlu0 %134
    %vm136 = vcmask 64512
    %v138 = vsel %vm136, %v132, 0
    %vm140 = vcmask 1043456
    %v142 = vsel %vm140, %v135, 0
    %144 = vmatpush.bf16.msra.mxu0 0
    %145 = vmatpush.bf16.msra.mxu0 0
    %146 = vmatpush.bf16.msra.mxu0 0
    %147 = vmatpush.bf16.msra.mxu0 0
    %148 = vmatpush.bf16.msra.mxu0 0
    %149 = vmatpush.bf16.msra.mxu0 0
    %150 = vmatpush.bf16.msra.mxu0 0
    %151 = vmatpush.bf16.msra.mxu0 %v142
    %152 = vmatmul.bf16.gmra.mxu0 %v138
    %v153 = vpop.f32.mrf.mxu0
    %v154 = vadd.f32 %v126, %v153
    %v155 = vpop.f32.mrf.mxu0
    %v156 = vadd.f32 %v127, %v155
    %157 = vdwg.mxu0
    %v158 = vld [vmem:[%s7] sm:$0xf]
    %v159 = vld [vmem:[%s7 + $0x4] sm:$0xf]
    %v162 = vunpack.c.l.b16 %v158
    %v163 = vunpack.c.l.b16 %v159
    %v164 = vpack.c.b16 %v163, %v162
    %165 = vrot.lane.b32.xlu0 %v123, 64
    %v166 = vpop.permute.xlu0 %165
    %v168 = vsel %vm136, %v164, 0
    %v171 = vsel %vm140, %v166, 0
    %173 = vmatpush.bf16.msra.mxu0 0
    %174 = vmatpush.bf16.msra.mxu0 0
    %175 = vmatpush.bf16.msra.mxu0 0
    %176 = vmatpush.bf16.msra.mxu0 0
    %177 = vmatpush.bf16.msra.mxu0 0
    %178 = vmatpush.bf16.msra.mxu0 0
    %179 = vmatpush.bf16.msra.mxu0 0
    %180 = vmatpush.bf16.msra.mxu0 %v171
    %181 = vmatmul.bf16.gmra.mxu0 %v168
    %v182 = vpop.f32.mrf.mxu0
    %v183 = vadd.f32 0.0, %v182
    %v184 = vpop.f32.mrf.mxu0
    %v185 = vadd.f32 0.0, %v184
    %186 = vdwg.mxu0
    %v187 = vpack.c.bf16 %v111, %v111
    %v188 = vpack.c.bf16 %v154, %v154
    %v189 = vpack.c.bf16 %v156, %v156
    %v190 = vpack.c.bf16 %v183, %v183
    %v191 = vpack.c.bf16 %v185, %v185
    %v194 = vunpack.c.l.b16 %v188
    %v195 = vunpack.c.l.b16 %v189
    %v196 = vpack.c.b16 %v195, %v194
    %v198 = vsel %vm136, %v187, 0
    %v201 = vsel %vm136, %v196, 0
    %203 = vmatpush.bf16.xpose.msra.mxu0 0
    %204 = vmatpush.bf16.xpose.msra.mxu0 0
    %205 = vmatpush.bf16.xpose.msra.mxu0 0
    %206 = vmatpush.bf16.xpose.msra.mxu0 0
    %207 = vmatpush.bf16.xpose.msra.mxu0 0
    %208 = vmatpush.bf16.xpose.msra.mxu0 0
    %209 = vmatpush.bf16.xpose.msra.mxu0 0
    %210 = vmatpush.bf16.xpose.msra.mxu0 %v201
    %211 = vmatmul.bf16.gmra.mxu0 %v198
    %v212 = vpop.f32.mrf.mxu0
    %v213 = vadd.f32 0.0, %v212
    %v214 = vpop.f32.mrf.mxu0
    %215 = vdwg.mxu0
    %vm216 = vcmask 130048
    %v217 = vsel %vm216, %v213, -inf
    %218 = vmax.xlane.f32.xlu0 %v217
    %v219 = vpop.xlane.xlu0 %218
    %v220 = vsub.f32 %v213, %v219
    %v221 = vmul.f32 %v220, 1.442695
    %v222 = vpow.pop %v221
    %v223 = vsel %vm216, %v222, 0.0
    %224 = vadd.xlane.f32.xlu0 %v223
    %v225 = vpop.xlane.xlu0 %224
    %v226 = vrcp.pop %v225
    %v227 = vmul.f32 %v222, %v226
    %v228 = vpack.c.bf16 %v227, %v227
    %v231 = vunpack.c.l.b16 %v190
    %v232 = vunpack.c.l.b16 %v191
    %v233 = vpack.c.b16 %v232, %v231
    %v236 = vsel %vm216, %v228, 0
    %238 = vmatpush.bf16.msra.mxu0 0
    %239 = vmatpush.bf16.msra.mxu0 0
    %240 = vmatpush.bf16.msra.mxu0 0
    %241 = vmatpush.bf16.msra.mxu0 0
    %242 = vmatpush.bf16.msra.mxu0 0
    %243 = vmatpush.bf16.msra.mxu0 0
    %244 = vmatpush.bf16.msra.mxu0 0
    %245 = vmatpush.bf16.msra.mxu0 %v233
    %246 = vmatmul.bf16.gmra.mxu0 %v236
    %v247 = vpop.f32.mrf.mxu0
    %v248 = vadd.f32 0.0, %v247
    %v249 = vpop.f32.mrf.mxu0
    %250 = vdwg.mxu0
    %251 = vst.msk [vmem:[#allocation2] sm:$0xff] %vm136, %v248
    %v253 = vunpack.c.l.b16 %v187
    %v254 = vpack.c.b16 %v253, %v253
    %255 = vrot.lane.b32.xlu0 %v254, 120
    %v256 = vpop.permute.xlu0 %255
    %257 = vrot.lane.b32.xlu0 %v196, 120
    %v258 = vpop.permute.xlu0 %257
    %v260 = vsel %vm136, %v256, 0
    %v263 = vsel %vm136, %v258, 0
    %265 = vmatpush.bf16.xpose.msra.mxu0 0
    %266 = vmatpush.bf16.xpose.msra.mxu0 0
    %267 = vmatpush.bf16.xpose.msra.mxu0 0
    %268 = vmatpush.bf16.xpose.msra.mxu0 0
    %269 = vmatpush.bf16.xpose.msra.mxu0 0
    %270 = vmatpush.bf16.xpose.msra.mxu0 0
    %271 = vmatpush.bf16.xpose.msra.mxu0 0
    %272 = vmatpush.bf16.xpose.msra.mxu0 %v263
    %273 = vmatmul.bf16.gmra.mxu0 %v260
    %v274 = vpop.f32.mrf.mxu0
    %v275 = vadd.f32 0.0, %v274
    %v276 = vpop.f32.mrf.mxu0
    %277 = vdwg.mxu0
    %v278 = vsel %vm216, %v275, -inf
    %279 = vmax.xlane.f32.xlu0 %v278
    %v280 = vpop.xlane.xlu0 %279
    %v281 = vsub.f32 %v275, %v280
    %v282 = vmul.f32 %v281, 1.442695
    %v283 = vpow.pop %v282
    %v284 = vsel %vm216, %v283, 0.0
    %285 = vadd.xlane.f32.xlu0 %v284
    %v286 = vpop.xlane.xlu0 %285
    %v287 = vrcp.pop %v286
    %v288 = vmul.f32 %v283, %v287
    %v289 = vpack.c.bf16 %v288, %v288
    %290 = vrot.lane.b32.xlu0 %v233, 120
    %v291 = vpop.permute.xlu0 %290
    %v294 = vsel %vm216, %v289, 0
    %296 = vmatpush.bf16.msra.mxu0 0
    %297 = vmatpush.bf16.msra.mxu0 0
    %298 = vmatpush.bf16.msra.mxu0 0
    %299 = vmatpush.bf16.msra.mxu0 0
    %300 = vmatpush.bf16.msra.mxu0 0
    %301 = vmatpush.bf16.msra.mxu0 0
    %302 = vmatpush.bf16.msra.mxu0 0
    %303 = vmatpush.bf16.msra.mxu0 %v291
    %304 = vmatmul.bf16.gmra.mxu0 %v294
    %v305 = vpop.f32.mrf.mxu0
    %v306 = vadd.f32 0.0, %v305
    %v307 = vpop.f32.mrf.mxu0
    %308 = vdwg.mxu0
    %310 = vrot.lane.b32.xlu0 %v306, 8
    %v311 = vpop.permute.xlu0 %310
    %vm313 = vcmask 130112
    %314 = vst.msk [vmem:[#allocation2] sm:$0xff] %vm313, %v311
    %315 = vrot.lane.b32.xlu0 %v254, 112
    %v316 = vpop.permute.xlu0 %315
    %317 = vrot.lane.b32.xlu0 %v196, 112
    %v318 = vpop.permute.xlu0 %317
    %v320 = vsel %vm136, %v316, 0
    %v323 = vsel %vm136, %v318, 0
    %325 = vmatpush.bf16.xpose.msra.mxu0 0
    %326 = vmatpush.bf16.xpose.msra.mxu0 0
    %327 = vmatpush.bf16.xpose.msra.mxu0 0
    %328 = vmatpush.bf16.xpose.msra.mxu0 0
    %329 = vmatpush.bf16.xpose.msra.mxu0 0
    %330 = vmatpush.bf16.xpose.msra.mxu0 0
    %331 = vmatpush.bf16.xpose.msra.mxu0 0
    %332 = vmatpush.bf16.xpose.msra.mxu0 %v323
    %333 = vmatmul.bf16.gmra.mxu0 %v320
    %v334 = vpop.f32.mrf.mxu0
    %v335 = vadd.f32 0.0, %v334
    %v336 = vpop.f32.mrf.mxu0
    %337 = vdwg.mxu0
    %v338 = vsel %vm216, %v335, -inf
    %339 = vmax.xlane.f32.xlu0 %v338
    %v340 = vpop.xlane.xlu0 %339
    %v341 = vsub.f32 %v335, %v340
    %v342 = vmul.f32 %v341, 1.442695
    %v343 = vpow.pop %v342
    %v344 = vsel %vm216, %v343, 0.0
    %345 = vadd.xlane.f32.xlu0 %v344
    %v346 = vpop.xlane.xlu0 %345
    %v347 = vrcp.pop %v346
    %v348 = vmul.f32 %v343, %v347
    %v349 = vpack.c.bf16 %v348, %v348
    %350 = vrot.lane.b32.xlu0 %v233, 112
    %v351 = vpop.permute.xlu0 %350
    %v354 = vsel %vm216, %v349, 0
    %356 = vmatpush.bf16.msra.mxu0 0
    %357 = vmatpush.bf16.msra.mxu0 0
    %358 = vmatpush.bf16.msra.mxu0 0
    %359 = vmatpush.bf16.msra.mxu0 0
    %360 = vmatpush.bf16.msra.mxu0 0
    %361 = vmatpush.bf16.msra.mxu0 0
    %362 = vmatpush.bf16.msra.mxu0 0
    %363 = vmatpush.bf16.msra.mxu0 %v351
    %364 = vmatmul.bf16.gmra.mxu0 %v354
    %v365 = vpop.f32.mrf.mxu0
    %v366 = vadd.f32 0.0, %v365
    %v367 = vpop.f32.mrf.mxu0
    %368 = vdwg.mxu0
    %370 = vrot.lane.b32.xlu0 %v366, 16
    %v371 = vpop.permute.xlu0 %370
    %vm373 = vcmask 195712
    %374 = vst.msk [vmem:[#allocation2] sm:$0xff] %vm373, %v371
    %375 = vrot.lane.b32.xlu0 %v254, 104
    %v376 = vpop.permute.xlu0 %375
    %377 = vrot.lane.b32.xlu0 %v196, 104
    %v378 = vpop.permute.xlu0 %377
    %v380 = vsel %vm136, %v376, 0
    %v383 = vsel %vm136, %v378, 0
    %385 = vmatpush.bf16.xpose.msra.mxu0 0
    %386 = vmatpush.bf16.xpose.msra.mxu0 0
    %387 = vmatpush.bf16.xpose.msra.mxu0 0
    %388 = vmatpush.bf16.xpose.msra.mxu0 0
    %389 = vmatpush.bf16.xpose.msra.mxu0 0
    %390 = vmatpush.bf16.xpose.msra.mxu0 0
    %391 = vmatpush.bf16.xpose.msra.mxu0 0
    %392 = vmatpush.bf16.xpose.msra.mxu0 %v383
    %393 = vmatmul.bf16.gmra.mxu0 %v380
    %v394 = vpop.f32.mrf.mxu0
    %v395 = vadd.f32 0.0, %v394
    %v396 = vpop.f32.mrf.mxu0
    %397 = vdwg.mxu0
    %v398 = vsel %vm216, %v395, -inf
    %399 = vmax.xlane.f32.xlu0 %v398
    %v400 = vpop.xlane.xlu0 %399
    %v401 = vsub.f32 %v395, %v400
    %v402 = vmul.f32 %v401, 1.442695
    %v403 = vpow.pop %v402
    %v404 = vsel %vm216, %v403, 0.0
    %405 = vadd.xlane.f32.xlu0 %v404
    %v406 = vpop.xlane.xlu0 %405
    %v407 = vrcp.pop %v406
    %v408 = vmul.f32 %v403, %v407
    %v409 = vpack.c.bf16 %v408, %v408
    %410 = vrot.lane.b32.xlu0 %v233, 104
    %v411 = vpop.permute.xlu0 %410
    %v414 = vsel %vm216, %v409, 0
    %416 = vmatpush.bf16.msra.mxu0 0
    %417 = vmatpush.bf16.msra.mxu0 0
    %418 = vmatpush.bf16.msra.mxu0 0
    %419 = vmatpush.bf16.msra.mxu0 0
    %420 = vmatpush.bf16.msra.mxu0 0
    %421 = vmatpush.bf16.msra.mxu0 0
    %422 = vmatpush.bf16.msra.mxu0 0
    %423 = vmatpush.bf16.msra.mxu0 %v411
    %424 = vmatmul.bf16.gmra.mxu0 %v414
    %v425 = vpop.f32.mrf.mxu0
    %v426 = vadd.f32 0.0, %v425
    %v427 = vpop.f32.mrf.mxu0
    %428 = vdwg.mxu0
    %430 = vrot.lane.b32.xlu0 %v426, 24
    %v431 = vpop.permute.xlu0 %430
    %vm433 = vcmask 261312
    %434 = vst.msk [vmem:[#allocation2] sm:$0xff] %vm433, %v431
    %436 = vset.pattern.permute.xlu0 0
    %437 = vperm.xlu0 %436, %v116
    %v438 = vpop.permute.xlu0 %437
    %v440 = vmul.f32 %v113, %v438
    %v441 = vpack.c.bf16 %v440, %v440
    %v442 = vld [vmem:[%s6] sm:$0xf]
    %v443 = vld [vmem:[%s6 + $0x4] sm:$0xf]
    %v444 = vld [vmem:[%s8] sm:$0xff]
    %v445 = vld [vmem:[%s8 + $0x8] sm:$0xff]
    %v448 = vunpack.c.l.b16 %v442
    %v449 = vunpack.c.l.b16 %v443
    %v450 = vpack.c.b16 %v449, %v448
    %452 = vrot.lane.b32.xlu0 %v441, 96
    %v453 = vpop.permute.xlu0 %452
    %v455 = vsel %vm136, %v450, 0
    %v458 = vsel %vm140, %v453, 0
    %460 = vmatpush.bf16.msra.mxu0 0
    %461 = vmatpush.bf16.msra.mxu0 0
    %462 = vmatpush.bf16.msra.mxu0 0
    %463 = vmatpush.bf16.msra.mxu0 0
    %464 = vmatpush.bf16.msra.mxu0 0
    %465 = vmatpush.bf16.msra.mxu0 0
    %466 = vmatpush.bf16.msra.mxu0 0
    %467 = vmatpush.bf16.msra.mxu0 %v458
    %468 = vmatmul.bf16.gmra.mxu0 %v455
    %v469 = vpop.f32.mrf.mxu0
    %v470 = vadd.f32 %v444, %v469
    %v471 = vpop.f32.mrf.mxu0
    %v472 = vadd.f32 %v445, %v471
    %473 = vdwg.mxu0
    %v474 = vld [vmem:[%s7] sm:$0xf]
    %v475 = vld [vmem:[%s7 + $0x4] sm:$0xf]
    %v478 = vunpack.c.l.b16 %v474
    %v479 = vunpack.c.l.b16 %v475
    %v480 = vpack.c.b16 %v479, %v478
    %481 = vrot.lane.b32.xlu0 %v441, 64
    %v482 = vpop.permute.xlu0 %481
    %v484 = vsel %vm136, %v480, 0
    %v487 = vsel %vm140, %v482, 0
    %489 = vmatpush.bf16.msra.mxu0 0
    %490 = vmatpush.bf16.msra.mxu0 0
    %491 = vmatpush.bf16.msra.mxu0 0
    %492 = vmatpush.bf16.msra.mxu0 0
    %493 = vmatpush.bf16.msra.mxu0 0
    %494 = vmatpush.bf16.msra.mxu0 0
    %495 = vmatpush.bf16.msra.mxu0 0
    %496 = vmatpush.bf16.msra.mxu0 %v487
    %497 = vmatmul.bf16.gmra.mxu0 %v484
    %v498 = vpop.f32.mrf.mxu0
    %v499 = vadd.f32 0.0, %v498
    %v500 = vpop.f32.mrf.mxu0
    %v501 = vadd.f32 0.0, %v500
    %502 = vdwg.mxu0
    %v503 = vpack.c.bf16 %v113, %v113
    %v504 = vpack.c.bf16 %v470, %v470
    %v505 = vpack.c.bf16 %v472, %v472
    %v506 = vpack.c.bf16 %v499, %v499
    %v507 = vpack.c.bf16 %v501, %v501
    %v510 = vunpack.c.l.b16 %v504
    %v511 = vunpack.c.l.b16 %v505
    %v512 = vpack.c.b16 %v511, %v510
    %v514 = vsel %vm136, %v503, 0
    %v517 = vsel %vm136, %v512, 0
    %519 = vmatpush.bf16.xpose.msra.mxu0 0
    %520 = vmatpush.bf16.xpose.msra.mxu0 0
    %521 = vmatpush.bf16.xpose.msra.mxu0 0
    %522 = vmatpush.bf16.xpose.msra.mxu0 0
    %523 = vmatpush.bf16.xpose.msra.mxu0 0
    %524 = vmatpush.bf16.xpose.msra.mxu0 0
    %525 = vmatpush.bf16.xpose.msra.mxu0 0
    %526 = vmatpush.bf16.xpose.msra.mxu0 %v517
    %527 = vmatmul.bf16.gmra.mxu0 %v514
    %v528 = vpop.f32.mrf.mxu0
    %v529 = vadd.f32 0.0, %v528
    %v530 = vpop.f32.mrf.mxu0
    %531 = vdwg.mxu0
    %v532 = vsel %vm216, %v529, -inf
    %533 = vmax.xlane.f32.xlu0 %v532
    %v534 = vpop.xlane.xlu0 %533
    %v535 = vsub.f32 %v529, %v534
    %v536 = vmul.f32 %v535, 1.442695
    %v537 = vpow.pop %v536
    %v538 = vsel %vm216, %v537, 0.0
    %539 = vadd.xlane.f32.xlu0 %v538
    %v540 = vpop.xlane.xlu0 %539
    %v541 = vrcp.pop %v540
    %v542 = vmul.f32 %v537, %v541
    %v543 = vpack.c.bf16 %v542, %v542
    %v546 = vunpack.c.l.b16 %v506
    %v547 = vunpack.c.l.b16 %v507
    %v548 = vpack.c.b16 %v547, %v546
    %v551 = vsel %vm216, %v543, 0
    %553 = vmatpush.bf16.msra.mxu0 0
    %554 = vmatpush.bf16.msra.mxu0 0
    %555 = vmatpush.bf16.msra.mxu0 0
    %556 = vmatpush.bf16.msra.mxu0 0
    %557 = vmatpush.bf16.msra.mxu0 0
    %558 = vmatpush.bf16.msra.mxu0 0
    %559 = vmatpush.bf16.msra.mxu0 0
    %560 = vmatpush.bf16.msra.mxu0 %v548
    %561 = vmatmul.bf16.gmra.mxu0 %v551
    %v562 = vpop.f32.mrf.mxu0
    %v563 = vadd.f32 0.0, %v562
    %v564 = vpop.f32.mrf.mxu0
    %565 = vdwg.mxu0
    %s566 = scalar_lea.vmem [#allocation2], 8
    %567 = vst.msk [vmem:[%s566] sm:$0xff] %vm136, %v563
    %v569 = vunpack.c.l.b16 %v503
    %v570 = vpack.c.b16 %v569, %v569
    %571 = vrot.lane.b32.xlu0 %v570, 120
    %v572 = vpop.permute.xlu0 %571
    %573 = vrot.lane.b32.xlu0 %v512, 120
    %v574 = vpop.permute.xlu0 %573
    %v576 = vsel %vm136, %v572, 0
    %v579 = vsel %vm136, %v574, 0
    %581 = vmatpush.bf16.xpose.msra.mxu0 0
    %582 = vmatpush.bf16.xpose.msra.mxu0 0
    %583 = vmatpush.bf16.xpose.msra.mxu0 0
    %584 = vmatpush.bf16.xpose.msra.mxu0 0
    %585 = vmatpush.bf16.xpose.msra.mxu0 0
    %586 = vmatpush.bf16.xpose.msra.mxu0 0
    %587 = vmatpush.bf16.xpose.msra.mxu0 0
    %588 = vmatpush.bf16.xpose.msra.mxu0 %v579
    %589 = vmatmul.bf16.gmra.mxu0 %v576
    %v590 = vpop.f32.mrf.mxu0
    %v591 = vadd.f32 0.0, %v590
    %v592 = vpop.f32.mrf.mxu0
    %593 = vdwg.mxu0
    %v594 = vsel %vm216, %v591, -inf
    %595 = vmax.xlane.f32.xlu0 %v594
    %v596 = vpop.xlane.xlu0 %595
    %v597 = vsub.f32 %v591, %v596
    %v598 = vmul.f32 %v597, 1.442695
    %v599 = vpow.pop %v598
    %v600 = vsel %vm216, %v599, 0.0
    %601 = vadd.xlane.f32.xlu0 %v600
    %v602 = vpop.xlane.xlu0 %601
    %v603 = vrcp.pop %v602
    %v604 = vmul.f32 %v599, %v603
    %v605 = vpack.c.bf16 %v604, %v604
    %606 = vrot.lane.b32.xlu0 %v548, 120
    %v607 = vpop.permute.xlu0 %606
    %v610 = vsel %vm216, %v605, 0
    %612 = vmatpush.bf16.msra.mxu0 0
    %613 = vmatpush.bf16.msra.mxu0 0
    %614 = vmatpush.bf16.msra.mxu0 0
    %615 = vmatpush.bf16.msra.mxu0 0
    %616 = vmatpush.bf16.msra.mxu0 0
    %617 = vmatpush.bf16.msra.mxu0 0
    %618 = vmatpush.bf16.msra.mxu0 0
    %619 = vmatpush.bf16.msra.mxu0 %v607
    %620 = vmatmul.bf16.gmra.mxu0 %v610
    %v621 = vpop.f32.mrf.mxu0
    %v622 = vadd.f32 0.0, %v621
    %v623 = vpop.f32.mrf.mxu0
    %624 = vdwg.mxu0
    %626 = vrot.lane.b32.xlu0 %v622, 8
    %v627 = vpop.permute.xlu0 %626
    %629 = vst.msk [vmem:[%s566] sm:$0xff] %vm313, %v627
    %630 = vrot.lane.b32.xlu0 %v570, 112
    %v631 = vpop.permute.xlu0 %630
    %632 = vrot.lane.b32.xlu0 %v512, 112
    %v633 = vpop.permute.xlu0 %632
    %v635 = vsel %vm136, %v631, 0
    %v638 = vsel %vm136, %v633, 0
    %640 = vmatpush.bf16.xpose.msra.mxu0 0
    %641 = vmatpush.bf16.xpose.msra.mxu0 0
    %642 = vmatpush.bf16.xpose.msra.mxu0 0
    %643 = vmatpush.bf16.xpose.msra.mxu0 0
    %644 = vmatpush.bf16.xpose.msra.mxu0 0
    %645 = vmatpush.bf16.xpose.msra.mxu0 0
    %646 = vmatpush.bf16.xpose.msra.mxu0 0
    %647 = vmatpush.bf16.xpose.msra.mxu0 %v638
    %648 = vmatmul.bf16.gmra.mxu0 %v635
    %v649 = vpop.f32.mrf.mxu0
    %v650 = vadd.f32 0.0, %v649
    %v651 = vpop.f32.mrf.mxu0
    %652 = vdwg.mxu0
    %v653 = vsel %vm216, %v650, -inf
    %654 = vmax.xlane.f32.xlu0 %v653
    %v655 = vpop.xlane.xlu0 %654
    %v656 = vsub.f32 %v650, %v655
    %v657 = vmul.f32 %v656, 1.442695
    %v658 = vpow.pop %v657
    %v659 = vsel %vm216, %v658, 0.0
    %660 = vadd.xlane.f32.xlu0 %v659
    %v661 = vpop.xlane.xlu0 %660
    %v662 = vrcp.pop %v661
    %v663 = vmul.f32 %v658, %v662
    %v664 = vpack.c.bf16 %v663, %v663
    %665 = vrot.lane.b32.xlu0 %v548, 112
    %v666 = vpop.permute.xlu0 %665
    %v669 = vsel %vm216, %v664, 0
    %671 = vmatpush.bf16.msra.mxu0 0
    %672 = vmatpush.bf16.msra.mxu0 0
    %673 = vmatpush.bf16.msra.mxu0 0
    %674 = vmatpush.bf16.msra.mxu0 0
    %675 = vmatpush.bf16.msra.mxu0 0
    %676 = vmatpush.bf16.msra.mxu0 0
    %677 = vmatpush.bf16.msra.mxu0 0
    %678 = vmatpush.bf16.msra.mxu0 %v666
    %679 = vmatmul.bf16.gmra.mxu0 %v669
    %v680 = vpop.f32.mrf.mxu0
    %v681 = vadd.f32 0.0, %v680
    %v682 = vpop.f32.mrf.mxu0
    %683 = vdwg.mxu0
    %685 = vrot.lane.b32.xlu0 %v681, 16
    %v686 = vpop.permute.xlu0 %685
    %688 = vst.msk [vmem:[%s566] sm:$0xff] %vm373, %v686
    %689 = vrot.lane.b32.xlu0 %v570, 104
    %v690 = vpop.permute.xlu0 %689
    %691 = vrot.lane.b32.xlu0 %v512, 104
    %v692 = vpop.permute.xlu0 %691
    %v694 = vsel %vm136, %v690, 0
    %v697 = vsel %vm136, %v692, 0
    %699 = vmatpush.bf16.xpose.msra.mxu0 0
    %700 = vmatpush.bf16.xpose.msra.mxu0 0
    %701 = vmatpush.bf16.xpose.msra.mxu0 0
    %702 = vmatpush.bf16.xpose.msra.mxu0 0
    %703 = vmatpush.bf16.xpose.msra.mxu0 0
    %704 = vmatpush.bf16.xpose.msra.mxu0 0
    %705 = vmatpush.bf16.xpose.msra.mxu0 0
    %706 = vmatpush.bf16.xpose.msra.mxu0 %v697
    %707 = vmatmul.bf16.gmra.mxu0 %v694
    %v708 = vpop.f32.mrf.mxu0
    %v709 = vadd.f32 0.0, %v708
    %v710 = vpop.f32.mrf.mxu0
    %711 = vdwg.mxu0
    %v712 = vsel %vm216, %v709, -inf
    %713 = vmax.xlane.f32.xlu0 %v712
    %v714 = vpop.xlane.xlu0 %713
    %v715 = vsub.f32 %v709, %v714
    %v716 = vmul.f32 %v715, 1.442695
    %v717 = vpow.pop %v716
    %v718 = vsel %vm216, %v717, 0.0
    %719 = vadd.xlane.f32.xlu0 %v718
    %v720 = vpop.xlane.xlu0 %719
    %v721 = vrcp.pop %v720
    %v722 = vmul.f32 %v717, %v721
    %v723 = vpack.c.bf16 %v722, %v722
    %724 = vrot.lane.b32.xlu0 %v548, 104
    %v725 = vpop.permute.xlu0 %724
    %v728 = vsel %vm216, %v723, 0
    %730 = vmatpush.bf16.msra.mxu0 0
    %731 = vmatpush.bf16.msra.mxu0 0
    %732 = vmatpush.bf16.msra.mxu0 0
    %733 = vmatpush.bf16.msra.mxu0 0
    %734 = vmatpush.bf16.msra.mxu0 0
    %735 = vmatpush.bf16.msra.mxu0 0
    %736 = vmatpush.bf16.msra.mxu0 0
    %737 = vmatpush.bf16.msra.mxu0 %v725
    %738 = vmatmul.bf16.gmra.mxu0 %v728
    %v739 = vpop.f32.mrf.mxu0
    %v740 = vadd.f32 0.0, %v739
    %v741 = vpop.f32.mrf.mxu0
    %742 = vdwg.mxu0
    %744 = vrot.lane.b32.xlu0 %v740, 24
    %v745 = vpop.permute.xlu0 %744
    %747 = vst.msk [vmem:[%s566] sm:$0xff] %vm433, %v745
    %v748 = vld [vmem:[#allocation2] sm:$0xff]
    %v749 = vld [vmem:[#allocation2 + $0x8] sm:$0xff]
    %v750 = vpack.c.bf16 %v749, %v748
    %v751 = vld [vmem:[%s4] sm:$0xf]
    %v752 = vld [vmem:[%s4 + $0x4] sm:$0xf]
    %v753 = vld [vmem:[%s4 + $0x8] sm:$0xf]
    %v754 = vld [vmem:[%s4 + $0xc] sm:$0xf]
    %v755 = vld [vmem:[%s5] sm:$0x1]
    %v757 = vperm.slane %v755, 0
    %v763 = vunpack.c.l.b16 %v751
    %v764 = vunpack.c.l.b16 %v752
    %v765 = vunpack.c.l.b16 %v753
    %v766 = vunpack.c.l.b16 %v754
    %v767 = vpack.c.b16 %v764, %v763
    %v768 = vpack.c.b16 %v766, %v765
    %v772 = vsel %vm97, %v750, 0
    %774 = vmatpush.bf16.msra.mxu0 0
    %775 = vmatpush.bf16.msra.mxu0 0
    %776 = vmatpush.bf16.msra.mxu0 0
    %777 = vmatpush.bf16.msra.mxu0 0
    %778 = vmatpush.bf16.msra.mxu0 0
    %779 = vmatpush.bf16.msra.mxu0 0
    %780 = vmatpush.bf16.msra.mxu0 %v768
    %781 = vmatpush.bf16.msra.mxu0 %v767
    %782 = vmatmul.bf16.gmra.mxu0 %v772
    %v783 = vpop.f32.mrf.mxu0
    %v784 = vadd.f32 %v757, %v783
    %v785 = vpop.f32.mrf.mxu0
    %v786 = vadd.f32 %v757, %v785
    %787 = vdwg.mxu0
    %v788 = vadd.f32 %v74, %v784
    %v789 = vadd.f32 %v75, %v786
    %v790 = vsel %vm97, %v788, 0.0
    %791 = vadd.xlane.f32.xlu0 %v790
    %v792 = vpop.xlane.xlu0 %791
    %v793 = vsel %vm97, %v789, 0.0
    %794 = vadd.xlane.f32.xlu0 %v793
    %v795 = vpop.xlane.xlu0 %794
    %v796 = vrcp.pop 32.0
    %v797 = vmul.f32 32.0, %v796
    %v798 = vsub.f32 1.0, %v797
    %v799 = vmul.f32 %v796, %v798
    %v800 = vadd.f32 %v796, %v799
    %vm801 = vweird.f32 %v796
    %v802 = vsel %vm801, %v796, %v800
    %v803 = vmul.f32 %v792, %v802
    %v804 = vmul.f32 %v795, %v802
    %v805 = vsub.f32 %v788, %v803
    %v806 = vsub.f32 %v789, %v804
    %v807 = vmul.f32 %v805, %v805
    %v808 = vmul.f32 %v806, %v806
    %v809 = vsel %vm97, %v807, 0.0
    %810 = vadd.xlane.f32.xlu0 %v809
    %v811 = vpop.xlane.xlu0 %810
    %v812 = vsel %vm97, %v808, 0.0
    %813 = vadd.xlane.f32.xlu0 %v812
    %v814 = vpop.xlane.xlu0 %813
    %v815 = vmul.f32 %v811, %v802
    %v816 = vmul.f32 %v814, %v802
    %v817 = vadd.f32 %v815, 1e-05
    %v818 = vadd.f32 %v816, 1e-05
    %v819 = vrsqrt.pop %v817
    %v820 = vmul.f32 %v819, %v817
    %v821 = vmul.f32 %v820, %v819
    %v822 = vmul.f32 0.5, %v821
    %v823 = vsub.f32 1.5, %v822
    %v824 = vmul.f32 %v819, %v823
    %vm825 = vweird.f32 %v817
    %vm826 = vweird.f32 %v819
    %vm827 = vmor %vm825, %vm826
    %v828 = vsel %vm827, %v819, %v824
    %v829 = vrsqrt.pop %v818
    %v830 = vmul.f32 %v829, %v818
    %v831 = vmul.f32 %v830, %v829
    %v832 = vmul.f32 0.5, %v831
    %v833 = vsub.f32 1.5, %v832
    %v834 = vmul.f32 %v829, %v833
    %vm835 = vweird.f32 %v818
    %vm836 = vweird.f32 %v829
    %vm837 = vmor %vm835, %vm836
    %v838 = vsel %vm837, %v829, %v834
    %v839 = vmul.f32 %v805, %v828
    %v840 = vmul.f32 %v806, %v838
    %v841 = vld [vmem:[%s9] sm:$0x1]
    %v843 = vperm.slane %v841, 0
    %v845 = vmul.f32 %v839, %v843
    %v846 = vmul.f32 %v840, %v843
    %v847 = vld [vmem:[%s10] sm:$0x1]
    %v849 = vperm.slane %v847, 0
    %v851 = vadd.f32 %v845, %v849
    %v852 = vadd.f32 %v846, %v849
    %v853 = vpack.c.bf16 %v852, %v851
    %v854 = vld [vmem:[#allocation3] sm:$0xf]
    %v855 = vld [vmem:[#allocation3 + $0x4] sm:$0xf]
    %v856 = vld [vmem:[#allocation3 + $0x8] sm:$0xf]
    %v857 = vld [vmem:[#allocation3 + $0xc] sm:$0xf]
    %v858 = vld [vmem:[%s12] sm:$0x1]
    %v860 = vperm.slane %v858, 0
    %v866 = vunpack.c.l.b16 %v854
    %v867 = vunpack.c.l.b16 %v855
    %v868 = vunpack.c.l.b16 %v856
    %v869 = vunpack.c.l.b16 %v857
    %v870 = vpack.c.b16 %v867, %v866
    %v871 = vpack.c.b16 %v869, %v868
    %v875 = vsel %vm97, %v853, 0
    %877 = vmatpush.bf16.msra.mxu0 0
    %878 = vmatpush.bf16.msra.mxu0 0
    %879 = vmatpush.bf16.msra.mxu0 0
    %880 = vmatpush.bf16.msra.mxu0 0
    %881 = vmatpush.bf16.msra.mxu0 0
    %882 = vmatpush.bf16.msra.mxu0 0
    %883 = vmatpush.bf16.msra.mxu0 %v871
    %884 = vmatpush.bf16.msra.mxu0 %v870
    %885 = vmatmul.bf16.gmra.mxu0 %v875
    %v886 = vpop.f32.mrf.mxu0
    %v887 = vadd.f32 %v860, %v886
    %v888 = vpop.f32.mrf.mxu0
    %v889 = vadd.f32 %v860, %v888
    %890 = vdwg.mxu0
    %v891 = vmax.f32 %v887, 0.0
    %v892 = vmax.f32 %v889, 0.0
    %v893 = vpack.c.bf16 %v892, %v891
    %v894 = vld [vmem:[%s13] sm:$0xf]
    %v895 = vld [vmem:[%s13 + $0x4] sm:$0xf]
    %v896 = vld [vmem:[%s13 + $0x8] sm:$0xf]
    %v897 = vld [vmem:[%s13 + $0xc] sm:$0xf]
    %v898 = vld [vmem:[%s13 + $0x10] sm:$0xf]
    %v899 = vld [vmem:[%s13 + $0x14] sm:$0xf]
    %v900 = vld [vmem:[%s13 + $0x18] sm:$0xf]
    %v901 = vld [vmem:[%s13 + $0x1c] sm:$0xf]
    %v902 = vld [vmem:[%s14] sm:$0x1]
    %v904 = vperm.slane %v902, 0
    %v914 = vunpack.c.l.b16 %v894
    %v915 = vunpack.c.l.b16 %v895
    %v916 = vunpack.c.l.b16 %v896
    %v917 = vunpack.c.l.b16 %v897
    %v918 = vunpack.c.l.b16 %v898
    %v919 = vunpack.c.l.b16 %v899
    %v920 = vunpack.c.l.b16 %v900
    %v921 = vunpack.c.l.b16 %v901
    %v922 = vpack.c.b16 %v915, %v914
    %v923 = vpack.c.b16 %v917, %v916
    %v924 = vpack.c.b16 %v919, %v918
    %v925 = vpack.c.b16 %v921, %v920
    %vm930 = vcmask 523264
    %v932 = vsel %vm930, %v893, 0
    %934 = vmatpush.bf16.msra.mxu0 0
    %935 = vmatpush.bf16.msra.mxu0 0
    %936 = vmatpush.bf16.msra.mxu0 0
    %937 = vmatpush.bf16.msra.mxu0 0
    %938 = vmatpush.bf16.msra.mxu0 %v925
    %939 = vmatpush.bf16.msra.mxu0 %v924
    %940 = vmatpush.bf16.msra.mxu0 %v923
    %941 = vmatpush.bf16.msra.mxu0 %v922
    %942 = vmatmul.bf16.gmra.mxu0 %v932
    %v943 = vpop.f32.mrf.mxu0
    %v944 = vadd.f32 %v904, %v943
    %v945 = vpop.f32.mrf.mxu0
    %v946 = vadd.f32 %v904, %v945
    %947 = vdwg.mxu0
    %v948 = vadd.f32 %v851, %v944
    %v949 = vadd.f32 %v852, %v946
    %v950 = vsel %vm97, %v948, 0.0
    %951 = vadd.xlane.f32.xlu0 %v950
    %v952 = vpop.xlane.xlu0 %951
    %v953 = vsel %vm97, %v949, 0.0
    %954 = vadd.xlane.f32.xlu0 %v953
    %v955 = vpop.xlane.xlu0 %954
    %v956 = vmul.f32 %v952, %v802
    %v957 = vmul.f32 %v955, %v802
    %v958 = vsub.f32 %v948, %v956
    %v959 = vsub.f32 %v949, %v957
    %v960 = vmul.f32 %v958, %v958
    %v961 = vmul.f32 %v959, %v959
    %v962 = vsel %vm97, %v960, 0.0
    %963 = vadd.xlane.f32.xlu0 %v962
    %v964 = vpop.xlane.xlu0 %963
    %v965 = vsel %vm97, %v961, 0.0
    %966 = vadd.xlane.f32.xlu0 %v965
    %v967 = vpop.xlane.xlu0 %966
    %v968 = vmul.f32 %v964, %v802
    %v969 = vmul.f32 %v967, %v802
    %v970 = vadd.f32 %v968, 1e-05
    %v971 = vadd.f32 %v969, 1e-05
    %v972 = vrsqrt.pop %v970
    %v973 = vmul.f32 %v972, %v970
    %v974 = vmul.f32 %v973, %v972
    %v975 = vmul.f32 0.5, %v974
    %v976 = vsub.f32 1.5, %v975
    %v977 = vmul.f32 %v972, %v976
    %vm978 = vweird.f32 %v970
    %vm979 = vweird.f32 %v972
    %vm980 = vmor %vm978, %vm979
    %v981 = vsel %vm980, %v972, %v977
    %v982 = vrsqrt.pop %v971
    %v983 = vmul.f32 %v982, %v971
    %v984 = vmul.f32 %v983, %v982
    %v985 = vmul.f32 0.5, %v984
    %v986 = vsub.f32 1.5, %v985
    %v987 = vmul.f32 %v982, %v986
    %vm988 = vweird.f32 %v971
    %vm989 = vweird.f32 %v982
    %vm990 = vmor %vm988, %vm989
    %v991 = vsel %vm990, %v982, %v987
    %v992 = vmul.f32 %v958, %v981
    %v993 = vmul.f32 %v959, %v991
    %v994 = vld [vmem:[%s15] sm:$0x1]
    %v996 = vperm.slane %v994, 0
    %v998 = vmul.f32 %v992, %v996
    %v999 = vmul.f32 %v993, %v996
    %v1000 = vld [vmem:[%s16] sm:$0x1]
    %v1002 = vperm.slane %v1000, 0
    %v1004 = vadd.f32 %v998, %v1002
    %v1005 = vadd.f32 %v999, %v1002
    %1006 = vst.msk [vmem:[#allocation6] sm:$0xff] %vm97, %v1004
    %1007 = vst.msk [vmem:[#allocation6 + $0x8] sm:$0xff] %vm97, %v1005
    // Predicated region
    $region74: #{tpu_custom_call.1} parent=1 // pred_check
      _
    $region75: #{tpu_custom_call.1} parent=1 // pred_check_branch
      %1009 = sbr.rel (0) target = $region77
    $region76: #{tpu_custom_call.1} parent=1 // pred_region
      %1011 = vsyncadd [#allocation5], 0
      %s1012 = sshll.u32 [#allocation6], 4
      %s1013 = int_to_ptr.vmem [resolvable:$true] %s1012
      %s1014 = sshll.u32 %s17, 4
      %s1015 = int_to_ptr.hbm [resolvable:$true] %s1014
      %1020 = dma.vmem_to_hbm [thread:$0]  %s1013, 256, %s1015, [#allocation5], 128, 128, 8
    $region77: #{tpu_custom_call.1} parent=1 // pred_fallthru
      _
    // Predicated region
    $region78: #{tpu_custom_call.1} parent=1 // pred_check
      _
    $region79: #{tpu_custom_call.1} parent=1 // pred_check_branch
      %1022 = sbr.rel (0) target = $region81
    $region80: #{tpu_custom_call.1} parent=1 // pred_region
      %1024 = dma.done [#allocation5], 256
    $region81: #{tpu_custom_call.1} parent=1 // pred_fallthru
      _
    %1025 = vsyncpa [#allocation4], 1
    %1026 = vsyncpa [#allocation5], 1

</llo_original>
